<compile_context>
chip_gen: v6e
topology: v6e:2x2x1
jax: 0.10.0
libtpu: 0.0.40
codegen_flags: <defaults>
</compile_context>

<pallas_src>
import functools

import jax
import jax.numpy as jnp
from jax.experimental import pallas as pl

# ---------------- small OPT-like config ----------------
VOCAB        = 256
MAX_POS      = 64
PAD_ID       = 1          # OPT pad_token_id
POS_OFFSET   = 2          # OPTLearnedPositionalEmbedding offset
HIDDEN       = 128
WORD_EMBED   = 128        # == HIDDEN -> project_in / project_out are None
N_HEADS      = 4
HEAD_DIM     = HIDDEN // N_HEADS
FFN          = 256
N_LAYERS     = 2
SEQ          = 16
EPS          = 1e-5
ACT          = "relu"     # OPT default activation_function
DO_LN_BEFORE = True       # OPT default (pre-LN), _remove_final_layer_norm=False
NEG_INF      = -1e30      # finite large-negative mask value (avoids inf-inf NaN)


# ---------------- in-kernel helpers (operate on f32 values) ----------------
def _layer_norm(x, g, b):
    """x: [T, D]; g, b: [1, D]."""
    mean = jnp.mean(x, axis=-1, keepdims=True)
    var = jnp.mean(jnp.square(x - mean), axis=-1, keepdims=True)
    return (x - mean) * jax.lax.rsqrt(var + EPS) * g + b


def _activation(x):
    if ACT == "relu":
        return jnp.maximum(x, 0.0)
    if ACT == "gelu":
        return jax.nn.gelu(x, approximate=False)
    if ACT == "gelu_pytorch_tanh":
        return jax.nn.gelu(x, approximate=True)
    raise ValueError(ACT)


# ---------------- fused whole-decoder kernel ----------------
def _opt_decoder_kernel(
    h_ref,                                                 # [T, D] hidden states
    ln1_g_ref, ln1_b_ref,                                  # [L, D]
    qkv_w_ref, qkv_b_ref,                                  # [L, D, 3D], [L, 3D]
    out_w_ref, out_b_ref,                                  # [L, D, D],  [L, D]
    ln2_g_ref, ln2_b_ref,                                  # [L, D]
    fc1_w_ref, fc1_b_ref,                                  # [L, D, F],  [L, F]
    fc2_w_ref, fc2_b_ref,                                  # [L, F, D],  [L, D]
    fln_g_ref, fln_b_ref,                                  # [1, D]
    o_ref,                                                 # [T, D]
    *, scaling,
):
    T = h_ref.shape[0]
    h = h_ref[...].astype(jnp.float32)

    # Causal mask, built once and reused by every layer / head.
    qi = jax.lax.broadcasted_iota(jnp.int32, (T, T), 0)
    ki = jax.lax.broadcasted_iota(jnp.int32, (T, T), 1)
    causal = qi >= ki
    # TODO(synk): IterationState-driven attention (pad masking / paged KV cache)
    # is abstract in the spec; plain causal self-attention is implemented here.

    for l in range(N_LAYERS):
        # ----- self-attention block (pre-LN) -----
        residual = h
        hn = _layer_norm(h, ln1_g_ref[l:l + 1, :], ln1_b_ref[l:l + 1, :]) \
            if DO_LN_BEFORE else h

        qkv = jnp.dot(hn, qkv_w_ref[l], preferred_element_type=jnp.float32)
        qkv = qkv + qkv_b_ref[l:l + 1, :]                  # [T, 3D]
        q = qkv[:, 0 * HIDDEN:1 * HIDDEN] * scaling
        k = qkv[:, 1 * HIDDEN:2 * HIDDEN]
        v = qkv[:, 2 * HIDDEN:3 * HIDDEN]

        # Per-head attention, heads unrolled; result re-assembled lane-dense.
        head_outs = []
        for hd in range(N_HEADS):
            lo = hd * HEAD_DIM
            qh = q[:, lo:lo + HEAD_DIM]                    # [T, Dh]
            kh = k[:, lo:lo + HEAD_DIM]
            vh = v[:, lo:lo + HEAD_DIM]
            s = jax.lax.dot_general(                       # q @ k^T  -> [T, T]
                qh, kh, (((1,), (1,)), ((), ())),
                preferred_element_type=jnp.float32)
            s = jnp.where(causal, s, NEG_INF)
            m = jnp.max(s, axis=-1, keepdims=True)
            p = jnp.exp(s - m)
            p = p * pl.reciprocal(jnp.sum(p, axis=-1, keepdims=True), approx=True)
            head_outs.append(
                jnp.dot(p, vh, preferred_element_type=jnp.float32))  # [T, Dh]
        attn = jnp.concatenate(head_outs, axis=-1)         # [T, D] lane-dense

        attn = jnp.dot(attn, out_w_ref[l], preferred_element_type=jnp.float32)
        attn = attn + out_b_ref[l:l + 1, :]
        h = residual + attn
        if not DO_LN_BEFORE:
            h = _layer_norm(h, ln1_g_ref[l:l + 1, :], ln1_b_ref[l:l + 1, :])

        # ----- MLP block (pre-LN) -----
        residual = h
        hn = _layer_norm(h, ln2_g_ref[l:l + 1, :], ln2_b_ref[l:l + 1, :]) \
            if DO_LN_BEFORE else h
        ff = jnp.dot(hn, fc1_w_ref[l], preferred_element_type=jnp.float32)
        ff = _activation(ff + fc1_b_ref[l:l + 1, :])       # fused activation
        ff = jnp.dot(ff, fc2_w_ref[l], preferred_element_type=jnp.float32)
        ff = ff + fc2_b_ref[l:l + 1, :]
        h = residual + ff
        if not DO_LN_BEFORE:
            h = _layer_norm(h, ln2_g_ref[l:l + 1, :], ln2_b_ref[l:l + 1, :])

    # Final layer norm (do_layer_norm_before and not _remove_final_layer_norm).
    h = _layer_norm(h, fln_g_ref[...], fln_b_ref[...])
    # project_out is None (WORD_EMBED == HIDDEN).
    o_ref[...] = h.astype(o_ref.dtype)


# ---------------- parameter init (deterministic, synthetic) ----------------
def init_params(key):
    std = 0.02
    keys = jax.random.split(key, 2 + 4 * N_LAYERS)

    embed_tokens = std * jax.random.normal(keys[0], (VOCAB, WORD_EMBED), jnp.float32)
    embed_tokens = embed_tokens.at[PAD_ID].set(0.0)        # padding_idx row zeroed
    embed_positions = std * jax.random.normal(
        keys[1], (MAX_POS + POS_OFFSET, HIDDEN), jnp.float32)

    def stack(make):
        return jnp.stack([make(i) for i in range(N_LAYERS)], axis=0)

    layers = dict(
        ln1_g=jnp.ones((N_LAYERS, HIDDEN), jnp.float32),
        ln1_b=jnp.zeros((N_LAYERS, HIDDEN), jnp.float32),
        qkv_w=stack(lambda i: std * jax.random.normal(
            keys[2 + 4 * i + 0], (HIDDEN, 3 * HIDDEN), jnp.float32)),
        qkv_b=jnp.zeros((N_LAYERS, 3 * HIDDEN), jnp.float32),
        out_w=stack(lambda i: std * jax.random.normal(
            keys[2 + 4 * i + 1], (HIDDEN, HIDDEN), jnp.float32)),
        out_b=jnp.zeros((N_LAYERS, HIDDEN), jnp.float32),
        ln2_g=jnp.ones((N_LAYERS, HIDDEN), jnp.float32),
        ln2_b=jnp.zeros((N_LAYERS, HIDDEN), jnp.float32),
        fc1_w=stack(lambda i: std * jax.random.normal(
            keys[2 + 4 * i + 2], (HIDDEN, FFN), jnp.float32)),
        fc1_b=jnp.zeros((N_LAYERS, FFN), jnp.float32),
        fc2_w=stack(lambda i: std * jax.random.normal(
            keys[2 + 4 * i + 3], (FFN, HIDDEN), jnp.float32)),
        fc2_b=jnp.zeros((N_LAYERS, HIDDEN), jnp.float32),
    )

    return dict(
        embed_tokens=embed_tokens,
        embed_positions=embed_positions,
        layers=layers,
        final_ln_g=jnp.ones((HIDDEN,), jnp.float32),
        final_ln_b=jnp.zeros((HIDDEN,), jnp.float32),
        # project_in / project_out are None because WORD_EMBED == HIDDEN
    )


# ---------------- forward ----------------
def opt_decoder_forward(params, input_ids, positions):
    scaling = HEAD_DIM ** (-0.5)

    # Embedding gathers stay as tiny XLA glue; everything else is one kernel.
    inputs_embeds = jnp.take(params["embed_tokens"], input_ids, axis=0)       # [T, D]
    pos_embeds = jnp.take(params["embed_positions"], positions + POS_OFFSET, axis=0)
    h0 = inputs_embeds + pos_embeds                                           # [T, D]

    L = params["layers"]
    kernel = functools.partial(_opt_decoder_kernel, scaling=scaling)
    return pl.pallas_call(
        kernel,
        out_shape=jax.ShapeDtypeStruct((h0.shape[0], WORD_EMBED), h0.dtype),
    )(
        h0,
        L["ln1_g"], L["ln1_b"],
        L["qkv_w"], L["qkv_b"],
        L["out_w"], L["out_b"],
        L["ln2_g"], L["ln2_b"],
        L["fc1_w"], L["fc1_b"],
        L["fc2_w"], L["fc2_b"],
        params["final_ln_g"].reshape(1, -1),
        params["final_ln_b"].reshape(1, -1),
    )


# ---------------- main ----------------
if __name__ == "__main__":
    key = jax.random.PRNGKey(0)
    pkey, ikey = jax.random.split(key)

    params = init_params(pkey)
    input_ids = jax.random.randint(ikey, (SEQ,), 0, VOCAB, dtype=jnp.int32)
    positions = jnp.arange(SEQ, dtype=jnp.int32)

    out = jax.jit(opt_decoder_forward)(params, input_ids, positions)
    out = jax.block_until_ready(out)

    assert out.shape == (SEQ, WORD_EMBED)
    assert bool(jnp.all(jnp.isfinite(out)))
    print("KERNEL_OK")
</pallas_src>

<mosaic_0001>
module attributes {stable_mosaic.version = 11 : i64} {
  func.func @_opt_decoder_kernel(%arg0: memref<16x128xf32, #tpu.memory_space<vmem>>, %arg1: memref<2x128xf32, #tpu.memory_space<vmem>>, %arg2: memref<2x128xf32, #tpu.memory_space<vmem>>, %arg3: memref<2x128x384xf32, #tpu.memory_space<vmem>>, %arg4: memref<2x384xf32, #tpu.memory_space<vmem>>, %arg5: memref<2x128x128xf32, #tpu.memory_space<vmem>>, %arg6: memref<2x128xf32, #tpu.memory_space<vmem>>, %arg7: memref<2x128xf32, #tpu.memory_space<vmem>>, %arg8: memref<2x128xf32, #tpu.memory_space<vmem>>, %arg9: memref<2x128x256xf32, #tpu.memory_space<vmem>>, %arg10: memref<2x256xf32, #tpu.memory_space<vmem>>, %arg11: memref<2x256x128xf32, #tpu.memory_space<vmem>>, %arg12: memref<2x128xf32, #tpu.memory_space<vmem>>, %arg13: memref<1x128xf32, #tpu.memory_space<vmem>>, %arg14: memref<1x128xf32, #tpu.memory_space<vmem>>, %arg15: memref<16x128xf32, #tpu.memory_space<vmem>>) attributes {dimension_semantics = [], scalar_prefetch = 0 : i64, scratch_operands = 0 : i64, tpu.core_type = #tpu.core_type<tc>} {
    %c0 = arith.constant 0 : index
    %c0_0 = arith.constant 0 : index
    %0 = vector.load %arg0[%c0, %c0_0] : memref<16x128xf32, #tpu.memory_space<vmem>>, vector<16x128xf32>
    %1 = tpu.iota {dimensions = array<i32: 0>} : vector<16x16xi32>
    %2 = tpu.iota {dimensions = array<i32: 1>} : vector<16x16xi32>
    %3 = arith.cmpi sge, %1, %2 : vector<16x16xi32>
    %c0_1 = arith.constant 0 : index
    %c0_2 = arith.constant 0 : index
    %4 = vector.load %arg1[%c0_1, %c0_2] : memref<2x128xf32, #tpu.memory_space<vmem>>, vector<1x128xf32>
    %c0_3 = arith.constant 0 : index
    %c0_4 = arith.constant 0 : index
    %5 = vector.load %arg2[%c0_3, %c0_4] : memref<2x128xf32, #tpu.memory_space<vmem>>, vector<1x128xf32>
    %cst = arith.constant dense<0.000000e+00> : vector<16xf32>
    %6 = vector.multi_reduction <add>, %0, %cst [1] : vector<16x128xf32> to vector<16xf32>
    %7 = vector.shape_cast %6 : vector<16xf32> to vector<16x1xf32>
    %cst_5 = arith.constant 1.280000e+02 : f32
    %8 = vector.broadcast %cst_5 : f32 to vector<16x1xf32>
    %9 = arith.divf %7, %8 : vector<16x1xf32>
    %10 = vector.broadcast %9 : vector<16x1xf32> to vector<16x128xf32>
    %11 = arith.subf %0, %10 : vector<16x128xf32>
    %12 = arith.mulf %11, %11 : vector<16x128xf32>
    %cst_6 = arith.constant dense<0.000000e+00> : vector<16xf32>
    %13 = vector.multi_reduction <add>, %12, %cst_6 [1] : vector<16x128xf32> to vector<16xf32>
    %14 = vector.shape_cast %13 : vector<16xf32> to vector<16x1xf32>
    %cst_7 = arith.constant 1.280000e+02 : f32
    %15 = vector.broadcast %cst_7 : f32 to vector<16x1xf32>
    %16 = arith.divf %14, %15 : vector<16x1xf32>
    %17 = vector.broadcast %9 : vector<16x1xf32> to vector<16x128xf32>
    %18 = arith.subf %0, %17 : vector<16x128xf32>
    %cst_8 = arith.constant 9.99999974E-6 : f32
    %19 = vector.broadcast %cst_8 : f32 to vector<16x1xf32>
    %20 = arith.addf %16, %19 : vector<16x1xf32>
    %21 = math.rsqrt %20 : vector<16x1xf32>
    %22 = vector.broadcast %21 : vector<16x1xf32> to vector<16x128xf32>
    %23 = arith.mulf %18, %22 : vector<16x128xf32>
    %24 = vector.broadcast %4 : vector<1x128xf32> to vector<16x128xf32>
    %25 = arith.mulf %23, %24 : vector<16x128xf32>
    %26 = vector.broadcast %5 : vector<1x128xf32> to vector<16x128xf32>
    %27 = arith.addf %25, %26 : vector<16x128xf32>
    %c0_9 = arith.constant 0 : index
    %c0_10 = arith.constant 0 : index
    %c0_11 = arith.constant 0 : index
    %28 = vector.load %arg3[%c0_9, %c0_10, %c0_11] : memref<2x128x384xf32, #tpu.memory_space<vmem>>, vector<1x128x384xf32>
    %29 = vector.shape_cast %28 : vector<1x128x384xf32> to vector<128x384xf32>
    %cst_12 = arith.constant dense<0.000000e+00> : vector<16x384xf32>
    %30 = tpu.matmul %27, %29, %cst_12 {dimension_numbers = #tpu.dot_dimension_numbers<[1], [0], [0], [1], [0, 0, 1, 1], [], []>} : vector<16x128xf32>, vector<128x384xf32>, vector<16x384xf32> -> vector<16x384xf32>
    %c0_13 = arith.constant 0 : index
    %c0_14 = arith.constant 0 : index
    %31 = vector.load %arg4[%c0_13, %c0_14] : memref<2x384xf32, #tpu.memory_space<vmem>>, vector<1x384xf32>
    %32 = vector.broadcast %31 : vector<1x384xf32> to vector<16x384xf32>
    %33 = arith.addf %30, %32 : vector<16x384xf32>
    %34 = vector.extract_strided_slice %33 {offsets = [0, 0], sizes = [16, 128], strides = [1, 1]} : vector<16x384xf32> to vector<16x128xf32>
    %cst_15 = arith.constant 0.176776692 : f32
    %35 = vector.broadcast %cst_15 : f32 to vector<16x128xf32>
    %36 = arith.mulf %34, %35 : vector<16x128xf32>
    %37 = vector.extract_strided_slice %33 {offsets = [0, 128], sizes = [16, 128], strides = [1, 1]} : vector<16x384xf32> to vector<16x128xf32>
    %38 = vector.extract_strided_slice %33 {offsets = [0, 256], sizes = [16, 128], strides = [1, 1]} : vector<16x384xf32> to vector<16x128xf32>
    %39 = vector.extract_strided_slice %36 {offsets = [0, 0], sizes = [16, 32], strides = [1, 1]} : vector<16x128xf32> to vector<16x32xf32>
    %40 = vector.extract_strided_slice %37 {offsets = [0, 0], sizes = [16, 32], strides = [1, 1]} : vector<16x128xf32> to vector<16x32xf32>
    %41 = vector.extract_strided_slice %38 {offsets = [0, 0], sizes = [16, 32], strides = [1, 1]} : vector<16x128xf32> to vector<16x32xf32>
    %cst_16 = arith.constant dense<0.000000e+00> : vector<16x16xf32>
    %42 = tpu.matmul %39, %40, %cst_16 {dimension_numbers = #tpu.dot_dimension_numbers<[1], [1], [0], [0], [0, 0, 1, 0], [], []>} : vector<16x32xf32>, vector<16x32xf32>, vector<16x16xf32> -> vector<16x16xf32>
    %cst_17 = arith.constant -1.000000e+30 : f32
    %43 = vector.broadcast %cst_17 : f32 to vector<16x16xf32>
    %44 = arith.select %3, %42, %43 : vector<16x16xi1>, vector<16x16xf32>
    %cst_18 = arith.constant dense<0xFF800000> : vector<16xf32>
    %45 = vector.multi_reduction <maximumf>, %44, %cst_18 [1] : vector<16x16xf32> to vector<16xf32>
    %46 = vector.shape_cast %45 : vector<16xf32> to vector<16x1xf32>
    %47 = vector.broadcast %46 : vector<16x1xf32> to vector<16x16xf32>
    %48 = arith.subf %44, %47 : vector<16x16xf32>
    %49 = math.exp %48 : vector<16x16xf32>
    %cst_19 = arith.constant dense<0.000000e+00> : vector<16xf32>
    %50 = vector.multi_reduction <add>, %49, %cst_19 [1] : vector<16x16xf32> to vector<16xf32>
    %51 = vector.shape_cast %50 : vector<16xf32> to vector<16x1xf32>
    %52 = tpu.reciprocal %51 {approx = true} : vector<16x1xf32> -> vector<16x1xf32>
    %53 = vector.broadcast %52 : vector<16x1xf32> to vector<16x16xf32>
    %54 = arith.mulf %49, %53 : vector<16x16xf32>
    %cst_20 = arith.constant dense<0.000000e+00> : vector<16x32xf32>
    %55 = tpu.matmul %54, %41, %cst_20 {dimension_numbers = #tpu.dot_dimension_numbers<[1], [0], [0], [1], [0, 0, 1, 1], [], []>} : vector<16x16xf32>, vector<16x32xf32>, vector<16x32xf32> -> vector<16x32xf32>
    %56 = vector.extract_strided_slice %36 {offsets = [0, 32], sizes = [16, 32], strides = [1, 1]} : vector<16x128xf32> to vector<16x32xf32>
    %57 = vector.extract_strided_slice %37 {offsets = [0, 32], sizes = [16, 32], strides = [1, 1]} : vector<16x128xf32> to vector<16x32xf32>
    %58 = vector.extract_strided_slice %38 {offsets = [0, 32], sizes = [16, 32], strides = [1, 1]} : vector<16x128xf32> to vector<16x32xf32>
    %cst_21 = arith.constant dense<0.000000e+00> : vector<16x16xf32>
    %59 = tpu.matmul %56, %57, %cst_21 {dimension_numbers = #tpu.dot_dimension_numbers<[1], [1], [0], [0], [0, 0, 1, 0], [], []>} : vector<16x32xf32>, vector<16x32xf32>, vector<16x16xf32> -> vector<16x16xf32>
    %cst_22 = arith.constant -1.000000e+30 : f32
    %60 = vector.broadcast %cst_22 : f32 to vector<16x16xf32>
    %61 = arith.select %3, %59, %60 : vector<16x16xi1>, vector<16x16xf32>
    %cst_23 = arith.constant dense<0xFF800000> : vector<16xf32>
    %62 = vector.multi_reduction <maximumf>, %61, %cst_23 [1] : vector<16x16xf32> to vector<16xf32>
    %63 = vector.shape_cast %62 : vector<16xf32> to vector<16x1xf32>
    %64 = vector.broadcast %63 : vector<16x1xf32> to vector<16x16xf32>
    %65 = arith.subf %61, %64 : vector<16x16xf32>
    %66 = math.exp %65 : vector<16x16xf32>
    %cst_24 = arith.constant dense<0.000000e+00> : vector<16xf32>
    %67 = vector.multi_reduction <add>, %66, %cst_24 [1] : vector<16x16xf32> to vector<16xf32>
    %68 = vector.shape_cast %67 : vector<16xf32> to vector<16x1xf32>
    %69 = tpu.reciprocal %68 {approx = true} : vector<16x1xf32> -> vector<16x1xf32>
    %70 = vector.broadcast %69 : vector<16x1xf32> to vector<16x16xf32>
    %71 = arith.mulf %66, %70 : vector<16x16xf32>
    %cst_25 = arith.constant dense<0.000000e+00> : vector<16x32xf32>
    %72 = tpu.matmul %71, %58, %cst_25 {dimension_numbers = #tpu.dot_dimension_numbers<[1], [0], [0], [1], [0, 0, 1, 1], [], []>} : vector<16x16xf32>, vector<16x32xf32>, vector<16x32xf32> -> vector<16x32xf32>
    %73 = vector.extract_strided_slice %36 {offsets = [0, 64], sizes = [16, 32], strides = [1, 1]} : vector<16x128xf32> to vector<16x32xf32>
    %74 = vector.extract_strided_slice %37 {offsets = [0, 64], sizes = [16, 32], strides = [1, 1]} : vector<16x128xf32> to vector<16x32xf32>
    %75 = vector.extract_strided_slice %38 {offsets = [0, 64], sizes = [16, 32], strides = [1, 1]} : vector<16x128xf32> to vector<16x32xf32>
    %cst_26 = arith.constant dense<0.000000e+00> : vector<16x16xf32>
    %76 = tpu.matmul %73, %74, %cst_26 {dimension_numbers = #tpu.dot_dimension_numbers<[1], [1], [0], [0], [0, 0, 1, 0], [], []>} : vector<16x32xf32>, vector<16x32xf32>, vector<16x16xf32> -> vector<16x16xf32>
    %cst_27 = arith.constant -1.000000e+30 : f32
    %77 = vector.broadcast %cst_27 : f32 to vector<16x16xf32>
    %78 = arith.select %3, %76, %77 : vector<16x16xi1>, vector<16x16xf32>
    %cst_28 = arith.constant dense<0xFF800000> : vector<16xf32>
    %79 = vector.multi_reduction <maximumf>, %78, %cst_28 [1] : vector<16x16xf32> to vector<16xf32>
    %80 = vector.shape_cast %79 : vector<16xf32> to vector<16x1xf32>
    %81 = vector.broadcast %80 : vector<16x1xf32> to vector<16x16xf32>
    %82 = arith.subf %78, %81 : vector<16x16xf32>
    %83 = math.exp %82 : vector<16x16xf32>
    %cst_29 = arith.constant dense<0.000000e+00> : vector<16xf32>
    %84 = vector.multi_reduction <add>, %83, %cst_29 [1] : vector<16x16xf32> to vector<16xf32>
    %85 = vector.shape_cast %84 : vector<16xf32> to vector<16x1xf32>
    %86 = tpu.reciprocal %85 {approx = true} : vector<16x1xf32> -> vector<16x1xf32>
    %87 = vector.broadcast %86 : vector<16x1xf32> to vector<16x16xf32>
    %88 = arith.mulf %83, %87 : vector<16x16xf32>
    %cst_30 = arith.constant dense<0.000000e+00> : vector<16x32xf32>
    %89 = tpu.matmul %88, %75, %cst_30 {dimension_numbers = #tpu.dot_dimension_numbers<[1], [0], [0], [1], [0, 0, 1, 1], [], []>} : vector<16x16xf32>, vector<16x32xf32>, vector<16x32xf32> -> vector<16x32xf32>
    %90 = vector.extract_strided_slice %36 {offsets = [0, 96], sizes = [16, 32], strides = [1, 1]} : vector<16x128xf32> to vector<16x32xf32>
    %91 = vector.extract_strided_slice %37 {offsets = [0, 96], sizes = [16, 32], strides = [1, 1]} : vector<16x128xf32> to vector<16x32xf32>
    %92 = vector.extract_strided_slice %38 {offsets = [0, 96], sizes = [16, 32], strides = [1, 1]} : vector<16x128xf32> to vector<16x32xf32>
    %cst_31 = arith.constant dense<0.000000e+00> : vector<16x16xf32>
    %93 = tpu.matmul %90, %91, %cst_31 {dimension_numbers = #tpu.dot_dimension_numbers<[1], [1], [0], [0], [0, 0, 1, 0], [], []>} : vector<16x32xf32>, vector<16x32xf32>, vector<16x16xf32> -> vector<16x16xf32>
    %cst_32 = arith.constant -1.000000e+30 : f32
    %94 = vector.broadcast %cst_32 : f32 to vector<16x16xf32>
    %95 = arith.select %3, %93, %94 : vector<16x16xi1>, vector<16x16xf32>
    %cst_33 = arith.constant dense<0xFF800000> : vector<16xf32>
    %96 = vector.multi_reduction <maximumf>, %95, %cst_33 [1] : vector<16x16xf32> to vector<16xf32>
    %97 = vector.shape_cast %96 : vector<16xf32> to vector<16x1xf32>
    %98 = vector.broadcast %97 : vector<16x1xf32> to vector<16x16xf32>
    %99 = arith.subf %95, %98 : vector<16x16xf32>
    %100 = math.exp %99 : vector<16x16xf32>
    %cst_34 = arith.constant dense<0.000000e+00> : vector<16xf32>
    %101 = vector.multi_reduction <add>, %100, %cst_34 [1] : vector<16x16xf32> to vector<16xf32>
    %102 = vector.shape_cast %101 : vector<16xf32> to vector<16x1xf32>
    %103 = tpu.reciprocal %102 {approx = true} : vector<16x1xf32> -> vector<16x1xf32>
    %104 = vector.broadcast %103 : vector<16x1xf32> to vector<16x16xf32>
    %105 = arith.mulf %100, %104 : vector<16x16xf32>
    %cst_35 = arith.constant dense<0.000000e+00> : vector<16x32xf32>
    %106 = tpu.matmul %105, %92, %cst_35 {dimension_numbers = #tpu.dot_dimension_numbers<[1], [0], [0], [1], [0, 0, 1, 1], [], []>} : vector<16x16xf32>, vector<16x32xf32>, vector<16x32xf32> -> vector<16x32xf32>
    %107 = tpu.concatenate %55, %72, %89, %106 in 1 : vector<16x32xf32>, vector<16x32xf32>, vector<16x32xf32>, vector<16x32xf32> -> vector<16x128xf32>
    %c0_36 = arith.constant 0 : index
    %c0_37 = arith.constant 0 : index
    %c0_38 = arith.constant 0 : index
    %108 = vector.load %arg5[%c0_36, %c0_37, %c0_38] : memref<2x128x128xf32, #tpu.memory_space<vmem>>, vector<1x128x128xf32>
    %109 = vector.shape_cast %108 : vector<1x128x128xf32> to vector<128x128xf32>
    %cst_39 = arith.constant dense<0.000000e+00> : vector<16x128xf32>
    %110 = tpu.matmul %107, %109, %cst_39 {dimension_numbers = #tpu.dot_dimension_numbers<[1], [0], [0], [1], [0, 0, 1, 1], [], []>} : vector<16x128xf32>, vector<128x128xf32>, vector<16x128xf32> -> vector<16x128xf32>
    %c0_40 = arith.constant 0 : index
    %c0_41 = arith.constant 0 : index
    %111 = vector.load %arg6[%c0_40, %c0_41] : memref<2x128xf32, #tpu.memory_space<vmem>>, vector<1x128xf32>
    %112 = vector.broadcast %111 : vector<1x128xf32> to vector<16x128xf32>
    %113 = arith.addf %110, %112 : vector<16x128xf32>
    %114 = arith.addf %0, %113 : vector<16x128xf32>
    %c0_42 = arith.constant 0 : index
    %c0_43 = arith.constant 0 : index
    %115 = vector.load %arg7[%c0_42, %c0_43] : memref<2x128xf32, #tpu.memory_space<vmem>>, vector<1x128xf32>
    %c0_44 = arith.constant 0 : index
    %c0_45 = arith.constant 0 : index
    %116 = vector.load %arg8[%c0_44, %c0_45] : memref<2x128xf32, #tpu.memory_space<vmem>>, vector<1x128xf32>
    %cst_46 = arith.constant dense<0.000000e+00> : vector<16xf32>
    %117 = vector.multi_reduction <add>, %114, %cst_46 [1] : vector<16x128xf32> to vector<16xf32>
    %118 = vector.shape_cast %117 : vector<16xf32> to vector<16x1xf32>
    %cst_47 = arith.constant 1.280000e+02 : f32
    %119 = vector.broadcast %cst_47 : f32 to vector<16x1xf32>
    %120 = arith.divf %118, %119 : vector<16x1xf32>
    %121 = vector.broadcast %120 : vector<16x1xf32> to vector<16x128xf32>
    %122 = arith.subf %114, %121 : vector<16x128xf32>
    %123 = arith.mulf %122, %122 : vector<16x128xf32>
    %cst_48 = arith.constant dense<0.000000e+00> : vector<16xf32>
    %124 = vector.multi_reduction <add>, %123, %cst_48 [1] : vector<16x128xf32> to vector<16xf32>
    %125 = vector.shape_cast %124 : vector<16xf32> to vector<16x1xf32>
    %cst_49 = arith.constant 1.280000e+02 : f32
    %126 = vector.broadcast %cst_49 : f32 to vector<16x1xf32>
    %127 = arith.divf %125, %126 : vector<16x1xf32>
    %128 = vector.broadcast %120 : vector<16x1xf32> to vector<16x128xf32>
    %129 = arith.subf %114, %128 : vector<16x128xf32>
    %cst_50 = arith.constant 9.99999974E-6 : f32
    %130 = vector.broadcast %cst_50 : f32 to vector<16x1xf32>
    %131 = arith.addf %127, %130 : vector<16x1xf32>
    %132 = math.rsqrt %131 : vector<16x1xf32>
    %133 = vector.broadcast %132 : vector<16x1xf32> to vector<16x128xf32>
    %134 = arith.mulf %129, %133 : vector<16x128xf32>
    %135 = vector.broadcast %115 : vector<1x128xf32> to vector<16x128xf32>
    %136 = arith.mulf %134, %135 : vector<16x128xf32>
    %137 = vector.broadcast %116 : vector<1x128xf32> to vector<16x128xf32>
    %138 = arith.addf %136, %137 : vector<16x128xf32>
    %c0_51 = arith.constant 0 : index
    %c0_52 = arith.constant 0 : index
    %c0_53 = arith.constant 0 : index
    %139 = vector.load %arg9[%c0_51, %c0_52, %c0_53] : memref<2x128x256xf32, #tpu.memory_space<vmem>>, vector<1x128x256xf32>
    %140 = vector.shape_cast %139 : vector<1x128x256xf32> to vector<128x256xf32>
    %cst_54 = arith.constant dense<0.000000e+00> : vector<16x256xf32>
    %141 = tpu.matmul %138, %140, %cst_54 {dimension_numbers = #tpu.dot_dimension_numbers<[1], [0], [0], [1], [0, 0, 1, 1], [], []>} : vector<16x128xf32>, vector<128x256xf32>, vector<16x256xf32> -> vector<16x256xf32>
    %c0_55 = arith.constant 0 : index
    %c0_56 = arith.constant 0 : index
    %142 = vector.load %arg10[%c0_55, %c0_56] : memref<2x256xf32, #tpu.memory_space<vmem>>, vector<1x256xf32>
    %143 = vector.broadcast %142 : vector<1x256xf32> to vector<16x256xf32>
    %144 = arith.addf %141, %143 : vector<16x256xf32>
    %cst_57 = arith.constant 0.000000e+00 : f32
    %145 = vector.broadcast %cst_57 : f32 to vector<16x256xf32>
    %146 = arith.maximumf %144, %145 : vector<16x256xf32>
    %c0_58 = arith.constant 0 : index
    %c0_59 = arith.constant 0 : index
    %c0_60 = arith.constant 0 : index
    %147 = vector.load %arg11[%c0_58, %c0_59, %c0_60] : memref<2x256x128xf32, #tpu.memory_space<vmem>>, vector<1x256x128xf32>
    %148 = vector.shape_cast %147 : vector<1x256x128xf32> to vector<256x128xf32>
    %cst_61 = arith.constant dense<0.000000e+00> : vector<16x128xf32>
    %149 = tpu.matmul %146, %148, %cst_61 {dimension_numbers = #tpu.dot_dimension_numbers<[1], [0], [0], [1], [0, 0, 1, 1], [], []>} : vector<16x256xf32>, vector<256x128xf32>, vector<16x128xf32> -> vector<16x128xf32>
    %c0_62 = arith.constant 0 : index
    %c0_63 = arith.constant 0 : index
    %150 = vector.load %arg12[%c0_62, %c0_63] : memref<2x128xf32, #tpu.memory_space<vmem>>, vector<1x128xf32>
    %151 = vector.broadcast %150 : vector<1x128xf32> to vector<16x128xf32>
    %152 = arith.addf %149, %151 : vector<16x128xf32>
    %153 = arith.addf %114, %152 : vector<16x128xf32>
    %c1 = arith.constant 1 : index
    %c0_64 = arith.constant 0 : index
    %154 = vector.load %arg1[%c1, %c0_64] : memref<2x128xf32, #tpu.memory_space<vmem>>, vector<1x128xf32>
    %c1_65 = arith.constant 1 : index
    %c0_66 = arith.constant 0 : index
    %155 = vector.load %arg2[%c1_65, %c0_66] : memref<2x128xf32, #tpu.memory_space<vmem>>, vector<1x128xf32>
    %cst_67 = arith.constant dense<0.000000e+00> : vector<16xf32>
    %156 = vector.multi_reduction <add>, %153, %cst_67 [1] : vector<16x128xf32> to vector<16xf32>
    %157 = vector.shape_cast %156 : vector<16xf32> to vector<16x1xf32>
    %cst_68 = arith.constant 1.280000e+02 : f32
    %158 = vector.broadcast %cst_68 : f32 to vector<16x1xf32>
    %159 = arith.divf %157, %158 : vector<16x1xf32>
    %160 = vector.broadcast %159 : vector<16x1xf32> to vector<16x128xf32>
    %161 = arith.subf %153, %160 : vector<16x128xf32>
    %162 = arith.mulf %161, %161 : vector<16x128xf32>
    %cst_69 = arith.constant dense<0.000000e+00> : vector<16xf32>
    %163 = vector.multi_reduction <add>, %162, %cst_69 [1] : vector<16x128xf32> to vector<16xf32>
    %164 = vector.shape_cast %163 : vector<16xf32> to vector<16x1xf32>
    %cst_70 = arith.constant 1.280000e+02 : f32
    %165 = vector.broadcast %cst_70 : f32 to vector<16x1xf32>
    %166 = arith.divf %164, %165 : vector<16x1xf32>
    %167 = vector.broadcast %159 : vector<16x1xf32> to vector<16x128xf32>
    %168 = arith.subf %153, %167 : vector<16x128xf32>
    %cst_71 = arith.constant 9.99999974E-6 : f32
    %169 = vector.broadcast %cst_71 : f32 to vector<16x1xf32>
    %170 = arith.addf %166, %169 : vector<16x1xf32>
    %171 = math.rsqrt %170 : vector<16x1xf32>
    %172 = vector.broadcast %171 : vector<16x1xf32> to vector<16x128xf32>
    %173 = arith.mulf %168, %172 : vector<16x128xf32>
    %174 = vector.broadcast %154 : vector<1x128xf32> to vector<16x128xf32>
    %175 = arith.mulf %173, %174 : vector<16x128xf32>
    %176 = vector.broadcast %155 : vector<1x128xf32> to vector<16x128xf32>
    %177 = arith.addf %175, %176 : vector<16x128xf32>
    %c1_72 = arith.constant 1 : index
    %c0_73 = arith.constant 0 : index
    %c0_74 = arith.constant 0 : index
    %178 = vector.load %arg3[%c1_72, %c0_73, %c0_74] : memref<2x128x384xf32, #tpu.memory_space<vmem>>, vector<1x128x384xf32>
    %179 = vector.shape_cast %178 : vector<1x128x384xf32> to vector<128x384xf32>
    %cst_75 = arith.constant dense<0.000000e+00> : vector<16x384xf32>
    %180 = tpu.matmul %177, %179, %cst_75 {dimension_numbers = #tpu.dot_dimension_numbers<[1], [0], [0], [1], [0, 0, 1, 1], [], []>} : vector<16x128xf32>, vector<128x384xf32>, vector<16x384xf32> -> vector<16x384xf32>
    %c1_76 = arith.constant 1 : index
    %c0_77 = arith.constant 0 : index
    %181 = vector.load %arg4[%c1_76, %c0_77] : memref<2x384xf32, #tpu.memory_space<vmem>>, vector<1x384xf32>
    %182 = vector.broadcast %181 : vector<1x384xf32> to vector<16x384xf32>
    %183 = arith.addf %180, %182 : vector<16x384xf32>
    %184 = vector.extract_strided_slice %183 {offsets = [0, 0], sizes = [16, 128], strides = [1, 1]} : vector<16x384xf32> to vector<16x128xf32>
    %cst_78 = arith.constant 0.176776692 : f32
    %185 = vector.broadcast %cst_78 : f32 to vector<16x128xf32>
    %186 = arith.mulf %184, %185 : vector<16x128xf32>
    %187 = vector.extract_strided_slice %183 {offsets = [0, 128], sizes = [16, 128], strides = [1, 1]} : vector<16x384xf32> to vector<16x128xf32>
    %188 = vector.extract_strided_slice %183 {offsets = [0, 256], sizes = [16, 128], strides = [1, 1]} : vector<16x384xf32> to vector<16x128xf32>
    %189 = vector.extract_strided_slice %186 {offsets = [0, 0], sizes = [16, 32], strides = [1, 1]} : vector<16x128xf32> to vector<16x32xf32>
    %190 = vector.extract_strided_slice %187 {offsets = [0, 0], sizes = [16, 32], strides = [1, 1]} : vector<16x128xf32> to vector<16x32xf32>
    %191 = vector.extract_strided_slice %188 {offsets = [0, 0], sizes = [16, 32], strides = [1, 1]} : vector<16x128xf32> to vector<16x32xf32>
    %cst_79 = arith.constant dense<0.000000e+00> : vector<16x16xf32>
    %192 = tpu.matmul %189, %190, %cst_79 {dimension_numbers = #tpu.dot_dimension_numbers<[1], [1], [0], [0], [0, 0, 1, 0], [], []>} : vector<16x32xf32>, vector<16x32xf32>, vector<16x16xf32> -> vector<16x16xf32>
    %cst_80 = arith.constant -1.000000e+30 : f32
    %193 = vector.broadcast %cst_80 : f32 to vector<16x16xf32>
    %194 = arith.select %3, %192, %193 : vector<16x16xi1>, vector<16x16xf32>
    %cst_81 = arith.constant dense<0xFF800000> : vector<16xf32>
    %195 = vector.multi_reduction <maximumf>, %194, %cst_81 [1] : vector<16x16xf32> to vector<16xf32>
    %196 = vector.shape_cast %195 : vector<16xf32> to vector<16x1xf32>
    %197 = vector.broadcast %196 : vector<16x1xf32> to vector<16x16xf32>
    %198 = arith.subf %194, %197 : vector<16x16xf32>
    %199 = math.exp %198 : vector<16x16xf32>
    %cst_82 = arith.constant dense<0.000000e+00> : vector<16xf32>
    %200 = vector.multi_reduction <add>, %199, %cst_82 [1] : vector<16x16xf32> to vector<16xf32>
    %201 = vector.shape_cast %200 : vector<16xf32> to vector<16x1xf32>
    %202 = tpu.reciprocal %201 {approx = true} : vector<16x1xf32> -> vector<16x1xf32>
    %203 = vector.broadcast %202 : vector<16x1xf32> to vector<16x16xf32>
    %204 = arith.mulf %199, %203 : vector<16x16xf32>
    %cst_83 = arith.constant dense<0.000000e+00> : vector<16x32xf32>
    %205 = tpu.matmul %204, %191, %cst_83 {dimension_numbers = #tpu.dot_dimension_numbers<[1], [0], [0], [1], [0, 0, 1, 1], [], []>} : vector<16x16xf32>, vector<16x32xf32>, vector<16x32xf32> -> vector<16x32xf32>
    %206 = vector.extract_strided_slice %186 {offsets = [0, 32], sizes = [16, 32], strides = [1, 1]} : vector<16x128xf32> to vector<16x32xf32>
    %207 = vector.extract_strided_slice %187 {offsets = [0, 32], sizes = [16, 32], strides = [1, 1]} : vector<16x128xf32> to vector<16x32xf32>
    %208 = vector.extract_strided_slice %188 {offsets = [0, 32], sizes = [16, 32], strides = [1, 1]} : vector<16x128xf32> to vector<16x32xf32>
    %cst_84 = arith.constant dense<0.000000e+00> : vector<16x16xf32>
    %209 = tpu.matmul %206, %207, %cst_84 {dimension_numbers = #tpu.dot_dimension_numbers<[1], [1], [0], [0], [0, 0, 1, 0], [], []>} : vector<16x32xf32>, vector<16x32xf32>, vector<16x16xf32> -> vector<16x16xf32>
    %cst_85 = arith.constant -1.000000e+30 : f32
    %210 = vector.broadcast %cst_85 : f32 to vector<16x16xf32>
    %211 = arith.select %3, %209, %210 : vector<16x16xi1>, vector<16x16xf32>
    %cst_86 = arith.constant dense<0xFF800000> : vector<16xf32>
    %212 = vector.multi_reduction <maximumf>, %211, %cst_86 [1] : vector<16x16xf32> to vector<16xf32>
    %213 = vector.shape_cast %212 : vector<16xf32> to vector<16x1xf32>
    %214 = vector.broadcast %213 : vector<16x1xf32> to vector<16x16xf32>
    %215 = arith.subf %211, %214 : vector<16x16xf32>
    %216 = math.exp %215 : vector<16x16xf32>
    %cst_87 = arith.constant dense<0.000000e+00> : vector<16xf32>
    %217 = vector.multi_reduction <add>, %216, %cst_87 [1] : vector<16x16xf32> to vector<16xf32>
    %218 = vector.shape_cast %217 : vector<16xf32> to vector<16x1xf32>
    %219 = tpu.reciprocal %218 {approx = true} : vector<16x1xf32> -> vector<16x1xf32>
    %220 = vector.broadcast %219 : vector<16x1xf32> to vector<16x16xf32>
    %221 = arith.mulf %216, %220 : vector<16x16xf32>
    %cst_88 = arith.constant dense<0.000000e+00> : vector<16x32xf32>
    %222 = tpu.matmul %221, %208, %cst_88 {dimension_numbers = #tpu.dot_dimension_numbers<[1], [0], [0], [1], [0, 0, 1, 1], [], []>} : vector<16x16xf32>, vector<16x32xf32>, vector<16x32xf32> -> vector<16x32xf32>
    %223 = vector.extract_strided_slice %186 {offsets = [0, 64], sizes = [16, 32], strides = [1, 1]} : vector<16x128xf32> to vector<16x32xf32>
    %224 = vector.extract_strided_slice %187 {offsets = [0, 64], sizes = [16, 32], strides = [1, 1]} : vector<16x128xf32> to vector<16x32xf32>
    %225 = vector.extract_strided_slice %188 {offsets = [0, 64], sizes = [16, 32], strides = [1, 1]} : vector<16x128xf32> to vector<16x32xf32>
    %cst_89 = arith.constant dense<0.000000e+00> : vector<16x16xf32>
    %226 = tpu.matmul %223, %224, %cst_89 {dimension_numbers = #tpu.dot_dimension_numbers<[1], [1], [0], [0], [0, 0, 1, 0], [], []>} : vector<16x32xf32>, vector<16x32xf32>, vector<16x16xf32> -> vector<16x16xf32>
    %cst_90 = arith.constant -1.000000e+30 : f32
    %227 = vector.broadcast %cst_90 : f32 to vector<16x16xf32>
    %228 = arith.select %3, %226, %227 : vector<16x16xi1>, vector<16x16xf32>
    %cst_91 = arith.constant dense<0xFF800000> : vector<16xf32>
    %229 = vector.multi_reduction <maximumf>, %228, %cst_91 [1] : vector<16x16xf32> to vector<16xf32>
    %230 = vector.shape_cast %229 : vector<16xf32> to vector<16x1xf32>
    %231 = vector.broadcast %230 : vector<16x1xf32> to vector<16x16xf32>
    %232 = arith.subf %228, %231 : vector<16x16xf32>
    %233 = math.exp %232 : vector<16x16xf32>
    %cst_92 = arith.constant dense<0.000000e+00> : vector<16xf32>
    %234 = vector.multi_reduction <add>, %233, %cst_92 [1] : vector<16x16xf32> to vector<16xf32>
    %235 = vector.shape_cast %234 : vector<16xf32> to vector<16x1xf32>
    %236 = tpu.reciprocal %235 {approx = true} : vector<16x1xf32> -> vector<16x1xf32>
    %237 = vector.broadcast %236 : vector<16x1xf32> to vector<16x16xf32>
    %238 = arith.mulf %233, %237 : vector<16x16xf32>
    %cst_93 = arith.constant dense<0.000000e+00> : vector<16x32xf32>
    %239 = tpu.matmul %238, %225, %cst_93 {dimension_numbers = #tpu.dot_dimension_numbers<[1], [0], [0], [1], [0, 0, 1, 1], [], []>} : vector<16x16xf32>, vector<16x32xf32>, vector<16x32xf32> -> vector<16x32xf32>
    %240 = vector.extract_strided_slice %186 {offsets = [0, 96], sizes = [16, 32], strides = [1, 1]} : vector<16x128xf32> to vector<16x32xf32>
    %241 = vector.extract_strided_slice %187 {offsets = [0, 96], sizes = [16, 32], strides = [1, 1]} : vector<16x128xf32> to vector<16x32xf32>
    %242 = vector.extract_strided_slice %188 {offsets = [0, 96], sizes = [16, 32], strides = [1, 1]} : vector<16x128xf32> to vector<16x32xf32>
    %cst_94 = arith.constant dense<0.000000e+00> : vector<16x16xf32>
    %243 = tpu.matmul %240, %241, %cst_94 {dimension_numbers = #tpu.dot_dimension_numbers<[1], [1], [0], [0], [0, 0, 1, 0], [], []>} : vector<16x32xf32>, vector<16x32xf32>, vector<16x16xf32> -> vector<16x16xf32>
    %cst_95 = arith.constant -1.000000e+30 : f32
    %244 = vector.broadcast %cst_95 : f32 to vector<16x16xf32>
    %245 = arith.select %3, %243, %244 : vector<16x16xi1>, vector<16x16xf32>
    %cst_96 = arith.constant dense<0xFF800000> : vector<16xf32>
    %246 = vector.multi_reduction <maximumf>, %245, %cst_96 [1] : vector<16x16xf32> to vector<16xf32>
    %247 = vector.shape_cast %246 : vector<16xf32> to vector<16x1xf32>
    %248 = vector.broadcast %247 : vector<16x1xf32> to vector<16x16xf32>
    %249 = arith.subf %245, %248 : vector<16x16xf32>
    %250 = math.exp %249 : vector<16x16xf32>
    %cst_97 = arith.constant dense<0.000000e+00> : vector<16xf32>
    %251 = vector.multi_reduction <add>, %250, %cst_97 [1] : vector<16x16xf32> to vector<16xf32>
    %252 = vector.shape_cast %251 : vector<16xf32> to vector<16x1xf32>
    %253 = tpu.reciprocal %252 {approx = true} : vector<16x1xf32> -> vector<16x1xf32>
    %254 = vector.broadcast %253 : vector<16x1xf32> to vector<16x16xf32>
    %255 = arith.mulf %250, %254 : vector<16x16xf32>
    %cst_98 = arith.constant dense<0.000000e+00> : vector<16x32xf32>
    %256 = tpu.matmul %255, %242, %cst_98 {dimension_numbers = #tpu.dot_dimension_numbers<[1], [0], [0], [1], [0, 0, 1, 1], [], []>} : vector<16x16xf32>, vector<16x32xf32>, vector<16x32xf32> -> vector<16x32xf32>
    %257 = tpu.concatenate %205, %222, %239, %256 in 1 : vector<16x32xf32>, vector<16x32xf32>, vector<16x32xf32>, vector<16x32xf32> -> vector<16x128xf32>
    %c1_99 = arith.constant 1 : index
    %c0_100 = arith.constant 0 : index
    %c0_101 = arith.constant 0 : index
    %258 = vector.load %arg5[%c1_99, %c0_100, %c0_101] : memref<2x128x128xf32, #tpu.memory_space<vmem>>, vector<1x128x128xf32>
    %259 = vector.shape_cast %258 : vector<1x128x128xf32> to vector<128x128xf32>
    %cst_102 = arith.constant dense<0.000000e+00> : vector<16x128xf32>
    %260 = tpu.matmul %257, %259, %cst_102 {dimension_numbers = #tpu.dot_dimension_numbers<[1], [0], [0], [1], [0, 0, 1, 1], [], []>} : vector<16x128xf32>, vector<128x128xf32>, vector<16x128xf32> -> vector<16x128xf32>
    %c1_103 = arith.constant 1 : index
    %c0_104 = arith.constant 0 : index
    %261 = vector.load %arg6[%c1_103, %c0_104] : memref<2x128xf32, #tpu.memory_space<vmem>>, vector<1x128xf32>
    %262 = vector.broadcast %261 : vector<1x128xf32> to vector<16x128xf32>
    %263 = arith.addf %260, %262 : vector<16x128xf32>
    %264 = arith.addf %153, %263 : vector<16x128xf32>
    %c1_105 = arith.constant 1 : index
    %c0_106 = arith.constant 0 : index
    %265 = vector.load %arg7[%c1_105, %c0_106] : memref<2x128xf32, #tpu.memory_space<vmem>>, vector<1x128xf32>
    %c1_107 = arith.constant 1 : index
    %c0_108 = arith.constant 0 : index
    %266 = vector.load %arg8[%c1_107, %c0_108] : memref<2x128xf32, #tpu.memory_space<vmem>>, vector<1x128xf32>
    %cst_109 = arith.constant dense<0.000000e+00> : vector<16xf32>
    %267 = vector.multi_reduction <add>, %264, %cst_109 [1] : vector<16x128xf32> to vector<16xf32>
    %268 = vector.shape_cast %267 : vector<16xf32> to vector<16x1xf32>
    %cst_110 = arith.constant 1.280000e+02 : f32
    %269 = vector.broadcast %cst_110 : f32 to vector<16x1xf32>
    %270 = arith.divf %268, %269 : vector<16x1xf32>
    %271 = vector.broadcast %270 : vector<16x1xf32> to vector<16x128xf32>
    %272 = arith.subf %264, %271 : vector<16x128xf32>
    %273 = arith.mulf %272, %272 : vector<16x128xf32>
    %cst_111 = arith.constant dense<0.000000e+00> : vector<16xf32>
    %274 = vector.multi_reduction <add>, %273, %cst_111 [1] : vector<16x128xf32> to vector<16xf32>
    %275 = vector.shape_cast %274 : vector<16xf32> to vector<16x1xf32>
    %cst_112 = arith.constant 1.280000e+02 : f32
    %276 = vector.broadcast %cst_112 : f32 to vector<16x1xf32>
    %277 = arith.divf %275, %276 : vector<16x1xf32>
    %278 = vector.broadcast %270 : vector<16x1xf32> to vector<16x128xf32>
    %279 = arith.subf %264, %278 : vector<16x128xf32>
    %cst_113 = arith.constant 9.99999974E-6 : f32
    %280 = vector.broadcast %cst_113 : f32 to vector<16x1xf32>
    %281 = arith.addf %277, %280 : vector<16x1xf32>
    %282 = math.rsqrt %281 : vector<16x1xf32>
    %283 = vector.broadcast %282 : vector<16x1xf32> to vector<16x128xf32>
    %284 = arith.mulf %279, %283 : vector<16x128xf32>
    %285 = vector.broadcast %265 : vector<1x128xf32> to vector<16x128xf32>
    %286 = arith.mulf %284, %285 : vector<16x128xf32>
    %287 = vector.broadcast %266 : vector<1x128xf32> to vector<16x128xf32>
    %288 = arith.addf %286, %287 : vector<16x128xf32>
    %c1_114 = arith.constant 1 : index
    %c0_115 = arith.constant 0 : index
    %c0_116 = arith.constant 0 : index
    %289 = vector.load %arg9[%c1_114, %c0_115, %c0_116] : memref<2x128x256xf32, #tpu.memory_space<vmem>>, vector<1x128x256xf32>
    %290 = vector.shape_cast %289 : vector<1x128x256xf32> to vector<128x256xf32>
    %cst_117 = arith.constant dense<0.000000e+00> : vector<16x256xf32>
    %291 = tpu.matmul %288, %290, %cst_117 {dimension_numbers = #tpu.dot_dimension_numbers<[1], [0], [0], [1], [0, 0, 1, 1], [], []>} : vector<16x128xf32>, vector<128x256xf32>, vector<16x256xf32> -> vector<16x256xf32>
    %c1_118 = arith.constant 1 : index
    %c0_119 = arith.constant 0 : index
    %292 = vector.load %arg10[%c1_118, %c0_119] : memref<2x256xf32, #tpu.memory_space<vmem>>, vector<1x256xf32>
    %293 = vector.broadcast %292 : vector<1x256xf32> to vector<16x256xf32>
    %294 = arith.addf %291, %293 : vector<16x256xf32>
    %cst_120 = arith.constant 0.000000e+00 : f32
    %295 = vector.broadcast %cst_120 : f32 to vector<16x256xf32>
    %296 = arith.maximumf %294, %295 : vector<16x256xf32>
    %c1_121 = arith.constant 1 : index
    %c0_122 = arith.constant 0 : index
    %c0_123 = arith.constant 0 : index
    %297 = vector.load %arg11[%c1_121, %c0_122, %c0_123] : memref<2x256x128xf32, #tpu.memory_space<vmem>>, vector<1x256x128xf32>
    %298 = vector.shape_cast %297 : vector<1x256x128xf32> to vector<256x128xf32>
    %cst_124 = arith.constant dense<0.000000e+00> : vector<16x128xf32>
    %299 = tpu.matmul %296, %298, %cst_124 {dimension_numbers = #tpu.dot_dimension_numbers<[1], [0], [0], [1], [0, 0, 1, 1], [], []>} : vector<16x256xf32>, vector<256x128xf32>, vector<16x128xf32> -> vector<16x128xf32>
    %c1_125 = arith.constant 1 : index
    %c0_126 = arith.constant 0 : index
    %300 = vector.load %arg12[%c1_125, %c0_126] : memref<2x128xf32, #tpu.memory_space<vmem>>, vector<1x128xf32>
    %301 = vector.broadcast %300 : vector<1x128xf32> to vector<16x128xf32>
    %302 = arith.addf %299, %301 : vector<16x128xf32>
    %303 = arith.addf %264, %302 : vector<16x128xf32>
    %c0_127 = arith.constant 0 : index
    %c0_128 = arith.constant 0 : index
    %304 = vector.load %arg13[%c0_127, %c0_128] : memref<1x128xf32, #tpu.memory_space<vmem>>, vector<1x128xf32>
    %c0_129 = arith.constant 0 : index
    %c0_130 = arith.constant 0 : index
    %305 = vector.load %arg14[%c0_129, %c0_130] : memref<1x128xf32, #tpu.memory_space<vmem>>, vector<1x128xf32>
    %cst_131 = arith.constant dense<0.000000e+00> : vector<16xf32>
    %306 = vector.multi_reduction <add>, %303, %cst_131 [1] : vector<16x128xf32> to vector<16xf32>
    %307 = vector.shape_cast %306 : vector<16xf32> to vector<16x1xf32>
    %cst_132 = arith.constant 1.280000e+02 : f32
    %308 = vector.broadcast %cst_132 : f32 to vector<16x1xf32>
    %309 = arith.divf %307, %308 : vector<16x1xf32>
    %310 = vector.broadcast %309 : vector<16x1xf32> to vector<16x128xf32>
    %311 = arith.subf %303, %310 : vector<16x128xf32>
    %312 = arith.mulf %311, %311 : vector<16x128xf32>
    %cst_133 = arith.constant dense<0.000000e+00> : vector<16xf32>
    %313 = vector.multi_reduction <add>, %312, %cst_133 [1] : vector<16x128xf32> to vector<16xf32>
    %314 = vector.shape_cast %313 : vector<16xf32> to vector<16x1xf32>
    %cst_134 = arith.constant 1.280000e+02 : f32
    %315 = vector.broadcast %cst_134 : f32 to vector<16x1xf32>
    %316 = arith.divf %314, %315 : vector<16x1xf32>
    %317 = vector.broadcast %309 : vector<16x1xf32> to vector<16x128xf32>
    %318 = arith.subf %303, %317 : vector<16x128xf32>
    %cst_135 = arith.constant 9.99999974E-6 : f32
    %319 = vector.broadcast %cst_135 : f32 to vector<16x1xf32>
    %320 = arith.addf %316, %319 : vector<16x1xf32>
    %321 = math.rsqrt %320 : vector<16x1xf32>
    %322 = vector.broadcast %321 : vector<16x1xf32> to vector<16x128xf32>
    %323 = arith.mulf %318, %322 : vector<16x128xf32>
    %324 = vector.broadcast %304 : vector<1x128xf32> to vector<16x128xf32>
    %325 = arith.mulf %323, %324 : vector<16x128xf32>
    %326 = vector.broadcast %305 : vector<1x128xf32> to vector<16x128xf32>
    %327 = arith.addf %325, %326 : vector<16x128xf32>
    %c0_136 = arith.constant 0 : index
    %c0_137 = arith.constant 0 : index
    %328 = vector.load %arg15[%c0_136, %c0_137] : memref<16x128xf32, #tpu.memory_space<vmem>>, vector<16x128xf32>
    tpu.vector_store %arg15[%c0_136, %c0_137], %327 {strides = array<i32>} : memref<16x128xf32, #tpu.memory_space<vmem>>, vector<16x128xf32>,
    return
  }
}

</mosaic_0001>

<llo_original>
// kernel: opt_decoder_forward.1
$region0: #{opt_decoder_forward.1}
  #allocation0 [shape = 'u32[]', space=smem, size = 0x4, offset = 0x4, fixed_abs, tag = 'smem constant byte address 0x4 - core index']
  #allocation1 [shape = 'u32[144,128]{1,0:T(1,128)}', space=vmem, size = 0x12000, scoped, tag = 'internal scratch']
  %s0 = inlined_call_operand.vmem [shape: f32[16,128], index: 0, kind: input, shape index: {}]
  %s1 = inlined_call_operand.vmem [shape: f32[2,128], index: 1, kind: input, shape index: {}]
  %s2 = inlined_call_operand.vmem [shape: f32[2,128], index: 2, kind: input, shape index: {}]
  %s3 = inlined_call_operand.hbm [shape: f32[2,128,384], index: 3, kind: input, shape index: {}]
  %s4 = inlined_call_operand.vmem [shape: f32[2,384], index: 4, kind: input, shape index: {}]
  %s5 = inlined_call_operand.vmem [shape: f32[2,128,128], index: 5, kind: input, shape index: {}]
  %s6 = inlined_call_operand.vmem [shape: f32[2,128], index: 6, kind: input, shape index: {}]
  %s7 = inlined_call_operand.vmem [shape: f32[2,128], index: 7, kind: input, shape index: {}]
  %s8 = inlined_call_operand.vmem [shape: f32[2,128], index: 8, kind: input, shape index: {}]
  %s9 = inlined_call_operand.hbm [shape: f32[2,128,256], index: 9, kind: input, shape index: {}]
  %s10 = inlined_call_operand.vmem [shape: f32[2,256], index: 10, kind: input, shape index: {}]
  %s11 = inlined_call_operand.hbm [shape: f32[2,256,128], index: 11, kind: input, shape index: {}]
  %s12 = inlined_call_operand.vmem [shape: f32[2,128], index: 12, kind: input, shape index: {}]
  %s13 = inlined_call_operand.vmem [shape: f32[1,128], index: 13, kind: input, shape index: {}]
  %s14 = inlined_call_operand.vmem [shape: f32[1,128], index: 14, kind: input, shape index: {}]
  %s15 = inlined_call_operand.hbm [shape: f32[16,128], index: 15, kind: output, shape index: {}]
  %s16 = sld [smem:[#allocation0]]
  $region82: #{opt_decoder_forward.1} parent=0
    _
  %s18 = ssub.s32 1, %s16
  %s19 = scalar_select 0, %s18, %s16
  $region1: #{opt_decoder_forward.1} parent=0
    #allocation2 [shape = 'u8[393216]{0}', space=vmem, size = 0x60000, scoped, tag = 'input window, operand 3, single buffered']
    #allocation3 [shape = 's32[1]{0}', space=sflag, size = 0x4, scoped, tag = 'scoped memory for opt_decoder_forward.1']
    #allocation4 [shape = 's32[1]{0}', space=sflag, size = 0x4, scoped, tag = 'scoped memory for opt_decoder_forward.1']
    #allocation5 [shape = 'u8[262144]{0}', space=vmem, size = 0x40000, scoped, tag = 'input window, operand 9, single buffered']
    #allocation6 [shape = 's32[1]{0}', space=sflag, size = 0x4, scoped, tag = 'scoped memory for opt_decoder_forward.1']
    #allocation7 [shape = 'u8[262144]{0}', space=vmem, size = 0x40000, scoped, tag = 'input window, operand 11, single buffered']
    #allocation8 [shape = 'u8[8192]{0}', space=vmem, size = 0x2000, scoped, tag = 'output window, operand 0, single buffered']
    %20 = vsyncpa [#allocation3], 0
    %21 = vsyncpa [#allocation6], 0
    %22 = vsyncpa [#allocation4], 0
    // Predicated region
    $region2: #{opt_decoder_forward.1} parent=1 // pred_check
      _
    $region3: #{opt_decoder_forward.1} parent=1 // pred_check_branch
      %24 = sbr.rel (0) target = $region5
    $region4: #{opt_decoder_forward.1} parent=1 // pred_region
      _
    $region5: #{opt_decoder_forward.1} parent=1 // pred_fallthru
      _
    // Predicated region
    $region6: #{opt_decoder_forward.1} parent=1 // pred_check
      _
    $region7: #{opt_decoder_forward.1} parent=1 // pred_check_branch
      %26 = sbr.rel (0) target = $region9
    $region8: #{opt_decoder_forward.1} parent=1 // pred_region
      _
    $region9: #{opt_decoder_forward.1} parent=1 // pred_fallthru
      _
    // Predicated region
    $region10: #{opt_decoder_forward.1} parent=1 // pred_check
      _
    $region11: #{opt_decoder_forward.1} parent=1 // pred_check_branch
      %28 = sbr.rel (0) target = $region13
    $region12: #{opt_decoder_forward.1} parent=1 // pred_region
      _
    $region13: #{opt_decoder_forward.1} parent=1 // pred_fallthru
      _
    // Predicated region
    $region14: #{opt_decoder_forward.1} parent=1 // pred_check
      _
    $region15: #{opt_decoder_forward.1} parent=1 // pred_check_branch
      %30 = sbr.rel (0) target = $region17
    $region16: #{opt_decoder_forward.1} parent=1 // pred_region
      %s32 = ssub.s32 12288, 12288
      %33 = vsyncadd [#allocation3], %s32
      %s34 = sshll.u32 [#allocation2], 4
      %s35 = int_to_ptr.vmem [resolvable:$true] %s34
      %40 = dma.hbm_to_vmem [thread:$0]  %s3, 12288, %s35, [#allocation3], 384, 384, 24
    $region17: #{opt_decoder_forward.1} parent=1 // pred_fallthru
      _
    // Predicated region
    $region18: #{opt_decoder_forward.1} parent=1 // pred_check
      _
    $region19: #{opt_decoder_forward.1} parent=1 // pred_check_branch
      %42 = sbr.rel (0) target = $region21
    $region20: #{opt_decoder_forward.1} parent=1 // pred_region
      _
    $region21: #{opt_decoder_forward.1} parent=1 // pred_fallthru
      _
    // Predicated region
    $region22: #{opt_decoder_forward.1} parent=1 // pred_check
      _
    $region23: #{opt_decoder_forward.1} parent=1 // pred_check_branch
      %44 = sbr.rel (0) target = $region25
    $region24: #{opt_decoder_forward.1} parent=1 // pred_region
      _
    $region25: #{opt_decoder_forward.1} parent=1 // pred_fallthru
      _
    // Predicated region
    $region26: #{opt_decoder_forward.1} parent=1 // pred_check
      _
    $region27: #{opt_decoder_forward.1} parent=1 // pred_check_branch
      %46 = sbr.rel (0) target = $region29
    $region28: #{opt_decoder_forward.1} parent=1 // pred_region
      _
    $region29: #{opt_decoder_forward.1} parent=1 // pred_fallthru
      _
    // Predicated region
    $region30: #{opt_decoder_forward.1} parent=1 // pred_check
      _
    $region31: #{opt_decoder_forward.1} parent=1 // pred_check_branch
      %48 = sbr.rel (0) target = $region33
    $region32: #{opt_decoder_forward.1} parent=1 // pred_region
      _
    $region33: #{opt_decoder_forward.1} parent=1 // pred_fallthru
      _
    // Predicated region
    $region34: #{opt_decoder_forward.1} parent=1 // pred_check
      _
    $region35: #{opt_decoder_forward.1} parent=1 // pred_check_branch
      %50 = sbr.rel (0) target = $region37
    $region36: #{opt_decoder_forward.1} parent=1 // pred_region
      _
    $region37: #{opt_decoder_forward.1} parent=1 // pred_fallthru
      _
    // Predicated region
    $region38: #{opt_decoder_forward.1} parent=1 // pred_check
      _
    $region39: #{opt_decoder_forward.1} parent=1 // pred_check_branch
      %52 = sbr.rel (0) target = $region41
    $region40: #{opt_decoder_forward.1} parent=1 // pred_region
      %s54 = ssub.s32 8192, 8192
      %55 = vsyncadd [#allocation6], %s54
      %s56 = sshll.u32 [#allocation5], 4
      %s57 = int_to_ptr.vmem [resolvable:$true] %s56
      %62 = dma.hbm_to_vmem [thread:$0]  %s9, 8192, %s57, [#allocation6], 256, 256, 16
    $region41: #{opt_decoder_forward.1} parent=1 // pred_fallthru
      _
    // Predicated region
    $region42: #{opt_decoder_forward.1} parent=1 // pred_check
      _
    $region43: #{opt_decoder_forward.1} parent=1 // pred_check_branch
      %64 = sbr.rel (0) target = $region45
    $region44: #{opt_decoder_forward.1} parent=1 // pred_region
      _
    $region45: #{opt_decoder_forward.1} parent=1 // pred_fallthru
      _
    // Predicated region
    $region46: #{opt_decoder_forward.1} parent=1 // pred_check
      _
    $region47: #{opt_decoder_forward.1} parent=1 // pred_check_branch
      %66 = sbr.rel (0) target = $region49
    $region48: #{opt_decoder_forward.1} parent=1 // pred_region
      %s68 = ssub.s32 8192, 8192
      %69 = vsyncadd [#allocation6], %s68
      %s70 = sshll.u32 [#allocation7], 4
      %s71 = int_to_ptr.vmem [resolvable:$true] %s70
      %76 = dma.hbm_to_vmem [thread:$0]  %s11, 8192, %s71, [#allocation6], 128, 128, 8
    $region49: #{opt_decoder_forward.1} parent=1 // pred_fallthru
      _
    // Predicated region
    $region50: #{opt_decoder_forward.1} parent=1 // pred_check
      _
    $region51: #{opt_decoder_forward.1} parent=1 // pred_check_branch
      %78 = sbr.rel (0) target = $region53
    $region52: #{opt_decoder_forward.1} parent=1 // pred_region
      _
    $region53: #{opt_decoder_forward.1} parent=1 // pred_fallthru
      _
    // Predicated region
    $region54: #{opt_decoder_forward.1} parent=1 // pred_check
      _
    $region55: #{opt_decoder_forward.1} parent=1 // pred_check_branch
      %80 = sbr.rel (0) target = $region57
    $region56: #{opt_decoder_forward.1} parent=1 // pred_region
      _
    $region57: #{opt_decoder_forward.1} parent=1 // pred_fallthru
      _
    // Predicated region
    $region58: #{opt_decoder_forward.1} parent=1 // pred_check
      _
    $region59: #{opt_decoder_forward.1} parent=1 // pred_check_branch
      %82 = sbr.rel (0) target = $region61
    $region60: #{opt_decoder_forward.1} parent=1 // pred_region
      _
    $region61: #{opt_decoder_forward.1} parent=1 // pred_fallthru
      _
    // Predicated region
    $region62: #{opt_decoder_forward.1} parent=1 // pred_check
      _
    $region63: #{opt_decoder_forward.1} parent=1 // pred_check_branch
      %84 = sbr.rel (0) target = $region65
    $region64: #{opt_decoder_forward.1} parent=1 // pred_region
      %85 = dma.done [#allocation3], 12288
    $region65: #{opt_decoder_forward.1} parent=1 // pred_fallthru
      _
    // Predicated region
    $region66: #{opt_decoder_forward.1} parent=1 // pred_check
      _
    $region67: #{opt_decoder_forward.1} parent=1 // pred_check_branch
      %87 = sbr.rel (0) target = $region69
    $region68: #{opt_decoder_forward.1} parent=1 // pred_region
      %88 = dma.done [#allocation6], 8192
    $region69: #{opt_decoder_forward.1} parent=1 // pred_fallthru
      _
    // Predicated region
    $region70: #{opt_decoder_forward.1} parent=1 // pred_check
      _
    $region71: #{opt_decoder_forward.1} parent=1 // pred_check_branch
      %90 = sbr.rel (0) target = $region73
    $region72: #{opt_decoder_forward.1} parent=1 // pred_region
      %91 = dma.done [#allocation6], 8192
    $region73: #{opt_decoder_forward.1} parent=1 // pred_fallthru
      _
    %v92 = vld [vmem:[%s0] sm:$0xff]
    %v93 = vld [vmem:[%s0 + $0x8] sm:$0xff]
    %v94 = vlaneseq
    %v95 = vshrl.u32 %v94, 7
    %v96 = vadd.s32 %v95, 8
    %v97 = vlaneseq
    %v98 = vand.u32 %v97, 127
    %vm99 = vcmp.ge.s32.totalorder %v95, %v98
    %vm100 = vcmp.ge.s32.totalorder %v96, %v98
    %v101 = vld [vmem:[%s1] sm:$0x1]
    %v102 = vld [vmem:[%s2] sm:$0x1]
    %103 = vadd.xlane.f32.xlu0 %v92
    %v104 = vpop.xlane.xlu0 %103
    %105 = vadd.xlane.f32.xlu0 %v93
    %v106 = vpop.xlane.xlu0 %105
    %v107 = vrcp.pop 128.0
    %v108 = vmul.f32 %v104, %v107
    %v109 = vmul.f32 %v106, %v107
    %v110 = vsub.f32 %v92, %v108
    %v111 = vsub.f32 %v93, %v109
    %v112 = vmul.f32 %v110, %v110
    %v113 = vmul.f32 %v111, %v111
    %114 = vadd.xlane.f32.xlu0 %v112
    %v115 = vpop.xlane.xlu0 %114
    %116 = vadd.xlane.f32.xlu0 %v113
    %v117 = vpop.xlane.xlu0 %116
    %v118 = vmul.f32 %v115, %v107
    %v119 = vmul.f32 %v117, %v107
    %v120 = vadd.f32 %v118, 1e-05
    %v121 = vadd.f32 %v119, 1e-05
    %v122 = vrsqrt.pop %v120
    %v123 = vrsqrt.pop %v121
    %v124 = vmul.f32 %v110, %v122
    %v125 = vmul.f32 %v111, %v123
    %v126 = vlaneseq
    %v127 = vshrl.u32 %v126, 7
    %v128 = vsub.s32 0, %v127
    %v129 = vrot.slane %v101, %v128
    %v130 = vmul.f32 %v124, %v129
    %v131 = vmul.f32 %v125, %v129
    %v132 = vlaneseq
    %v133 = vshrl.u32 %v132, 7
    %v134 = vsub.s32 0, %v133
    %v135 = vrot.slane %v102, %v134
    %v136 = vadd.f32 %v130, %v135
    %v137 = vadd.f32 %v131, %v135
    %v138 = vld [vmem:[#allocation2] sm:$0xff]
    %v139 = vld [vmem:[#allocation2 + $0x8] sm:$0xff]
    %v140 = vld [vmem:[#allocation2 + $0x10] sm:$0xff]
    %v141 = vld [vmem:[#allocation2 + $0x18] sm:$0xff]
    %v142 = vld [vmem:[#allocation2 + $0x20] sm:$0xff]
    %v143 = vld [vmem:[#allocation2 + $0x28] sm:$0xff]
    %v144 = vld [vmem:[#allocation2 + $0x30] sm:$0xff]
    %v145 = vld [vmem:[#allocation2 + $0x38] sm:$0xff]
    %v146 = vld [vmem:[#allocation2 + $0x40] sm:$0xff]
    %v147 = vld [vmem:[#allocation2 + $0x48] sm:$0xff]
    %v148 = vld [vmem:[#allocation2 + $0x50] sm:$0xff]
    %v149 = vld [vmem:[#allocation2 + $0x58] sm:$0xff]
    %v150 = vld [vmem:[#allocation2 + $0x60] sm:$0xff]
    %v151 = vld [vmem:[#allocation2 + $0x68] sm:$0xff]
    %v152 = vld [vmem:[#allocation2 + $0x70] sm:$0xff]
    %v153 = vld [vmem:[#allocation2 + $0x78] sm:$0xff]
    %v154 = vld [vmem:[#allocation2 + $0x80] sm:$0xff]
    %v155 = vld [vmem:[#allocation2 + $0x88] sm:$0xff]
    %v156 = vld [vmem:[#allocation2 + $0x90] sm:$0xff]
    %v157 = vld [vmem:[#allocation2 + $0x98] sm:$0xff]
    %v158 = vld [vmem:[#allocation2 + $0xa0] sm:$0xff]
    %v159 = vld [vmem:[#allocation2 + $0xa8] sm:$0xff]
    %v160 = vld [vmem:[#allocation2 + $0xb0] sm:$0xff]
    %v161 = vld [vmem:[#allocation2 + $0xb8] sm:$0xff]
    %v162 = vld [vmem:[#allocation2 + $0xc0] sm:$0xff]
    %v163 = vld [vmem:[#allocation2 + $0xc8] sm:$0xff]
    %v164 = vld [vmem:[#allocation2 + $0xd0] sm:$0xff]
    %v165 = vld [vmem:[#allocation2 + $0xd8] sm:$0xff]
    %v166 = vld [vmem:[#allocation2 + $0xe0] sm:$0xff]
    %v167 = vld [vmem:[#allocation2 + $0xe8] sm:$0xff]
    %v168 = vld [vmem:[#allocation2 + $0xf0] sm:$0xff]
    %v169 = vld [vmem:[#allocation2 + $0xf8] sm:$0xff]
    %v170 = vld [vmem:[#allocation2 + $0x100] sm:$0xff]
    %v171 = vld [vmem:[#allocation2 + $0x108] sm:$0xff]
    %v172 = vld [vmem:[#allocation2 + $0x110] sm:$0xff]
    %v173 = vld [vmem:[#allocation2 + $0x118] sm:$0xff]
    %v174 = vld [vmem:[#allocation2 + $0x120] sm:$0xff]
    %v175 = vld [vmem:[#allocation2 + $0x128] sm:$0xff]
    %v176 = vld [vmem:[#allocation2 + $0x130] sm:$0xff]
    %v177 = vld [vmem:[#allocation2 + $0x138] sm:$0xff]
    %v178 = vld [vmem:[#allocation2 + $0x140] sm:$0xff]
    %v179 = vld [vmem:[#allocation2 + $0x148] sm:$0xff]
    %v180 = vld [vmem:[#allocation2 + $0x150] sm:$0xff]
    %v181 = vld [vmem:[#allocation2 + $0x158] sm:$0xff]
    %v182 = vld [vmem:[#allocation2 + $0x160] sm:$0xff]
    %v183 = vld [vmem:[#allocation2 + $0x168] sm:$0xff]
    %v184 = vld [vmem:[#allocation2 + $0x170] sm:$0xff]
    %v185 = vld [vmem:[#allocation2 + $0x178] sm:$0xff]
    %v186 = vld [vmem:[%s4] ss:$2 sm:$0x7]
    %v188 = vlaneseq
    %v189 = vshrl.u32 %v188, 7
    %v190 = vsub.s32 0, %v189
    %v191 = vrot.slane %v186, %v190
    %v192 = vlaneseq
    %v193 = vshrl.u32 %v192, 7
    %v194 = vsub.s32 1, %v193
    %v195 = vrot.slane %v186, %v194
    %v196 = vlaneseq
    %v197 = vshrl.u32 %v196, 7
    %v198 = vsub.s32 2, %v197
    %v199 = vrot.slane %v186, %v198
    %203 = vmatprep.subr.mxu0 %v184
    %204 = vmatpush1.msra.mxu0 %v183
    %205 = vmatprep.subr.mxu0 %v181
    %206 = vmatpush1.msra.mxu0 %v180
    %207 = vmatprep.subr.mxu0 %v178
    %208 = vmatpush1.msra.mxu0 %v177
    %209 = vmatprep.subr.mxu0 %v175
    %210 = vmatpush1.msra.mxu0 %v174
    %211 = vmatprep.subr.mxu0 %v172
    %212 = vmatpush1.msra.mxu0 %v171
    %213 = vmatprep.subr.mxu0 %v169
    %214 = vmatpush1.msra.mxu0 %v168
    %215 = vmatprep.subr.mxu0 %v166
    %216 = vmatpush1.msra.mxu0 %v165
    %217 = vmatprep.subr.mxu0 %v163
    %218 = vmatpush1.msra.mxu0 %v162
    %219 = vmatprep.subr.mxu0 %v160
    %220 = vmatpush1.msra.mxu0 %v159
    %221 = vmatprep.subr.mxu0 %v157
    %222 = vmatpush1.msra.mxu0 %v156
    %223 = vmatprep.subr.mxu0 %v154
    %224 = vmatpush1.msra.mxu0 %v153
    %225 = vmatprep.subr.mxu0 %v151
    %226 = vmatpush1.msra.mxu0 %v150
    %227 = vmatprep.subr.mxu0 %v148
    %228 = vmatpush1.msra.mxu0 %v147
    %229 = vmatprep.subr.mxu0 %v145
    %230 = vmatpush1.msra.mxu0 %v144
    %231 = vmatprep.subr.mxu0 %v142
    %232 = vmatpush1.msra.mxu0 %v141
    %233 = vmatprep.subr.mxu0 %v139
    %234 = vmatpush1.msra.mxu0 %v138
    %235 = vmatprep.subr.mxu0 0.0
    %236 = vmatpush2.msra.mxu0 0.0
    %237 = vmatprep.subr.mxu0 0.0
    %238 = vmatpush2.msra.mxu0 0.0
    %239 = vmatprep.subr.mxu0 0.0
    %240 = vmatpush2.msra.mxu0 0.0
    %241 = vmatprep.subr.mxu0 0.0
    %242 = vmatpush2.msra.mxu0 0.0
    %243 = vmatprep.subr.mxu0 0.0
    %244 = vmatpush2.msra.mxu0 0.0
    %245 = vmatprep.subr.mxu0 0.0
    %246 = vmatpush2.msra.mxu0 0.0
    %247 = vmatprep.subr.mxu0 0.0
    %248 = vmatpush2.msra.mxu0 0.0
    %249 = vmatprep.subr.mxu0 0.0
    %250 = vmatpush2.msra.mxu0 0.0
    %251 = vmatprep.subr.mxu0 0.0
    %252 = vmatpush2.msra.mxu0 0.0
    %253 = vmatprep.subr.mxu0 0.0
    %254 = vmatpush2.msra.mxu0 0.0
    %255 = vmatprep.subr.mxu0 0.0
    %256 = vmatpush2.msra.mxu0 0.0
    %257 = vmatprep.subr.mxu0 0.0
    %258 = vmatpush2.msra.mxu0 0.0
    %259 = vmatprep.subr.mxu0 0.0
    %260 = vmatpush2.msra.mxu0 0.0
    %261 = vmatprep.subr.mxu0 0.0
    %262 = vmatpush2.msra.mxu0 0.0
    %263 = vmatprep.subr.mxu0 0.0
    %264 = vmatpush2.msra.mxu0 0.0
    %265 = vmatprep.subr.mxu0 0.0
    %266 = vmatpush2.msra.mxu0 0.0
    %267 = vmatprep.mubr.f32.mxu0 0.0
    %268 = vmatmul.mubr.f32.gmra.mxu0 %v136
    %v269 = vpop.f32.mrf.mxu0
    %v270 = vadd.f32 %v191, %v269
    %v271 = vpop.f32.mrf.mxu0
    %v272 = vadd.f32 %v195, %v271
    %273 = vmatprep.mubr.f32.mxu0 0.0
    %274 = vmatmul.mubr.f32.gmra.mxu0 %v137
    %v275 = vpop.f32.mrf.mxu0
    %v276 = vadd.f32 %v191, %v275
    %v277 = vpop.f32.mrf.mxu0
    %v278 = vadd.f32 %v195, %v277
    %279 = vdwg.mxu0
    %280 = vmatprep.subr.mxu0 0.0
    %281 = vmatpush1.msra.mxu0 %v185
    %282 = vmatprep.subr.mxu0 0.0
    %283 = vmatpush1.msra.mxu0 %v182
    %284 = vmatprep.subr.mxu0 0.0
    %285 = vmatpush1.msra.mxu0 %v179
    %286 = vmatprep.subr.mxu0 0.0
    %287 = vmatpush1.msra.mxu0 %v176
    %288 = vmatprep.subr.mxu0 0.0
    %289 = vmatpush1.msra.mxu0 %v173
    %290 = vmatprep.subr.mxu0 0.0
    %291 = vmatpush1.msra.mxu0 %v170
    %292 = vmatprep.subr.mxu0 0.0
    %293 = vmatpush1.msra.mxu0 %v167
    %294 = vmatprep.subr.mxu0 0.0
    %295 = vmatpush1.msra.mxu0 %v164
    %296 = vmatprep.subr.mxu0 0.0
    %297 = vmatpush1.msra.mxu0 %v161
    %298 = vmatprep.subr.mxu0 0.0
    %299 = vmatpush1.msra.mxu0 %v158
    %300 = vmatprep.subr.mxu0 0.0
    %301 = vmatpush1.msra.mxu0 %v155
    %302 = vmatprep.subr.mxu0 0.0
    %303 = vmatpush1.msra.mxu0 %v152
    %304 = vmatprep.subr.mxu0 0.0
    %305 = vmatpush1.msra.mxu0 %v149
    %306 = vmatprep.subr.mxu0 0.0
    %307 = vmatpush1.msra.mxu0 %v146
    %308 = vmatprep.subr.mxu0 0.0
    %309 = vmatpush1.msra.mxu0 %v143
    %310 = vmatprep.subr.mxu0 0.0
    %311 = vmatpush1.msra.mxu0 %v140
    %312 = vmatprep.subr.mxu0 0.0
    %313 = vmatpush2.msra.mxu0 0.0
    %314 = vmatprep.subr.mxu0 0.0
    %315 = vmatpush2.msra.mxu0 0.0
    %316 = vmatprep.subr.mxu0 0.0
    %317 = vmatpush2.msra.mxu0 0.0
    %318 = vmatprep.subr.mxu0 0.0
    %319 = vmatpush2.msra.mxu0 0.0
    %320 = vmatprep.subr.mxu0 0.0
    %321 = vmatpush2.msra.mxu0 0.0
    %322 = vmatprep.subr.mxu0 0.0
    %323 = vmatpush2.msra.mxu0 0.0
    %324 = vmatprep.subr.mxu0 0.0
    %325 = vmatpush2.msra.mxu0 0.0
    %326 = vmatprep.subr.mxu0 0.0
    %327 = vmatpush2.msra.mxu0 0.0
    %328 = vmatprep.subr.mxu0 0.0
    %329 = vmatpush2.msra.mxu0 0.0
    %330 = vmatprep.subr.mxu0 0.0
    %331 = vmatpush2.msra.mxu0 0.0
    %332 = vmatprep.subr.mxu0 0.0
    %333 = vmatpush2.msra.mxu0 0.0
    %334 = vmatprep.subr.mxu0 0.0
    %335 = vmatpush2.msra.mxu0 0.0
    %336 = vmatprep.subr.mxu0 0.0
    %337 = vmatpush2.msra.mxu0 0.0
    %338 = vmatprep.subr.mxu0 0.0
    %339 = vmatpush2.msra.mxu0 0.0
    %340 = vmatprep.subr.mxu0 0.0
    %341 = vmatpush2.msra.mxu0 0.0
    %342 = vmatprep.subr.mxu0 0.0
    %343 = vmatpush2.msra.mxu0 0.0
    %344 = vmatprep.mubr.f32.mxu0 0.0
    %345 = vmatmul.mubr.f32.gmra.mxu0 %v136
    %v346 = vpop.f32.mrf.mxu0
    %v347 = vadd.f32 %v199, %v346
    %v348 = vpop.f32.mrf.mxu0
    %349 = vmatprep.mubr.f32.mxu0 0.0
    %350 = vmatmul.mubr.f32.gmra.mxu0 %v137
    %v351 = vpop.f32.mrf.mxu0
    %v352 = vadd.f32 %v199, %v351
    %v353 = vpop.f32.mrf.mxu0
    %354 = vdwg.mxu0
    %v355 = vmul.f32 %v270, 0.17677669
    %v356 = vmul.f32 %v276, 0.17677669
    %vm357 = vcmask 261120
    %v359 = vsel %vm357, %v355, 0
    %v362 = vsel %vm357, %v356, 0
    %v365 = vsel %vm357, %v272, 0
    %v368 = vsel %vm357, %v278, 0
    %370 = vmatprep.subr.mxu0 0.0
    %371 = vmatpush1.xpose.msra.mxu0 0.0
    %372 = vmatprep.subr.mxu0 0.0
    %373 = vmatpush1.xpose.msra.mxu0 0.0
    %374 = vmatprep.subr.mxu0 0.0
    %375 = vmatpush1.xpose.msra.mxu0 0.0
    %376 = vmatprep.subr.mxu0 0.0
    %377 = vmatpush1.xpose.msra.mxu0 0.0
    %378 = vmatprep.subr.mxu0 0.0
    %379 = vmatpush1.xpose.msra.mxu0 0.0
    %380 = vmatprep.subr.mxu0 0.0
    %381 = vmatpush1.xpose.msra.mxu0 0.0
    %382 = vmatprep.subr.mxu0 0.0
    %383 = vmatpush1.xpose.msra.mxu0 0.0
    %384 = vmatprep.subr.mxu0 0.0
    %385 = vmatpush1.xpose.msra.mxu0 0.0
    %386 = vmatprep.subr.mxu0 0.0
    %387 = vmatpush1.xpose.msra.mxu0 0.0
    %388 = vmatprep.subr.mxu0 0.0
    %389 = vmatpush1.xpose.msra.mxu0 0.0
    %390 = vmatprep.subr.mxu0 0.0
    %391 = vmatpush1.xpose.msra.mxu0 0.0
    %392 = vmatprep.subr.mxu0 0.0
    %393 = vmatpush1.xpose.msra.mxu0 0.0
    %394 = vmatprep.subr.mxu0 0.0
    %395 = vmatpush1.xpose.msra.mxu0 0.0
    %396 = vmatprep.subr.mxu0 0.0
    %397 = vmatpush1.xpose.msra.mxu0 0.0
    %398 = vmatprep.subr.mxu0 0.0
    %399 = vmatpush1.xpose.msra.mxu0 %v368
    %400 = vmatprep.subr.mxu0 0.0
    %401 = vmatpush1.xpose.msra.mxu0 %v365
    %402 = vmatprep.subr.mxu0 0.0
    %403 = vmatpush2.xpose.msra.mxu0 0.0
    %404 = vmatprep.subr.mxu0 0.0
    %405 = vmatpush2.xpose.msra.mxu0 0.0
    %406 = vmatprep.subr.mxu0 0.0
    %407 = vmatpush2.xpose.msra.mxu0 0.0
    %408 = vmatprep.subr.mxu0 0.0
    %409 = vmatpush2.xpose.msra.mxu0 0.0
    %410 = vmatprep.subr.mxu0 0.0
    %411 = vmatpush2.xpose.msra.mxu0 0.0
    %412 = vmatprep.subr.mxu0 0.0
    %413 = vmatpush2.xpose.msra.mxu0 0.0
    %414 = vmatprep.subr.mxu0 0.0
    %415 = vmatpush2.xpose.msra.mxu0 0.0
    %416 = vmatprep.subr.mxu0 0.0
    %417 = vmatpush2.xpose.msra.mxu0 0.0
    %418 = vmatprep.subr.mxu0 0.0
    %419 = vmatpush2.xpose.msra.mxu0 0.0
    %420 = vmatprep.subr.mxu0 0.0
    %421 = vmatpush2.xpose.msra.mxu0 0.0
    %422 = vmatprep.subr.mxu0 0.0
    %423 = vmatpush2.xpose.msra.mxu0 0.0
    %424 = vmatprep.subr.mxu0 0.0
    %425 = vmatpush2.xpose.msra.mxu0 0.0
    %426 = vmatprep.subr.mxu0 0.0
    %427 = vmatpush2.xpose.msra.mxu0 0.0
    %428 = vmatprep.subr.mxu0 0.0
    %429 = vmatpush2.xpose.msra.mxu0 0.0
    %430 = vmatprep.subr.mxu0 0.0
    %431 = vmatpush2.xpose.msra.mxu0 0.0
    %432 = vmatprep.subr.mxu0 0.0
    %433 = vmatpush2.xpose.msra.mxu0 0.0
    %434 = vmatprep.mubr.f32.mxu0 0.0
    %435 = vmatmul.mubr.f32.gmra.mxu0 %v359
    %v436 = vpop.f32.mrf.mxu0
    %v437 = vadd.f32 0.0, %v436
    %v438 = vpop.f32.mrf.mxu0
    %439 = vmatprep.mubr.f32.mxu0 0.0
    %440 = vmatmul.mubr.f32.gmra.mxu0 %v362
    %v441 = vpop.f32.mrf.mxu0
    %v442 = vadd.f32 0.0, %v441
    %v443 = vpop.f32.mrf.mxu0
    %444 = vdwg.mxu0
    %v445 = vsel %vm99, %v437, -1e+30
    %v446 = vsel %vm100, %v442, -1e+30
    %vm447 = vcmask 130048
    %v448 = vsel %vm447, %v445, -inf
    %449 = vmax.xlane.f32.xlu0 %v448
    %v450 = vpop.xlane.xlu0 %449
    %v451 = vsel %vm447, %v446, -inf
    %452 = vmax.xlane.f32.xlu0 %v451
    %v453 = vpop.xlane.xlu0 %452
    %v454 = vsub.f32 %v445, %v450
    %v455 = vsub.f32 %v446, %v453
    %v456 = vmul.f32 %v454, 1.442695
    %v457 = vpow.pop %v456
    %v458 = vmul.f32 %v455, 1.442695
    %v459 = vpow.pop %v458
    %v460 = vsel %vm447, %v457, 0.0
    %461 = vadd.xlane.f32.xlu0 %v460
    %v462 = vpop.xlane.xlu0 %461
    %v463 = vsel %vm447, %v459, 0.0
    %464 = vadd.xlane.f32.xlu0 %v463
    %v465 = vpop.xlane.xlu0 %464
    %v466 = vrcp.pop %v462
    %v467 = vrcp.pop %v465
    %v468 = vmul.f32 %v457, %v466
    %v469 = vmul.f32 %v459, %v467
    %v471 = vsel %vm447, %v468, 0
    %v474 = vsel %vm447, %v469, 0
    %476 = vmatprep.subr.mxu0 0.0
    %477 = vmatpush1.msra.mxu0 0.0
    %478 = vmatprep.subr.mxu0 0.0
    %479 = vmatpush1.msra.mxu0 0.0
    %480 = vmatprep.subr.mxu0 0.0
    %481 = vmatpush1.msra.mxu0 0.0
    %482 = vmatprep.subr.mxu0 0.0
    %483 = vmatpush1.msra.mxu0 0.0
    %484 = vmatprep.subr.mxu0 0.0
    %485 = vmatpush1.msra.mxu0 0.0
    %486 = vmatprep.subr.mxu0 0.0
    %487 = vmatpush1.msra.mxu0 0.0
    %488 = vmatprep.subr.mxu0 0.0
    %489 = vmatpush1.msra.mxu0 0.0
    %490 = vmatprep.subr.mxu0 0.0
    %491 = vmatpush1.msra.mxu0 0.0
    %492 = vmatprep.subr.mxu0 0.0
    %493 = vmatpush1.msra.mxu0 0.0
    %494 = vmatprep.subr.mxu0 0.0
    %495 = vmatpush1.msra.mxu0 0.0
    %496 = vmatprep.subr.mxu0 0.0
    %497 = vmatpush1.msra.mxu0 0.0
    %498 = vmatprep.subr.mxu0 0.0
    %499 = vmatpush1.msra.mxu0 0.0
    %500 = vmatprep.subr.mxu0 0.0
    %501 = vmatpush1.msra.mxu0 0.0
    %502 = vmatprep.subr.mxu0 0.0
    %503 = vmatpush1.msra.mxu0 0.0
    %504 = vmatprep.subr.mxu0 0.0
    %505 = vmatpush1.msra.mxu0 %v352
    %506 = vmatprep.subr.mxu0 0.0
    %507 = vmatpush1.msra.mxu0 %v347
    %508 = vmatprep.subr.mxu0 0.0
    %509 = vmatpush2.msra.mxu0 0.0
    %510 = vmatprep.subr.mxu0 0.0
    %511 = vmatpush2.msra.mxu0 0.0
    %512 = vmatprep.subr.mxu0 0.0
    %513 = vmatpush2.msra.mxu0 0.0
    %514 = vmatprep.subr.mxu0 0.0
    %515 = vmatpush2.msra.mxu0 0.0
    %516 = vmatprep.subr.mxu0 0.0
    %517 = vmatpush2.msra.mxu0 0.0
    %518 = vmatprep.subr.mxu0 0.0
    %519 = vmatpush2.msra.mxu0 0.0
    %520 = vmatprep.subr.mxu0 0.0
    %521 = vmatpush2.msra.mxu0 0.0
    %522 = vmatprep.subr.mxu0 0.0
    %523 = vmatpush2.msra.mxu0 0.0
    %524 = vmatprep.subr.mxu0 0.0
    %525 = vmatpush2.msra.mxu0 0.0
    %526 = vmatprep.subr.mxu0 0.0
    %527 = vmatpush2.msra.mxu0 0.0
    %528 = vmatprep.subr.mxu0 0.0
    %529 = vmatpush2.msra.mxu0 0.0
    %530 = vmatprep.subr.mxu0 0.0
    %531 = vmatpush2.msra.mxu0 0.0
    %532 = vmatprep.subr.mxu0 0.0
    %533 = vmatpush2.msra.mxu0 0.0
    %534 = vmatprep.subr.mxu0 0.0
    %535 = vmatpush2.msra.mxu0 0.0
    %536 = vmatprep.subr.mxu0 0.0
    %537 = vmatpush2.msra.mxu0 0.0
    %538 = vmatprep.subr.mxu0 0.0
    %539 = vmatpush2.msra.mxu0 0.0
    %540 = vmatprep.mubr.f32.mxu0 0.0
    %541 = vmatmul.mubr.f32.gmra.mxu0 %v471
    %v542 = vpop.f32.mrf.mxu0
    %v543 = vadd.f32 0.0, %v542
    %v544 = vpop.f32.mrf.mxu0
    %545 = vmatprep.mubr.f32.mxu0 0.0
    %546 = vmatmul.mubr.f32.gmra.mxu0 %v474
    %v547 = vpop.f32.mrf.mxu0
    %v548 = vadd.f32 0.0, %v547
    %v549 = vpop.f32.mrf.mxu0
    %550 = vdwg.mxu0
    %551 = vrot.lane.b32.xlu0 %v355, 96
    %v552 = vpop.permute.xlu0 %551
    %553 = vrot.lane.b32.xlu0 %v356, 96
    %v554 = vpop.permute.xlu0 %553
    %555 = vrot.lane.b32.xlu0 %v272, 96
    %v556 = vpop.permute.xlu0 %555
    %557 = vrot.lane.b32.xlu0 %v278, 96
    %v558 = vpop.permute.xlu0 %557
    %v559 = vsel %vm357, %v552, 0
    %v561 = vsel %vm357, %v554, 0
    %v563 = vsel %vm357, %v556, 0
    %v565 = vsel %vm357, %v558, 0
    %567 = vmatprep.subr.mxu0 0.0
    %568 = vmatpush1.xpose.msra.mxu0 0.0
    %569 = vmatprep.subr.mxu0 0.0
    %570 = vmatpush1.xpose.msra.mxu0 0.0
    %571 = vmatprep.subr.mxu0 0.0
    %572 = vmatpush1.xpose.msra.mxu0 0.0
    %573 = vmatprep.subr.mxu0 0.0
    %574 = vmatpush1.xpose.msra.mxu0 0.0
    %575 = vmatprep.subr.mxu0 0.0
    %576 = vmatpush1.xpose.msra.mxu0 0.0
    %577 = vmatprep.subr.mxu0 0.0
    %578 = vmatpush1.xpose.msra.mxu0 0.0
    %579 = vmatprep.subr.mxu0 0.0
    %580 = vmatpush1.xpose.msra.mxu0 0.0
    %581 = vmatprep.subr.mxu0 0.0
    %582 = vmatpush1.xpose.msra.mxu0 0.0
    %583 = vmatprep.subr.mxu0 0.0
    %584 = vmatpush1.xpose.msra.mxu0 0.0
    %585 = vmatprep.subr.mxu0 0.0
    %586 = vmatpush1.xpose.msra.mxu0 0.0
    %587 = vmatprep.subr.mxu0 0.0
    %588 = vmatpush1.xpose.msra.mxu0 0.0
    %589 = vmatprep.subr.mxu0 0.0
    %590 = vmatpush1.xpose.msra.mxu0 0.0
    %591 = vmatprep.subr.mxu0 0.0
    %592 = vmatpush1.xpose.msra.mxu0 0.0
    %593 = vmatprep.subr.mxu0 0.0
    %594 = vmatpush1.xpose.msra.mxu0 0.0
    %595 = vmatprep.subr.mxu0 0.0
    %596 = vmatpush1.xpose.msra.mxu0 %v565
    %597 = vmatprep.subr.mxu0 0.0
    %598 = vmatpush1.xpose.msra.mxu0 %v563
    %599 = vmatprep.subr.mxu0 0.0
    %600 = vmatpush2.xpose.msra.mxu0 0.0
    %601 = vmatprep.subr.mxu0 0.0
    %602 = vmatpush2.xpose.msra.mxu0 0.0
    %603 = vmatprep.subr.mxu0 0.0
    %604 = vmatpush2.xpose.msra.mxu0 0.0
    %605 = vmatprep.subr.mxu0 0.0
    %606 = vmatpush2.xpose.msra.mxu0 0.0
    %607 = vmatprep.subr.mxu0 0.0
    %608 = vmatpush2.xpose.msra.mxu0 0.0
    %609 = vmatprep.subr.mxu0 0.0
    %610 = vmatpush2.xpose.msra.mxu0 0.0
    %611 = vmatprep.subr.mxu0 0.0
    %612 = vmatpush2.xpose.msra.mxu0 0.0
    %613 = vmatprep.subr.mxu0 0.0
    %614 = vmatpush2.xpose.msra.mxu0 0.0
    %615 = vmatprep.subr.mxu0 0.0
    %616 = vmatpush2.xpose.msra.mxu0 0.0
    %617 = vmatprep.subr.mxu0 0.0
    %618 = vmatpush2.xpose.msra.mxu0 0.0
    %619 = vmatprep.subr.mxu0 0.0
    %620 = vmatpush2.xpose.msra.mxu0 0.0
    %621 = vmatprep.subr.mxu0 0.0
    %622 = vmatpush2.xpose.msra.mxu0 0.0
    %623 = vmatprep.subr.mxu0 0.0
    %624 = vmatpush2.xpose.msra.mxu0 0.0
    %625 = vmatprep.subr.mxu0 0.0
    %626 = vmatpush2.xpose.msra.mxu0 0.0
    %627 = vmatprep.subr.mxu0 0.0
    %628 = vmatpush2.xpose.msra.mxu0 0.0
    %629 = vmatprep.subr.mxu0 0.0
    %630 = vmatpush2.xpose.msra.mxu0 0.0
    %631 = vmatprep.mubr.f32.mxu0 0.0
    %632 = vmatmul.mubr.f32.gmra.mxu0 %v559
    %v633 = vpop.f32.mrf.mxu0
    %v634 = vadd.f32 0.0, %v633
    %v635 = vpop.f32.mrf.mxu0
    %636 = vmatprep.mubr.f32.mxu0 0.0
    %637 = vmatmul.mubr.f32.gmra.mxu0 %v561
    %v638 = vpop.f32.mrf.mxu0
    %v639 = vadd.f32 0.0, %v638
    %v640 = vpop.f32.mrf.mxu0
    %641 = vdwg.mxu0
    %v642 = vsel %vm99, %v634, -1e+30
    %v643 = vsel %vm100, %v639, -1e+30
    %v644 = vsel %vm447, %v642, -inf
    %645 = vmax.xlane.f32.xlu0 %v644
    %v646 = vpop.xlane.xlu0 %645
    %v647 = vsel %vm447, %v643, -inf
    %648 = vmax.xlane.f32.xlu0 %v647
    %v649 = vpop.xlane.xlu0 %648
    %v650 = vsub.f32 %v642, %v646
    %v651 = vsub.f32 %v643, %v649
    %v652 = vmul.f32 %v650, 1.442695
    %v653 = vpow.pop %v652
    %v654 = vmul.f32 %v651, 1.442695
    %v655 = vpow.pop %v654
    %v656 = vsel %vm447, %v653, 0.0
    %657 = vadd.xlane.f32.xlu0 %v656
    %v658 = vpop.xlane.xlu0 %657
    %v659 = vsel %vm447, %v655, 0.0
    %660 = vadd.xlane.f32.xlu0 %v659
    %v661 = vpop.xlane.xlu0 %660
    %v662 = vrcp.pop %v658
    %v663 = vrcp.pop %v661
    %v664 = vmul.f32 %v653, %v662
    %v665 = vmul.f32 %v655, %v663
    %668 = vrot.lane.b32.xlu0 %v347, 96
    %v669 = vpop.permute.xlu0 %668
    %670 = vrot.lane.b32.xlu0 %v352, 96
    %v671 = vpop.permute.xlu0 %670
    %v675 = vsel %vm447, %v664, 0
    %v678 = vsel %vm447, %v665, 0
    %680 = vmatprep.subr.mxu0 0.0
    %681 = vmatpush1.msra.mxu0 0.0
    %682 = vmatprep.subr.mxu0 0.0
    %683 = vmatpush1.msra.mxu0 0.0
    %684 = vmatprep.subr.mxu0 0.0
    %685 = vmatpush1.msra.mxu0 0.0
    %686 = vmatprep.subr.mxu0 0.0
    %687 = vmatpush1.msra.mxu0 0.0
    %688 = vmatprep.subr.mxu0 0.0
    %689 = vmatpush1.msra.mxu0 0.0
    %690 = vmatprep.subr.mxu0 0.0
    %691 = vmatpush1.msra.mxu0 0.0
    %692 = vmatprep.subr.mxu0 0.0
    %693 = vmatpush1.msra.mxu0 0.0
    %694 = vmatprep.subr.mxu0 0.0
    %695 = vmatpush1.msra.mxu0 0.0
    %696 = vmatprep.subr.mxu0 0.0
    %697 = vmatpush1.msra.mxu0 0.0
    %698 = vmatprep.subr.mxu0 0.0
    %699 = vmatpush1.msra.mxu0 0.0
    %700 = vmatprep.subr.mxu0 0.0
    %701 = vmatpush1.msra.mxu0 0.0
    %702 = vmatprep.subr.mxu0 0.0
    %703 = vmatpush1.msra.mxu0 0.0
    %704 = vmatprep.subr.mxu0 0.0
    %705 = vmatpush1.msra.mxu0 0.0
    %706 = vmatprep.subr.mxu0 0.0
    %707 = vmatpush1.msra.mxu0 0.0
    %708 = vmatprep.subr.mxu0 0.0
    %709 = vmatpush1.msra.mxu0 %v671
    %710 = vmatprep.subr.mxu0 0.0
    %711 = vmatpush1.msra.mxu0 %v669
    %712 = vmatprep.subr.mxu0 0.0
    %713 = vmatpush2.msra.mxu0 0.0
    %714 = vmatprep.subr.mxu0 0.0
    %715 = vmatpush2.msra.mxu0 0.0
    %716 = vmatprep.subr.mxu0 0.0
    %717 = vmatpush2.msra.mxu0 0.0
    %718 = vmatprep.subr.mxu0 0.0
    %719 = vmatpush2.msra.mxu0 0.0
    %720 = vmatprep.subr.mxu0 0.0
    %721 = vmatpush2.msra.mxu0 0.0
    %722 = vmatprep.subr.mxu0 0.0
    %723 = vmatpush2.msra.mxu0 0.0
    %724 = vmatprep.subr.mxu0 0.0
    %725 = vmatpush2.msra.mxu0 0.0
    %726 = vmatprep.subr.mxu0 0.0
    %727 = vmatpush2.msra.mxu0 0.0
    %728 = vmatprep.subr.mxu0 0.0
    %729 = vmatpush2.msra.mxu0 0.0
    %730 = vmatprep.subr.mxu0 0.0
    %731 = vmatpush2.msra.mxu0 0.0
    %732 = vmatprep.subr.mxu0 0.0
    %733 = vmatpush2.msra.mxu0 0.0
    %734 = vmatprep.subr.mxu0 0.0
    %735 = vmatpush2.msra.mxu0 0.0
    %736 = vmatprep.subr.mxu0 0.0
    %737 = vmatpush2.msra.mxu0 0.0
    %738 = vmatprep.subr.mxu0 0.0
    %739 = vmatpush2.msra.mxu0 0.0
    %740 = vmatprep.subr.mxu0 0.0
    %741 = vmatpush2.msra.mxu0 0.0
    %742 = vmatprep.subr.mxu0 0.0
    %743 = vmatpush2.msra.mxu0 0.0
    %744 = vmatprep.mubr.f32.mxu0 0.0
    %745 = vmatmul.mubr.f32.gmra.mxu0 %v675
    %v746 = vpop.f32.mrf.mxu0
    %v747 = vadd.f32 0.0, %v746
    %v748 = vpop.f32.mrf.mxu0
    %749 = vmatprep.mubr.f32.mxu0 0.0
    %750 = vmatmul.mubr.f32.gmra.mxu0 %v678
    %v751 = vpop.f32.mrf.mxu0
    %v752 = vadd.f32 0.0, %v751
    %v753 = vpop.f32.mrf.mxu0
    %754 = vdwg.mxu0
    %755 = vrot.lane.b32.xlu0 %v355, 64
    %v756 = vpop.permute.xlu0 %755
    %757 = vrot.lane.b32.xlu0 %v356, 64
    %v758 = vpop.permute.xlu0 %757
    %759 = vrot.lane.b32.xlu0 %v272, 64
    %v760 = vpop.permute.xlu0 %759
    %761 = vrot.lane.b32.xlu0 %v278, 64
    %v762 = vpop.permute.xlu0 %761
    %v763 = vsel %vm357, %v756, 0
    %v765 = vsel %vm357, %v758, 0
    %v767 = vsel %vm357, %v760, 0
    %v769 = vsel %vm357, %v762, 0
    %771 = vmatprep.subr.mxu0 0.0
    %772 = vmatpush1.xpose.msra.mxu0 0.0
    %773 = vmatprep.subr.mxu0 0.0
    %774 = vmatpush1.xpose.msra.mxu0 0.0
    %775 = vmatprep.subr.mxu0 0.0
    %776 = vmatpush1.xpose.msra.mxu0 0.0
    %777 = vmatprep.subr.mxu0 0.0
    %778 = vmatpush1.xpose.msra.mxu0 0.0
    %779 = vmatprep.subr.mxu0 0.0
    %780 = vmatpush1.xpose.msra.mxu0 0.0
    %781 = vmatprep.subr.mxu0 0.0
    %782 = vmatpush1.xpose.msra.mxu0 0.0
    %783 = vmatprep.subr.mxu0 0.0
    %784 = vmatpush1.xpose.msra.mxu0 0.0
    %785 = vmatprep.subr.mxu0 0.0
    %786 = vmatpush1.xpose.msra.mxu0 0.0
    %787 = vmatprep.subr.mxu0 0.0
    %788 = vmatpush1.xpose.msra.mxu0 0.0
    %789 = vmatprep.subr.mxu0 0.0
    %790 = vmatpush1.xpose.msra.mxu0 0.0
    %791 = vmatprep.subr.mxu0 0.0
    %792 = vmatpush1.xpose.msra.mxu0 0.0
    %793 = vmatprep.subr.mxu0 0.0
    %794 = vmatpush1.xpose.msra.mxu0 0.0
    %795 = vmatprep.subr.mxu0 0.0
    %796 = vmatpush1.xpose.msra.mxu0 0.0
    %797 = vmatprep.subr.mxu0 0.0
    %798 = vmatpush1.xpose.msra.mxu0 0.0
    %799 = vmatprep.subr.mxu0 0.0
    %800 = vmatpush1.xpose.msra.mxu0 %v769
    %801 = vmatprep.subr.mxu0 0.0
    %802 = vmatpush1.xpose.msra.mxu0 %v767
    %803 = vmatprep.subr.mxu0 0.0
    %804 = vmatpush2.xpose.msra.mxu0 0.0
    %805 = vmatprep.subr.mxu0 0.0
    %806 = vmatpush2.xpose.msra.mxu0 0.0
    %807 = vmatprep.subr.mxu0 0.0
    %808 = vmatpush2.xpose.msra.mxu0 0.0
    %809 = vmatprep.subr.mxu0 0.0
    %810 = vmatpush2.xpose.msra.mxu0 0.0
    %811 = vmatprep.subr.mxu0 0.0
    %812 = vmatpush2.xpose.msra.mxu0 0.0
    %813 = vmatprep.subr.mxu0 0.0
    %814 = vmatpush2.xpose.msra.mxu0 0.0
    %815 = vmatprep.subr.mxu0 0.0
    %816 = vmatpush2.xpose.msra.mxu0 0.0
    %817 = vmatprep.subr.mxu0 0.0
    %818 = vmatpush2.xpose.msra.mxu0 0.0
    %819 = vmatprep.subr.mxu0 0.0
    %820 = vmatpush2.xpose.msra.mxu0 0.0
    %821 = vmatprep.subr.mxu0 0.0
    %822 = vmatpush2.xpose.msra.mxu0 0.0
    %823 = vmatprep.subr.mxu0 0.0
    %824 = vmatpush2.xpose.msra.mxu0 0.0
    %825 = vmatprep.subr.mxu0 0.0
    %826 = vmatpush2.xpose.msra.mxu0 0.0
    %827 = vmatprep.subr.mxu0 0.0
    %828 = vmatpush2.xpose.msra.mxu0 0.0
    %829 = vmatprep.subr.mxu0 0.0
    %830 = vmatpush2.xpose.msra.mxu0 0.0
    %831 = vmatprep.subr.mxu0 0.0
    %832 = vmatpush2.xpose.msra.mxu0 0.0
    %833 = vmatprep.subr.mxu0 0.0
    %834 = vmatpush2.xpose.msra.mxu0 0.0
    %835 = vmatprep.mubr.f32.mxu0 0.0
    %836 = vmatmul.mubr.f32.gmra.mxu0 %v763
    %v837 = vpop.f32.mrf.mxu0
    %v838 = vadd.f32 0.0, %v837
    %v839 = vpop.f32.mrf.mxu0
    %840 = vmatprep.mubr.f32.mxu0 0.0
    %841 = vmatmul.mubr.f32.gmra.mxu0 %v765
    %v842 = vpop.f32.mrf.mxu0
    %v843 = vadd.f32 0.0, %v842
    %v844 = vpop.f32.mrf.mxu0
    %845 = vdwg.mxu0
    %v846 = vsel %vm99, %v838, -1e+30
    %v847 = vsel %vm100, %v843, -1e+30
    %v848 = vsel %vm447, %v846, -inf
    %849 = vmax.xlane.f32.xlu0 %v848
    %v850 = vpop.xlane.xlu0 %849
    %v851 = vsel %vm447, %v847, -inf
    %852 = vmax.xlane.f32.xlu0 %v851
    %v853 = vpop.xlane.xlu0 %852
    %v854 = vsub.f32 %v846, %v850
    %v855 = vsub.f32 %v847, %v853
    %v856 = vmul.f32 %v854, 1.442695
    %v857 = vpow.pop %v856
    %v858 = vmul.f32 %v855, 1.442695
    %v859 = vpow.pop %v858
    %v860 = vsel %vm447, %v857, 0.0
    %861 = vadd.xlane.f32.xlu0 %v860
    %v862 = vpop.xlane.xlu0 %861
    %v863 = vsel %vm447, %v859, 0.0
    %864 = vadd.xlane.f32.xlu0 %v863
    %v865 = vpop.xlane.xlu0 %864
    %v866 = vrcp.pop %v862
    %v867 = vrcp.pop %v865
    %v868 = vmul.f32 %v857, %v866
    %v869 = vmul.f32 %v859, %v867
    %870 = vrot.lane.b32.xlu0 %v347, 64
    %v871 = vpop.permute.xlu0 %870
    %872 = vrot.lane.b32.xlu0 %v352, 64
    %v873 = vpop.permute.xlu0 %872
    %v877 = vsel %vm447, %v868, 0
    %v880 = vsel %vm447, %v869, 0
    %882 = vmatprep.subr.mxu0 0.0
    %883 = vmatpush1.msra.mxu0 0.0
    %884 = vmatprep.subr.mxu0 0.0
    %885 = vmatpush1.msra.mxu0 0.0
    %886 = vmatprep.subr.mxu0 0.0
    %887 = vmatpush1.msra.mxu0 0.0
    %888 = vmatprep.subr.mxu0 0.0
    %889 = vmatpush1.msra.mxu0 0.0
    %890 = vmatprep.subr.mxu0 0.0
    %891 = vmatpush1.msra.mxu0 0.0
    %892 = vmatprep.subr.mxu0 0.0
    %893 = vmatpush1.msra.mxu0 0.0
    %894 = vmatprep.subr.mxu0 0.0
    %895 = vmatpush1.msra.mxu0 0.0
    %896 = vmatprep.subr.mxu0 0.0
    %897 = vmatpush1.msra.mxu0 0.0
    %898 = vmatprep.subr.mxu0 0.0
    %899 = vmatpush1.msra.mxu0 0.0
    %900 = vmatprep.subr.mxu0 0.0
    %901 = vmatpush1.msra.mxu0 0.0
    %902 = vmatprep.subr.mxu0 0.0
    %903 = vmatpush1.msra.mxu0 0.0
    %904 = vmatprep.subr.mxu0 0.0
    %905 = vmatpush1.msra.mxu0 0.0
    %906 = vmatprep.subr.mxu0 0.0
    %907 = vmatpush1.msra.mxu0 0.0
    %908 = vmatprep.subr.mxu0 0.0
    %909 = vmatpush1.msra.mxu0 0.0
    %910 = vmatprep.subr.mxu0 0.0
    %911 = vmatpush1.msra.mxu0 %v873
    %912 = vmatprep.subr.mxu0 0.0
    %913 = vmatpush1.msra.mxu0 %v871
    %914 = vmatprep.subr.mxu0 0.0
    %915 = vmatpush2.msra.mxu0 0.0
    %916 = vmatprep.subr.mxu0 0.0
    %917 = vmatpush2.msra.mxu0 0.0
    %918 = vmatprep.subr.mxu0 0.0
    %919 = vmatpush2.msra.mxu0 0.0
    %920 = vmatprep.subr.mxu0 0.0
    %921 = vmatpush2.msra.mxu0 0.0
    %922 = vmatprep.subr.mxu0 0.0
    %923 = vmatpush2.msra.mxu0 0.0
    %924 = vmatprep.subr.mxu0 0.0
    %925 = vmatpush2.msra.mxu0 0.0
    %926 = vmatprep.subr.mxu0 0.0
    %927 = vmatpush2.msra.mxu0 0.0
    %928 = vmatprep.subr.mxu0 0.0
    %929 = vmatpush2.msra.mxu0 0.0
    %930 = vmatprep.subr.mxu0 0.0
    %931 = vmatpush2.msra.mxu0 0.0
    %932 = vmatprep.subr.mxu0 0.0
    %933 = vmatpush2.msra.mxu0 0.0
    %934 = vmatprep.subr.mxu0 0.0
    %935 = vmatpush2.msra.mxu0 0.0
    %936 = vmatprep.subr.mxu0 0.0
    %937 = vmatpush2.msra.mxu0 0.0
    %938 = vmatprep.subr.mxu0 0.0
    %939 = vmatpush2.msra.mxu0 0.0
    %940 = vmatprep.subr.mxu0 0.0
    %941 = vmatpush2.msra.mxu0 0.0
    %942 = vmatprep.subr.mxu0 0.0
    %943 = vmatpush2.msra.mxu0 0.0
    %944 = vmatprep.subr.mxu0 0.0
    %945 = vmatpush2.msra.mxu0 0.0
    %946 = vmatprep.mubr.f32.mxu0 0.0
    %947 = vmatmul.mubr.f32.gmra.mxu0 %v877
    %v948 = vpop.f32.mrf.mxu0
    %v949 = vadd.f32 0.0, %v948
    %v950 = vpop.f32.mrf.mxu0
    %951 = vmatprep.mubr.f32.mxu0 0.0
    %952 = vmatmul.mubr.f32.gmra.mxu0 %v880
    %v953 = vpop.f32.mrf.mxu0
    %v954 = vadd.f32 0.0, %v953
    %v955 = vpop.f32.mrf.mxu0
    %956 = vdwg.mxu0
    %957 = vrot.lane.b32.xlu0 %v355, 32
    %v958 = vpop.permute.xlu0 %957
    %959 = vrot.lane.b32.xlu0 %v356, 32
    %v960 = vpop.permute.xlu0 %959
    %961 = vrot.lane.b32.xlu0 %v272, 32
    %v962 = vpop.permute.xlu0 %961
    %963 = vrot.lane.b32.xlu0 %v278, 32
    %v964 = vpop.permute.xlu0 %963
    %v965 = vsel %vm357, %v958, 0
    %v967 = vsel %vm357, %v960, 0
    %v969 = vsel %vm357, %v962, 0
    %v971 = vsel %vm357, %v964, 0
    %973 = vmatprep.subr.mxu0 0.0
    %974 = vmatpush1.xpose.msra.mxu0 0.0
    %975 = vmatprep.subr.mxu0 0.0
    %976 = vmatpush1.xpose.msra.mxu0 0.0
    %977 = vmatprep.subr.mxu0 0.0
    %978 = vmatpush1.xpose.msra.mxu0 0.0
    %979 = vmatprep.subr.mxu0 0.0
    %980 = vmatpush1.xpose.msra.mxu0 0.0
    %981 = vmatprep.subr.mxu0 0.0
    %982 = vmatpush1.xpose.msra.mxu0 0.0
    %983 = vmatprep.subr.mxu0 0.0
    %984 = vmatpush1.xpose.msra.mxu0 0.0
    %985 = vmatprep.subr.mxu0 0.0
    %986 = vmatpush1.xpose.msra.mxu0 0.0
    %987 = vmatprep.subr.mxu0 0.0
    %988 = vmatpush1.xpose.msra.mxu0 0.0
    %989 = vmatprep.subr.mxu0 0.0
    %990 = vmatpush1.xpose.msra.mxu0 0.0
    %991 = vmatprep.subr.mxu0 0.0
    %992 = vmatpush1.xpose.msra.mxu0 0.0
    %993 = vmatprep.subr.mxu0 0.0
    %994 = vmatpush1.xpose.msra.mxu0 0.0
    %995 = vmatprep.subr.mxu0 0.0
    %996 = vmatpush1.xpose.msra.mxu0 0.0
    %997 = vmatprep.subr.mxu0 0.0
    %998 = vmatpush1.xpose.msra.mxu0 0.0
    %999 = vmatprep.subr.mxu0 0.0
    %1000 = vmatpush1.xpose.msra.mxu0 0.0
    %1001 = vmatprep.subr.mxu0 0.0
    %1002 = vmatpush1.xpose.msra.mxu0 %v971
    %1003 = vmatprep.subr.mxu0 0.0
    %1004 = vmatpush1.xpose.msra.mxu0 %v969
    %1005 = vmatprep.subr.mxu0 0.0
    %1006 = vmatpush2.xpose.msra.mxu0 0.0
    %1007 = vmatprep.subr.mxu0 0.0
    %1008 = vmatpush2.xpose.msra.mxu0 0.0
    %1009 = vmatprep.subr.mxu0 0.0
    %1010 = vmatpush2.xpose.msra.mxu0 0.0
    %1011 = vmatprep.subr.mxu0 0.0
    %1012 = vmatpush2.xpose.msra.mxu0 0.0
    %1013 = vmatprep.subr.mxu0 0.0
    %1014 = vmatpush2.xpose.msra.mxu0 0.0
    %1015 = vmatprep.subr.mxu0 0.0
    %1016 = vmatpush2.xpose.msra.mxu0 0.0
    %1017 = vmatprep.subr.mxu0 0.0
    %1018 = vmatpush2.xpose.msra.mxu0 0.0
    %1019 = vmatprep.subr.mxu0 0.0
    %1020 = vmatpush2.xpose.msra.mxu0 0.0
    %1021 = vmatprep.subr.mxu0 0.0
    %1022 = vmatpush2.xpose.msra.mxu0 0.0
    %1023 = vmatprep.subr.mxu0 0.0
    %1024 = vmatpush2.xpose.msra.mxu0 0.0
    %1025 = vmatprep.subr.mxu0 0.0
    %1026 = vmatpush2.xpose.msra.mxu0 0.0
    %1027 = vmatprep.subr.mxu0 0.0
    %1028 = vmatpush2.xpose.msra.mxu0 0.0
    %1029 = vmatprep.subr.mxu0 0.0
    %1030 = vmatpush2.xpose.msra.mxu0 0.0
    %1031 = vmatprep.subr.mxu0 0.0
    %1032 = vmatpush2.xpose.msra.mxu0 0.0
    %1033 = vmatprep.subr.mxu0 0.0
    %1034 = vmatpush2.xpose.msra.mxu0 0.0
    %1035 = vmatprep.subr.mxu0 0.0
    %1036 = vmatpush2.xpose.msra.mxu0 0.0
    %1037 = vmatprep.mubr.f32.mxu0 0.0
    %1038 = vmatmul.mubr.f32.gmra.mxu0 %v965
    %v1039 = vpop.f32.mrf.mxu0
    %v1040 = vadd.f32 0.0, %v1039
    %v1041 = vpop.f32.mrf.mxu0
    %1042 = vmatprep.mubr.f32.mxu0 0.0
    %1043 = vmatmul.mubr.f32.gmra.mxu0 %v967
    %v1044 = vpop.f32.mrf.mxu0
    %v1045 = vadd.f32 0.0, %v1044
    %v1046 = vpop.f32.mrf.mxu0
    %1047 = vdwg.mxu0
    %v1048 = vsel %vm99, %v1040, -1e+30
    %v1049 = vsel %vm100, %v1045, -1e+30
    %v1050 = vsel %vm447, %v1048, -inf
    %1051 = vmax.xlane.f32.xlu0 %v1050
    %v1052 = vpop.xlane.xlu0 %1051
    %v1053 = vsel %vm447, %v1049, -inf
    %1054 = vmax.xlane.f32.xlu0 %v1053
    %v1055 = vpop.xlane.xlu0 %1054
    %v1056 = vsub.f32 %v1048, %v1052
    %v1057 = vsub.f32 %v1049, %v1055
    %v1058 = vmul.f32 %v1056, 1.442695
    %v1059 = vpow.pop %v1058
    %v1060 = vmul.f32 %v1057, 1.442695
    %v1061 = vpow.pop %v1060
    %v1062 = vsel %vm447, %v1059, 0.0
    %1063 = vadd.xlane.f32.xlu0 %v1062
    %v1064 = vpop.xlane.xlu0 %1063
    %v1065 = vsel %vm447, %v1061, 0.0
    %1066 = vadd.xlane.f32.xlu0 %v1065
    %v1067 = vpop.xlane.xlu0 %1066
    %v1068 = vrcp.pop %v1064
    %v1069 = vrcp.pop %v1067
    %v1070 = vmul.f32 %v1059, %v1068
    %v1071 = vmul.f32 %v1061, %v1069
    %1072 = vrot.lane.b32.xlu0 %v347, 32
    %v1073 = vpop.permute.xlu0 %1072
    %1074 = vrot.lane.b32.xlu0 %v352, 32
    %v1075 = vpop.permute.xlu0 %1074
    %v1079 = vsel %vm447, %v1070, 0
    %v1082 = vsel %vm447, %v1071, 0
    %1084 = vmatprep.subr.mxu0 0.0
    %1085 = vmatpush1.msra.mxu0 0.0
    %1086 = vmatprep.subr.mxu0 0.0
    %1087 = vmatpush1.msra.mxu0 0.0
    %1088 = vmatprep.subr.mxu0 0.0
    %1089 = vmatpush1.msra.mxu0 0.0
    %1090 = vmatprep.subr.mxu0 0.0
    %1091 = vmatpush1.msra.mxu0 0.0
    %1092 = vmatprep.subr.mxu0 0.0
    %1093 = vmatpush1.msra.mxu0 0.0
    %1094 = vmatprep.subr.mxu0 0.0
    %1095 = vmatpush1.msra.mxu0 0.0
    %1096 = vmatprep.subr.mxu0 0.0
    %1097 = vmatpush1.msra.mxu0 0.0
    %1098 = vmatprep.subr.mxu0 0.0
    %1099 = vmatpush1.msra.mxu0 0.0
    %1100 = vmatprep.subr.mxu0 0.0
    %1101 = vmatpush1.msra.mxu0 0.0
    %1102 = vmatprep.subr.mxu0 0.0
    %1103 = vmatpush1.msra.mxu0 0.0
    %1104 = vmatprep.subr.mxu0 0.0
    %1105 = vmatpush1.msra.mxu0 0.0
    %1106 = vmatprep.subr.mxu0 0.0
    %1107 = vmatpush1.msra.mxu0 0.0
    %1108 = vmatprep.subr.mxu0 0.0
    %1109 = vmatpush1.msra.mxu0 0.0
    %1110 = vmatprep.subr.mxu0 0.0
    %1111 = vmatpush1.msra.mxu0 0.0
    %1112 = vmatprep.subr.mxu0 0.0
    %1113 = vmatpush1.msra.mxu0 %v1075
    %1114 = vmatprep.subr.mxu0 0.0
    %1115 = vmatpush1.msra.mxu0 %v1073
    %1116 = vmatprep.subr.mxu0 0.0
    %1117 = vmatpush2.msra.mxu0 0.0
    %1118 = vmatprep.subr.mxu0 0.0
    %1119 = vmatpush2.msra.mxu0 0.0
    %1120 = vmatprep.subr.mxu0 0.0
    %1121 = vmatpush2.msra.mxu0 0.0
    %1122 = vmatprep.subr.mxu0 0.0
    %1123 = vmatpush2.msra.mxu0 0.0
    %1124 = vmatprep.subr.mxu0 0.0
    %1125 = vmatpush2.msra.mxu0 0.0
    %1126 = vmatprep.subr.mxu0 0.0
    %1127 = vmatpush2.msra.mxu0 0.0
    %1128 = vmatprep.subr.mxu0 0.0
    %1129 = vmatpush2.msra.mxu0 0.0
    %1130 = vmatprep.subr.mxu0 0.0
    %1131 = vmatpush2.msra.mxu0 0.0
    %1132 = vmatprep.subr.mxu0 0.0
    %1133 = vmatpush2.msra.mxu0 0.0
    %1134 = vmatprep.subr.mxu0 0.0
    %1135 = vmatpush2.msra.mxu0 0.0
    %1136 = vmatprep.subr.mxu0 0.0
    %1137 = vmatpush2.msra.mxu0 0.0
    %1138 = vmatprep.subr.mxu0 0.0
    %1139 = vmatpush2.msra.mxu0 0.0
    %1140 = vmatprep.subr.mxu0 0.0
    %1141 = vmatpush2.msra.mxu0 0.0
    %1142 = vmatprep.subr.mxu0 0.0
    %1143 = vmatpush2.msra.mxu0 0.0
    %1144 = vmatprep.subr.mxu0 0.0
    %1145 = vmatpush2.msra.mxu0 0.0
    %1146 = vmatprep.subr.mxu0 0.0
    %1147 = vmatpush2.msra.mxu0 0.0
    %1148 = vmatprep.mubr.f32.mxu0 0.0
    %1149 = vmatmul.mubr.f32.gmra.mxu0 %v1079
    %v1150 = vpop.f32.mrf.mxu0
    %v1151 = vadd.f32 0.0, %v1150
    %v1152 = vpop.f32.mrf.mxu0
    %1153 = vmatprep.mubr.f32.mxu0 0.0
    %1154 = vmatmul.mubr.f32.gmra.mxu0 %v1082
    %v1155 = vpop.f32.mrf.mxu0
    %v1156 = vadd.f32 0.0, %v1155
    %v1157 = vpop.f32.mrf.mxu0
    %1158 = vdwg.mxu0
    %1161 = vrot.lane.b32.xlu0 %v747, 32
    %v1162 = vpop.permute.xlu0 %1161
    %1163 = vrot.lane.b32.xlu0 %v752, 32
    %v1164 = vpop.permute.xlu0 %1163
    %1169 = vrot.lane.b32.xlu0 %v949, 64
    %v1170 = vpop.permute.xlu0 %1169
    %1171 = vrot.lane.b32.xlu0 %v954, 64
    %v1172 = vpop.permute.xlu0 %1171
    %1177 = vrot.lane.b32.xlu0 %v1151, 96
    %v1178 = vpop.permute.xlu0 %1177
    %1179 = vrot.lane.b32.xlu0 %v1156, 96
    %v1180 = vpop.permute.xlu0 %1179
    %v1183 = vsel %vm357, %v543, %v1162
    %v1184 = vsel %vm357, %v548, %v1164
    %vm1185 = vcmask 523264
    %v1186 = vsel %vm1185, %v1183, %v1170
    %v1187 = vsel %vm1185, %v1184, %v1172
    %vm1188 = vcmask 785408
    %v1189 = vsel %vm1188, %v1186, %v1178
    %v1190 = vsel %vm1188, %v1187, %v1180
    %v1191 = vld [vmem:[%s5] sm:$0xff]
    %v1192 = vld [vmem:[%s5 + $0x8] sm:$0xff]
    %v1193 = vld [vmem:[%s5 + $0x10] sm:$0xff]
    %v1194 = vld [vmem:[%s5 + $0x18] sm:$0xff]
    %v1195 = vld [vmem:[%s5 + $0x20] sm:$0xff]
    %v1196 = vld [vmem:[%s5 + $0x28] sm:$0xff]
    %v1197 = vld [vmem:[%s5 + $0x30] sm:$0xff]
    %v1198 = vld [vmem:[%s5 + $0x38] sm:$0xff]
    %v1199 = vld [vmem:[%s5 + $0x40] sm:$0xff]
    %v1200 = vld [vmem:[%s5 + $0x48] sm:$0xff]
    %v1201 = vld [vmem:[%s5 + $0x50] sm:$0xff]
    %v1202 = vld [vmem:[%s5 + $0x58] sm:$0xff]
    %v1203 = vld [vmem:[%s5 + $0x60] sm:$0xff]
    %v1204 = vld [vmem:[%s5 + $0x68] sm:$0xff]
    %v1205 = vld [vmem:[%s5 + $0x70] sm:$0xff]
    %v1206 = vld [vmem:[%s5 + $0x78] sm:$0xff]
    %v1207 = vld [vmem:[%s6] sm:$0x1]
    %v1208 = vlaneseq
    %v1209 = vshrl.u32 %v1208, 7
    %v1210 = vsub.s32 0, %v1209
    %v1211 = vrot.slane %v1207, %v1210
    %1212 = vmatprep.subr.mxu0 0.0
    %1213 = vmatpush1.msra.mxu0 %v1206
    %1214 = vmatprep.subr.mxu0 0.0
    %1215 = vmatpush1.msra.mxu0 %v1205
    %1216 = vmatprep.subr.mxu0 0.0
    %1217 = vmatpush1.msra.mxu0 %v1204
    %1218 = vmatprep.subr.mxu0 0.0
    %1219 = vmatpush1.msra.mxu0 %v1203
    %1220 = vmatprep.subr.mxu0 0.0
    %1221 = vmatpush1.msra.mxu0 %v1202
    %1222 = vmatprep.subr.mxu0 0.0
    %1223 = vmatpush1.msra.mxu0 %v1201
    %1224 = vmatprep.subr.mxu0 0.0
    %1225 = vmatpush1.msra.mxu0 %v1200
    %1226 = vmatprep.subr.mxu0 0.0
    %1227 = vmatpush1.msra.mxu0 %v1199
    %1228 = vmatprep.subr.mxu0 0.0
    %1229 = vmatpush1.msra.mxu0 %v1198
    %1230 = vmatprep.subr.mxu0 0.0
    %1231 = vmatpush1.msra.mxu0 %v1197
    %1232 = vmatprep.subr.mxu0 0.0
    %1233 = vmatpush1.msra.mxu0 %v1196
    %1234 = vmatprep.subr.mxu0 0.0
    %1235 = vmatpush1.msra.mxu0 %v1195
    %1236 = vmatprep.subr.mxu0 0.0
    %1237 = vmatpush1.msra.mxu0 %v1194
    %1238 = vmatprep.subr.mxu0 0.0
    %1239 = vmatpush1.msra.mxu0 %v1193
    %1240 = vmatprep.subr.mxu0 0.0
    %1241 = vmatpush1.msra.mxu0 %v1192
    %1242 = vmatprep.subr.mxu0 0.0
    %1243 = vmatpush1.msra.mxu0 %v1191
    %1244 = vmatprep.subr.mxu0 0.0
    %1245 = vmatpush2.msra.mxu0 0.0
    %1246 = vmatprep.subr.mxu0 0.0
    %1247 = vmatpush2.msra.mxu0 0.0
    %1248 = vmatprep.subr.mxu0 0.0
    %1249 = vmatpush2.msra.mxu0 0.0
    %1250 = vmatprep.subr.mxu0 0.0
    %1251 = vmatpush2.msra.mxu0 0.0
    %1252 = vmatprep.subr.mxu0 0.0
    %1253 = vmatpush2.msra.mxu0 0.0
    %1254 = vmatprep.subr.mxu0 0.0
    %1255 = vmatpush2.msra.mxu0 0.0
    %1256 = vmatprep.subr.mxu0 0.0
    %1257 = vmatpush2.msra.mxu0 0.0
    %1258 = vmatprep.subr.mxu0 0.0
    %1259 = vmatpush2.msra.mxu0 0.0
    %1260 = vmatprep.subr.mxu0 0.0
    %1261 = vmatpush2.msra.mxu0 0.0
    %1262 = vmatprep.subr.mxu0 0.0
    %1263 = vmatpush2.msra.mxu0 0.0
    %1264 = vmatprep.subr.mxu0 0.0
    %1265 = vmatpush2.msra.mxu0 0.0
    %1266 = vmatprep.subr.mxu0 0.0
    %1267 = vmatpush2.msra.mxu0 0.0
    %1268 = vmatprep.subr.mxu0 0.0
    %1269 = vmatpush2.msra.mxu0 0.0
    %1270 = vmatprep.subr.mxu0 0.0
    %1271 = vmatpush2.msra.mxu0 0.0
    %1272 = vmatprep.subr.mxu0 0.0
    %1273 = vmatpush2.msra.mxu0 0.0
    %1274 = vmatprep.subr.mxu0 0.0
    %1275 = vmatpush2.msra.mxu0 0.0
    %1276 = vmatprep.mubr.f32.mxu0 0.0
    %1277 = vmatmul.mubr.f32.gmra.mxu0 %v1189
    %v1278 = vpop.f32.mrf.mxu0
    %v1279 = vadd.f32 %v1211, %v1278
    %v1280 = vpop.f32.mrf.mxu0
    %1281 = vmatprep.mubr.f32.mxu0 0.0
    %1282 = vmatmul.mubr.f32.gmra.mxu0 %v1190
    %v1283 = vpop.f32.mrf.mxu0
    %v1284 = vadd.f32 %v1211, %v1283
    %v1285 = vpop.f32.mrf.mxu0
    %1286 = vdwg.mxu0
    %v1287 = vadd.f32 %v92, %v1279
    %v1288 = vadd.f32 %v93, %v1284
    %v1289 = vld [vmem:[%s7] sm:$0x1]
    %v1290 = vld [vmem:[%s8] sm:$0x1]
    %1291 = vadd.xlane.f32.xlu0 %v1287
    %v1292 = vpop.xlane.xlu0 %1291
    %1293 = vadd.xlane.f32.xlu0 %v1288
    %v1294 = vpop.xlane.xlu0 %1293
    %v1295 = vmul.f32 %v1292, %v107
    %v1296 = vmul.f32 %v1294, %v107
    %v1297 = vsub.f32 %v1287, %v1295
    %v1298 = vsub.f32 %v1288, %v1296
    %v1299 = vmul.f32 %v1297, %v1297
    %v1300 = vmul.f32 %v1298, %v1298
    %1301 = vadd.xlane.f32.xlu0 %v1299
    %v1302 = vpop.xlane.xlu0 %1301
    %1303 = vadd.xlane.f32.xlu0 %v1300
    %v1304 = vpop.xlane.xlu0 %1303
    %v1305 = vmul.f32 %v1302, %v107
    %v1306 = vmul.f32 %v1304, %v107
    %v1307 = vadd.f32 %v1305, 1e-05
    %v1308 = vadd.f32 %v1306, 1e-05
    %v1309 = vrsqrt.pop %v1307
    %v1310 = vrsqrt.pop %v1308
    %v1311 = vmul.f32 %v1297, %v1309
    %v1312 = vmul.f32 %v1298, %v1310
    %v1313 = vlaneseq
    %v1314 = vshrl.u32 %v1313, 7
    %v1315 = vsub.s32 0, %v1314
    %v1316 = vrot.slane %v1289, %v1315
    %v1317 = vmul.f32 %v1311, %v1316
    %v1318 = vmul.f32 %v1312, %v1316
    %v1319 = vlaneseq
    %v1320 = vshrl.u32 %v1319, 7
    %v1321 = vsub.s32 0, %v1320
    %v1322 = vrot.slane %v1290, %v1321
    %v1323 = vadd.f32 %v1317, %v1322
    %v1324 = vadd.f32 %v1318, %v1322
    %v1325 = vld [vmem:[#allocation5] sm:$0xff]
    %v1326 = vld [vmem:[#allocation5 + $0x8] sm:$0xff]
    %v1327 = vld [vmem:[#allocation5 + $0x10] sm:$0xff]
    %v1328 = vld [vmem:[#allocation5 + $0x18] sm:$0xff]
    %v1329 = vld [vmem:[#allocation5 + $0x20] sm:$0xff]
    %v1330 = vld [vmem:[#allocation5 + $0x28] sm:$0xff]
    %v1331 = vld [vmem:[#allocation5 + $0x30] sm:$0xff]
    %v1332 = vld [vmem:[#allocation5 + $0x38] sm:$0xff]
    %v1333 = vld [vmem:[#allocation5 + $0x40] sm:$0xff]
    %v1334 = vld [vmem:[#allocation5 + $0x48] sm:$0xff]
    %v1335 = vld [vmem:[#allocation5 + $0x50] sm:$0xff]
    %v1336 = vld [vmem:[#allocation5 + $0x58] sm:$0xff]
    %v1337 = vld [vmem:[#allocation5 + $0x60] sm:$0xff]
    %v1338 = vld [vmem:[#allocation5 + $0x68] sm:$0xff]
    %v1339 = vld [vmem:[#allocation5 + $0x70] sm:$0xff]
    %v1340 = vld [vmem:[#allocation5 + $0x78] sm:$0xff]
    %v1341 = vld [vmem:[#allocation5 + $0x80] sm:$0xff]
    %v1342 = vld [vmem:[#allocation5 + $0x88] sm:$0xff]
    %v1343 = vld [vmem:[#allocation5 + $0x90] sm:$0xff]
    %v1344 = vld [vmem:[#allocation5 + $0x98] sm:$0xff]
    %v1345 = vld [vmem:[#allocation5 + $0xa0] sm:$0xff]
    %v1346 = vld [vmem:[#allocation5 + $0xa8] sm:$0xff]
    %v1347 = vld [vmem:[#allocation5 + $0xb0] sm:$0xff]
    %v1348 = vld [vmem:[#allocation5 + $0xb8] sm:$0xff]
    %v1349 = vld [vmem:[#allocation5 + $0xc0] sm:$0xff]
    %v1350 = vld [vmem:[#allocation5 + $0xc8] sm:$0xff]
    %v1351 = vld [vmem:[#allocation5 + $0xd0] sm:$0xff]
    %v1352 = vld [vmem:[#allocation5 + $0xd8] sm:$0xff]
    %v1353 = vld [vmem:[#allocation5 + $0xe0] sm:$0xff]
    %v1354 = vld [vmem:[#allocation5 + $0xe8] sm:$0xff]
    %v1355 = vld [vmem:[#allocation5 + $0xf0] sm:$0xff]
    %v1356 = vld [vmem:[#allocation5 + $0xf8] sm:$0xff]
    %v1357 = vld [vmem:[%s10] ss:$2 sm:$0x3]
    %v1359 = vlaneseq
    %v1360 = vshrl.u32 %v1359, 7
    %v1361 = vsub.s32 0, %v1360
    %v1362 = vrot.slane %v1357, %v1361
    %v1363 = vlaneseq
    %v1364 = vshrl.u32 %v1363, 7
    %v1365 = vsub.s32 1, %v1364
    %v1366 = vrot.slane %v1357, %v1365
    %1369 = vmatprep.subr.mxu0 %v1356
    %1370 = vmatpush1.msra.mxu0 %v1355
    %1371 = vmatprep.subr.mxu0 %v1354
    %1372 = vmatpush1.msra.mxu0 %v1353
    %1373 = vmatprep.subr.mxu0 %v1352
    %1374 = vmatpush1.msra.mxu0 %v1351
    %1375 = vmatprep.subr.mxu0 %v1350
    %1376 = vmatpush1.msra.mxu0 %v1349
    %1377 = vmatprep.subr.mxu0 %v1348
    %1378 = vmatpush1.msra.mxu0 %v1347
    %1379 = vmatprep.subr.mxu0 %v1346
    %1380 = vmatpush1.msra.mxu0 %v1345
    %1381 = vmatprep.subr.mxu0 %v1344
    %1382 = vmatpush1.msra.mxu0 %v1343
    %1383 = vmatprep.subr.mxu0 %v1342
    %1384 = vmatpush1.msra.mxu0 %v1341
    %1385 = vmatprep.subr.mxu0 %v1340
    %1386 = vmatpush1.msra.mxu0 %v1339
    %1387 = vmatprep.subr.mxu0 %v1338
    %1388 = vmatpush1.msra.mxu0 %v1337
    %1389 = vmatprep.subr.mxu0 %v1336
    %1390 = vmatpush1.msra.mxu0 %v1335
    %1391 = vmatprep.subr.mxu0 %v1334
    %1392 = vmatpush1.msra.mxu0 %v1333
    %1393 = vmatprep.subr.mxu0 %v1332
    %1394 = vmatpush1.msra.mxu0 %v1331
    %1395 = vmatprep.subr.mxu0 %v1330
    %1396 = vmatpush1.msra.mxu0 %v1329
    %1397 = vmatprep.subr.mxu0 %v1328
    %1398 = vmatpush1.msra.mxu0 %v1327
    %1399 = vmatprep.subr.mxu0 %v1326
    %1400 = vmatpush1.msra.mxu0 %v1325
    %1401 = vmatprep.subr.mxu0 0.0
    %1402 = vmatpush2.msra.mxu0 0.0
    %1403 = vmatprep.subr.mxu0 0.0
    %1404 = vmatpush2.msra.mxu0 0.0
    %1405 = vmatprep.subr.mxu0 0.0
    %1406 = vmatpush2.msra.mxu0 0.0
    %1407 = vmatprep.subr.mxu0 0.0
    %1408 = vmatpush2.msra.mxu0 0.0
    %1409 = vmatprep.subr.mxu0 0.0
    %1410 = vmatpush2.msra.mxu0 0.0
    %1411 = vmatprep.subr.mxu0 0.0
    %1412 = vmatpush2.msra.mxu0 0.0
    %1413 = vmatprep.subr.mxu0 0.0
    %1414 = vmatpush2.msra.mxu0 0.0
    %1415 = vmatprep.subr.mxu0 0.0
    %1416 = vmatpush2.msra.mxu0 0.0
    %1417 = vmatprep.subr.mxu0 0.0
    %1418 = vmatpush2.msra.mxu0 0.0
    %1419 = vmatprep.subr.mxu0 0.0
    %1420 = vmatpush2.msra.mxu0 0.0
    %1421 = vmatprep.subr.mxu0 0.0
    %1422 = vmatpush2.msra.mxu0 0.0
    %1423 = vmatprep.subr.mxu0 0.0
    %1424 = vmatpush2.msra.mxu0 0.0
    %1425 = vmatprep.subr.mxu0 0.0
    %1426 = vmatpush2.msra.mxu0 0.0
    %1427 = vmatprep.subr.mxu0 0.0
    %1428 = vmatpush2.msra.mxu0 0.0
    %1429 = vmatprep.subr.mxu0 0.0
    %1430 = vmatpush2.msra.mxu0 0.0
    %1431 = vmatprep.subr.mxu0 0.0
    %1432 = vmatpush2.msra.mxu0 0.0
    %1433 = vmatprep.mubr.f32.mxu0 0.0
    %1434 = vmatmul.mubr.f32.gmra.mxu0 %v1323
    %v1435 = vpop.f32.mrf.mxu0
    %v1436 = vadd.f32 %v1362, %v1435
    %v1437 = vpop.f32.mrf.mxu0
    %v1438 = vadd.f32 %v1366, %v1437
    %1439 = vmatprep.mubr.f32.mxu0 0.0
    %1440 = vmatmul.mubr.f32.gmra.mxu0 %v1324
    %v1441 = vpop.f32.mrf.mxu0
    %v1442 = vadd.f32 %v1362, %v1441
    %v1443 = vpop.f32.mrf.mxu0
    %v1444 = vadd.f32 %v1366, %v1443
    %1445 = vdwg.mxu0
    %v1446 = vmax.f32 %v1436, 0.0
    %v1447 = vmax.f32 %v1438, 0.0
    %v1448 = vmax.f32 %v1442, 0.0
    %v1449 = vmax.f32 %v1444, 0.0
    %v1450 = vld [vmem:[#allocation7] sm:$0xff]
    %v1451 = vld [vmem:[#allocation7 + $0x8] sm:$0xff]
    %v1452 = vld [vmem:[#allocation7 + $0x10] sm:$0xff]
    %v1453 = vld [vmem:[#allocation7 + $0x18] sm:$0xff]
    %v1454 = vld [vmem:[#allocation7 + $0x20] sm:$0xff]
    %v1455 = vld [vmem:[#allocation7 + $0x28] sm:$0xff]
    %v1456 = vld [vmem:[#allocation7 + $0x30] sm:$0xff]
    %v1457 = vld [vmem:[#allocation7 + $0x38] sm:$0xff]
    %v1458 = vld [vmem:[#allocation7 + $0x40] sm:$0xff]
    %v1459 = vld [vmem:[#allocation7 + $0x48] sm:$0xff]
    %v1460 = vld [vmem:[#allocation7 + $0x50] sm:$0xff]
    %v1461 = vld [vmem:[#allocation7 + $0x58] sm:$0xff]
    %v1462 = vld [vmem:[#allocation7 + $0x60] sm:$0xff]
    %v1463 = vld [vmem:[#allocation7 + $0x68] sm:$0xff]
    %v1464 = vld [vmem:[#allocation7 + $0x70] sm:$0xff]
    %v1465 = vld [vmem:[#allocation7 + $0x78] sm:$0xff]
    %v1466 = vld [vmem:[#allocation7 + $0x80] sm:$0xff]
    %v1467 = vld [vmem:[#allocation7 + $0x88] sm:$0xff]
    %v1468 = vld [vmem:[#allocation7 + $0x90] sm:$0xff]
    %v1469 = vld [vmem:[#allocation7 + $0x98] sm:$0xff]
    %v1470 = vld [vmem:[#allocation7 + $0xa0] sm:$0xff]
    %v1471 = vld [vmem:[#allocation7 + $0xa8] sm:$0xff]
    %v1472 = vld [vmem:[#allocation7 + $0xb0] sm:$0xff]
    %v1473 = vld [vmem:[#allocation7 + $0xb8] sm:$0xff]
    %v1474 = vld [vmem:[#allocation7 + $0xc0] sm:$0xff]
    %v1475 = vld [vmem:[#allocation7 + $0xc8] sm:$0xff]
    %v1476 = vld [vmem:[#allocation7 + $0xd0] sm:$0xff]
    %v1477 = vld [vmem:[#allocation7 + $0xd8] sm:$0xff]
    %v1478 = vld [vmem:[#allocation7 + $0xe0] sm:$0xff]
    %v1479 = vld [vmem:[#allocation7 + $0xe8] sm:$0xff]
    %v1480 = vld [vmem:[#allocation7 + $0xf0] sm:$0xff]
    %v1481 = vld [vmem:[#allocation7 + $0xf8] sm:$0xff]
    %v1482 = vld [vmem:[%s12] sm:$0x1]
    %v1483 = vlaneseq
    %v1484 = vshrl.u32 %v1483, 7
    %v1485 = vsub.s32 0, %v1484
    %v1486 = vrot.slane %v1482, %v1485
    %1487 = vmatprep.subr.mxu0 0.0
    %1488 = vmatpush1.msra.mxu0 %v1465
    %1489 = vmatprep.subr.mxu0 0.0
    %1490 = vmatpush1.msra.mxu0 %v1464
    %1491 = vmatprep.subr.mxu0 0.0
    %1492 = vmatpush1.msra.mxu0 %v1463
    %1493 = vmatprep.subr.mxu0 0.0
    %1494 = vmatpush1.msra.mxu0 %v1462
    %1495 = vmatprep.subr.mxu0 0.0
    %1496 = vmatpush1.msra.mxu0 %v1461
    %1497 = vmatprep.subr.mxu0 0.0
    %1498 = vmatpush1.msra.mxu0 %v1460
    %1499 = vmatprep.subr.mxu0 0.0
    %1500 = vmatpush1.msra.mxu0 %v1459
    %1501 = vmatprep.subr.mxu0 0.0
    %1502 = vmatpush1.msra.mxu0 %v1458
    %1503 = vmatprep.subr.mxu0 0.0
    %1504 = vmatpush1.msra.mxu0 %v1457
    %1505 = vmatprep.subr.mxu0 0.0
    %1506 = vmatpush1.msra.mxu0 %v1456
    %1507 = vmatprep.subr.mxu0 0.0
    %1508 = vmatpush1.msra.mxu0 %v1455
    %1509 = vmatprep.subr.mxu0 0.0
    %1510 = vmatpush1.msra.mxu0 %v1454
    %1511 = vmatprep.subr.mxu0 0.0
    %1512 = vmatpush1.msra.mxu0 %v1453
    %1513 = vmatprep.subr.mxu0 0.0
    %1514 = vmatpush1.msra.mxu0 %v1452
    %1515 = vmatprep.subr.mxu0 0.0
    %1516 = vmatpush1.msra.mxu0 %v1451
    %1517 = vmatprep.subr.mxu0 0.0
    %1518 = vmatpush1.msra.mxu0 %v1450
    %1519 = vmatprep.subr.mxu0 0.0
    %1520 = vmatpush2.msra.mxu0 %v1481
    %1521 = vmatprep.subr.mxu0 0.0
    %1522 = vmatpush2.msra.mxu0 %v1480
    %1523 = vmatprep.subr.mxu0 0.0
    %1524 = vmatpush2.msra.mxu0 %v1479
    %1525 = vmatprep.subr.mxu0 0.0
    %1526 = vmatpush2.msra.mxu0 %v1478
    %1527 = vmatprep.subr.mxu0 0.0
    %1528 = vmatpush2.msra.mxu0 %v1477
    %1529 = vmatprep.subr.mxu0 0.0
    %1530 = vmatpush2.msra.mxu0 %v1476
    %1531 = vmatprep.subr.mxu0 0.0
    %1532 = vmatpush2.msra.mxu0 %v1475
    %1533 = vmatprep.subr.mxu0 0.0
    %1534 = vmatpush2.msra.mxu0 %v1474
    %1535 = vmatprep.subr.mxu0 0.0
    %1536 = vmatpush2.msra.mxu0 %v1473
    %1537 = vmatprep.subr.mxu0 0.0
    %1538 = vmatpush2.msra.mxu0 %v1472
    %1539 = vmatprep.subr.mxu0 0.0
    %1540 = vmatpush2.msra.mxu0 %v1471
    %1541 = vmatprep.subr.mxu0 0.0
    %1542 = vmatpush2.msra.mxu0 %v1470
    %1543 = vmatprep.subr.mxu0 0.0
    %1544 = vmatpush2.msra.mxu0 %v1469
    %1545 = vmatprep.subr.mxu0 0.0
    %1546 = vmatpush2.msra.mxu0 %v1468
    %1547 = vmatprep.subr.mxu0 0.0
    %1548 = vmatpush2.msra.mxu0 %v1467
    %1549 = vmatprep.subr.mxu0 0.0
    %1550 = vmatpush2.msra.mxu0 %v1466
    %1551 = vmatprep.mubr.f32.mxu0 %v1447
    %1552 = vmatmul.mubr.f32.gmra.mxu0 %v1446
    %v1553 = vpop.f32.mrf.mxu0
    %v1554 = vadd.f32 %v1486, %v1553
    %v1555 = vpop.f32.mrf.mxu0
    %1556 = vmatprep.mubr.f32.mxu0 %v1449
    %1557 = vmatmul.mubr.f32.gmra.mxu0 %v1448
    %v1558 = vpop.f32.mrf.mxu0
    %v1559 = vadd.f32 %v1486, %v1558
    %v1560 = vpop.f32.mrf.mxu0
    %1561 = vdwg.mxu0
    %v1562 = vadd.f32 %v1287, %v1554
    %v1563 = vadd.f32 %v1288, %v1559
    %v1564 = vld [vmem:[%s1 + $0x1] sm:$0x1]
    %v1565 = vld [vmem:[%s2 + $0x1] sm:$0x1]
    %1566 = vadd.xlane.f32.xlu0 %v1562
    %v1567 = vpop.xlane.xlu0 %1566
    %1568 = vadd.xlane.f32.xlu0 %v1563
    %v1569 = vpop.xlane.xlu0 %1568
    %v1570 = vmul.f32 %v1567, %v107
    %v1571 = vmul.f32 %v1569, %v107
    %v1572 = vsub.f32 %v1562, %v1570
    %v1573 = vsub.f32 %v1563, %v1571
    %v1574 = vmul.f32 %v1572, %v1572
    %v1575 = vmul.f32 %v1573, %v1573
    %1576 = vadd.xlane.f32.xlu0 %v1574
    %v1577 = vpop.xlane.xlu0 %1576
    %1578 = vadd.xlane.f32.xlu0 %v1575
    %v1579 = vpop.xlane.xlu0 %1578
    %v1580 = vmul.f32 %v1577, %v107
    %v1581 = vmul.f32 %v1579, %v107
    %v1582 = vadd.f32 %v1580, 1e-05
    %v1583 = vadd.f32 %v1581, 1e-05
    %v1584 = vrsqrt.pop %v1582
    %v1585 = vrsqrt.pop %v1583
    %v1586 = vmul.f32 %v1572, %v1584
    %v1587 = vmul.f32 %v1573, %v1585
    %v1588 = vlaneseq
    %v1589 = vshrl.u32 %v1588, 7
    %v1590 = vsub.s32 0, %v1589
    %v1591 = vrot.slane %v1564, %v1590
    %v1592 = vmul.f32 %v1586, %v1591
    %v1593 = vmul.f32 %v1587, %v1591
    %v1594 = vlaneseq
    %v1595 = vshrl.u32 %v1594, 7
    %v1596 = vsub.s32 0, %v1595
    %v1597 = vrot.slane %v1565, %v1596
    %v1598 = vadd.f32 %v1592, %v1597
    %v1599 = vadd.f32 %v1593, %v1597
    %s1600 = scalar_lea.vmem [#allocation2], 384
    %v1601 = vld [vmem:[%s1600] sm:$0xff]
    %v1602 = vld [vmem:[%s1600 + $0x8] sm:$0xff]
    %v1603 = vld [vmem:[%s1600 + $0x10] sm:$0xff]
    %v1604 = vld [vmem:[%s1600 + $0x18] sm:$0xff]
    %v1605 = vld [vmem:[%s1600 + $0x20] sm:$0xff]
    %v1606 = vld [vmem:[%s1600 + $0x28] sm:$0xff]
    %v1607 = vld [vmem:[%s1600 + $0x30] sm:$0xff]
    %v1608 = vld [vmem:[%s1600 + $0x38] sm:$0xff]
    %v1609 = vld [vmem:[%s1600 + $0x40] sm:$0xff]
    %v1610 = vld [vmem:[%s1600 + $0x48] sm:$0xff]
    %v1611 = vld [vmem:[%s1600 + $0x50] sm:$0xff]
    %v1612 = vld [vmem:[%s1600 + $0x58] sm:$0xff]
    %v1613 = vld [vmem:[%s1600 + $0x60] sm:$0xff]
    %v1614 = vld [vmem:[%s1600 + $0x68] sm:$0xff]
    %v1615 = vld [vmem:[%s1600 + $0x70] sm:$0xff]
    %v1616 = vld [vmem:[%s1600 + $0x78] sm:$0xff]
    %v1617 = vld [vmem:[%s1600 + $0x80] sm:$0xff]
    %v1618 = vld [vmem:[%s1600 + $0x88] sm:$0xff]
    %v1619 = vld [vmem:[%s1600 + $0x90] sm:$0xff]
    %v1620 = vld [vmem:[%s1600 + $0x98] sm:$0xff]
    %v1621 = vld [vmem:[%s1600 + $0xa0] sm:$0xff]
    %v1622 = vld [vmem:[%s1600 + $0xa8] sm:$0xff]
    %v1623 = vld [vmem:[%s1600 + $0xb0] sm:$0xff]
    %v1624 = vld [vmem:[%s1600 + $0xb8] sm:$0xff]
    %v1625 = vld [vmem:[%s1600 + $0xc0] sm:$0xff]
    %v1626 = vld [vmem:[%s1600 + $0xc8] sm:$0xff]
    %v1627 = vld [vmem:[%s1600 + $0xd0] sm:$0xff]
    %v1628 = vld [vmem:[%s1600 + $0xd8] sm:$0xff]
    %v1629 = vld [vmem:[%s1600 + $0xe0] sm:$0xff]
    %v1630 = vld [vmem:[%s1600 + $0xe8] sm:$0xff]
    %v1631 = vld [vmem:[%s1600 + $0xf0] sm:$0xff]
    %v1632 = vld [vmem:[%s1600 + $0xf8] sm:$0xff]
    %v1633 = vld [vmem:[%s1600 + $0x100] sm:$0xff]
    %v1634 = vld [vmem:[%s1600 + $0x108] sm:$0xff]
    %v1635 = vld [vmem:[%s1600 + $0x110] sm:$0xff]
    %v1636 = vld [vmem:[%s1600 + $0x118] sm:$0xff]
    %v1637 = vld [vmem:[%s1600 + $0x120] sm:$0xff]
    %v1638 = vld [vmem:[%s1600 + $0x128] sm:$0xff]
    %v1639 = vld [vmem:[%s1600 + $0x130] sm:$0xff]
    %v1640 = vld [vmem:[%s1600 + $0x138] sm:$0xff]
    %v1641 = vld [vmem:[%s1600 + $0x140] sm:$0xff]
    %v1642 = vld [vmem:[%s1600 + $0x148] sm:$0xff]
    %v1643 = vld [vmem:[%s1600 + $0x150] sm:$0xff]
    %v1644 = vld [vmem:[%s1600 + $0x158] sm:$0xff]
    %v1645 = vld [vmem:[%s1600 + $0x160] sm:$0xff]
    %v1646 = vld [vmem:[%s1600 + $0x168] sm:$0xff]
    %v1647 = vld [vmem:[%s1600 + $0x170] sm:$0xff]
    %v1648 = vld [vmem:[%s1600 + $0x178] sm:$0xff]
    %s1649 = scalar_lea.vmem %s4, 1
    %v1650 = vld [vmem:[%s1649] ss:$2 sm:$0x7]
    %v1652 = vlaneseq
    %v1653 = vshrl.u32 %v1652, 7
    %v1654 = vsub.s32 0, %v1653
    %v1655 = vrot.slane %v1650, %v1654
    %v1656 = vlaneseq
    %v1657 = vshrl.u32 %v1656, 7
    %v1658 = vsub.s32 1, %v1657
    %v1659 = vrot.slane %v1650, %v1658
    %v1660 = vlaneseq
    %v1661 = vshrl.u32 %v1660, 7
    %v1662 = vsub.s32 2, %v1661
    %v1663 = vrot.slane %v1650, %v1662
    %1667 = vmatprep.subr.mxu0 %v1647
    %1668 = vmatpush1.msra.mxu0 %v1646
    %1669 = vmatprep.subr.mxu0 %v1644
    %1670 = vmatpush1.msra.mxu0 %v1643
    %1671 = vmatprep.subr.mxu0 %v1641
    %1672 = vmatpush1.msra.mxu0 %v1640
    %1673 = vmatprep.subr.mxu0 %v1638
    %1674 = vmatpush1.msra.mxu0 %v1637
    %1675 = vmatprep.subr.mxu0 %v1635
    %1676 = vmatpush1.msra.mxu0 %v1634
    %1677 = vmatprep.subr.mxu0 %v1632
    %1678 = vmatpush1.msra.mxu0 %v1631
    %1679 = vmatprep.subr.mxu0 %v1629
    %1680 = vmatpush1.msra.mxu0 %v1628
    %1681 = vmatprep.subr.mxu0 %v1626
    %1682 = vmatpush1.msra.mxu0 %v1625
    %1683 = vmatprep.subr.mxu0 %v1623
    %1684 = vmatpush1.msra.mxu0 %v1622
    %1685 = vmatprep.subr.mxu0 %v1620
    %1686 = vmatpush1.msra.mxu0 %v1619
    %1687 = vmatprep.subr.mxu0 %v1617
    %1688 = vmatpush1.msra.mxu0 %v1616
    %1689 = vmatprep.subr.mxu0 %v1614
    %1690 = vmatpush1.msra.mxu0 %v1613
    %1691 = vmatprep.subr.mxu0 %v1611
    %1692 = vmatpush1.msra.mxu0 %v1610
    %1693 = vmatprep.subr.mxu0 %v1608
    %1694 = vmatpush1.msra.mxu0 %v1607
    %1695 = vmatprep.subr.mxu0 %v1605
    %1696 = vmatpush1.msra.mxu0 %v1604
    %1697 = vmatprep.subr.mxu0 %v1602
    %1698 = vmatpush1.msra.mxu0 %v1601
    %1699 = vmatprep.subr.mxu0 0.0
    %1700 = vmatpush2.msra.mxu0 0.0
    %1701 = vmatprep.subr.mxu0 0.0
    %1702 = vmatpush2.msra.mxu0 0.0
    %1703 = vmatprep.subr.mxu0 0.0
    %1704 = vmatpush2.msra.mxu0 0.0
    %1705 = vmatprep.subr.mxu0 0.0
    %1706 = vmatpush2.msra.mxu0 0.0
    %1707 = vmatprep.subr.mxu0 0.0
    %1708 = vmatpush2.msra.mxu0 0.0
    %1709 = vmatprep.subr.mxu0 0.0
    %1710 = vmatpush2.msra.mxu0 0.0
    %1711 = vmatprep.subr.mxu0 0.0
    %1712 = vmatpush2.msra.mxu0 0.0
    %1713 = vmatprep.subr.mxu0 0.0
    %1714 = vmatpush2.msra.mxu0 0.0
    %1715 = vmatprep.subr.mxu0 0.0
    %1716 = vmatpush2.msra.mxu0 0.0
    %1717 = vmatprep.subr.mxu0 0.0
    %1718 = vmatpush2.msra.mxu0 0.0
    %1719 = vmatprep.subr.mxu0 0.0
    %1720 = vmatpush2.msra.mxu0 0.0
    %1721 = vmatprep.subr.mxu0 0.0
    %1722 = vmatpush2.msra.mxu0 0.0
    %1723 = vmatprep.subr.mxu0 0.0
    %1724 = vmatpush2.msra.mxu0 0.0
    %1725 = vmatprep.subr.mxu0 0.0
    %1726 = vmatpush2.msra.mxu0 0.0
    %1727 = vmatprep.subr.mxu0 0.0
    %1728 = vmatpush2.msra.mxu0 0.0
    %1729 = vmatprep.subr.mxu0 0.0
    %1730 = vmatpush2.msra.mxu0 0.0
    %1731 = vmatprep.mubr.f32.mxu0 0.0
    %1732 = vmatmul.mubr.f32.gmra.mxu0 %v1598
    %v1733 = vpop.f32.mrf.mxu0
    %v1734 = vadd.f32 %v1655, %v1733
    %v1735 = vpop.f32.mrf.mxu0
    %v1736 = vadd.f32 %v1659, %v1735
    %1737 = vmatprep.mubr.f32.mxu0 0.0
    %1738 = vmatmul.mubr.f32.gmra.mxu0 %v1599
    %v1739 = vpop.f32.mrf.mxu0
    %v1740 = vadd.f32 %v1655, %v1739
    %v1741 = vpop.f32.mrf.mxu0
    %v1742 = vadd.f32 %v1659, %v1741
    %1743 = vdwg.mxu0
    %1744 = vmatprep.subr.mxu0 0.0
    %1745 = vmatpush1.msra.mxu0 %v1648
    %1746 = vmatprep.subr.mxu0 0.0
    %1747 = vmatpush1.msra.mxu0 %v1645
    %1748 = vmatprep.subr.mxu0 0.0
    %1749 = vmatpush1.msra.mxu0 %v1642
    %1750 = vmatprep.subr.mxu0 0.0
    %1751 = vmatpush1.msra.mxu0 %v1639
    %1752 = vmatprep.subr.mxu0 0.0
    %1753 = vmatpush1.msra.mxu0 %v1636
    %1754 = vmatprep.subr.mxu0 0.0
    %1755 = vmatpush1.msra.mxu0 %v1633
    %1756 = vmatprep.subr.mxu0 0.0
    %1757 = vmatpush1.msra.mxu0 %v1630
    %1758 = vmatprep.subr.mxu0 0.0
    %1759 = vmatpush1.msra.mxu0 %v1627
    %1760 = vmatprep.subr.mxu0 0.0
    %1761 = vmatpush1.msra.mxu0 %v1624
    %1762 = vmatprep.subr.mxu0 0.0
    %1763 = vmatpush1.msra.mxu0 %v1621
    %1764 = vmatprep.subr.mxu0 0.0
    %1765 = vmatpush1.msra.mxu0 %v1618
    %1766 = vmatprep.subr.mxu0 0.0
    %1767 = vmatpush1.msra.mxu0 %v1615
    %1768 = vmatprep.subr.mxu0 0.0
    %1769 = vmatpush1.msra.mxu0 %v1612
    %1770 = vmatprep.subr.mxu0 0.0
    %1771 = vmatpush1.msra.mxu0 %v1609
    %1772 = vmatprep.subr.mxu0 0.0
    %1773 = vmatpush1.msra.mxu0 %v1606
    %1774 = vmatprep.subr.mxu0 0.0
    %1775 = vmatpush1.msra.mxu0 %v1603
    %1776 = vmatprep.subr.mxu0 0.0
    %1777 = vmatpush2.msra.mxu0 0.0
    %1778 = vmatprep.subr.mxu0 0.0
    %1779 = vmatpush2.msra.mxu0 0.0
    %1780 = vmatprep.subr.mxu0 0.0
    %1781 = vmatpush2.msra.mxu0 0.0
    %1782 = vmatprep.subr.mxu0 0.0
    %1783 = vmatpush2.msra.mxu0 0.0
    %1784 = vmatprep.subr.mxu0 0.0
    %1785 = vmatpush2.msra.mxu0 0.0
    %1786 = vmatprep.subr.mxu0 0.0
    %1787 = vmatpush2.msra.mxu0 0.0
    %1788 = vmatprep.subr.mxu0 0.0
    %1789 = vmatpush2.msra.mxu0 0.0
    %1790 = vmatprep.subr.mxu0 0.0
    %1791 = vmatpush2.msra.mxu0 0.0
    %1792 = vmatprep.subr.mxu0 0.0
    %1793 = vmatpush2.msra.mxu0 0.0
    %1794 = vmatprep.subr.mxu0 0.0
    %1795 = vmatpush2.msra.mxu0 0.0
    %1796 = vmatprep.subr.mxu0 0.0
    %1797 = vmatpush2.msra.mxu0 0.0
    %1798 = vmatprep.subr.mxu0 0.0
    %1799 = vmatpush2.msra.mxu0 0.0
    %1800 = vmatprep.subr.mxu0 0.0
    %1801 = vmatpush2.msra.mxu0 0.0
    %1802 = vmatprep.subr.mxu0 0.0
    %1803 = vmatpush2.msra.mxu0 0.0
    %1804 = vmatprep.subr.mxu0 0.0
    %1805 = vmatpush2.msra.mxu0 0.0
    %1806 = vmatprep.subr.mxu0 0.0
    %1807 = vmatpush2.msra.mxu0 0.0
    %1808 = vmatprep.mubr.f32.mxu0 0.0
    %1809 = vmatmul.mubr.f32.gmra.mxu0 %v1598
    %v1810 = vpop.f32.mrf.mxu0
    %v1811 = vadd.f32 %v1663, %v1810
    %v1812 = vpop.f32.mrf.mxu0
    %1813 = vmatprep.mubr.f32.mxu0 0.0
    %1814 = vmatmul.mubr.f32.gmra.mxu0 %v1599
    %v1815 = vpop.f32.mrf.mxu0
    %v1816 = vadd.f32 %v1663, %v1815
    %v1817 = vpop.f32.mrf.mxu0
    %1818 = vdwg.mxu0
    %v1819 = vmul.f32 %v1734, 0.17677669
    %v1820 = vmul.f32 %v1740, 0.17677669
    %v1822 = vsel %vm357, %v1819, 0
    %v1825 = vsel %vm357, %v1820, 0
    %v1828 = vsel %vm357, %v1736, 0
    %v1831 = vsel %vm357, %v1742, 0
    %1833 = vmatprep.subr.mxu0 0.0
    %1834 = vmatpush1.xpose.msra.mxu0 0.0
    %1835 = vmatprep.subr.mxu0 0.0
    %1836 = vmatpush1.xpose.msra.mxu0 0.0
    %1837 = vmatprep.subr.mxu0 0.0
    %1838 = vmatpush1.xpose.msra.mxu0 0.0
    %1839 = vmatprep.subr.mxu0 0.0
    %1840 = vmatpush1.xpose.msra.mxu0 0.0
    %1841 = vmatprep.subr.mxu0 0.0
    %1842 = vmatpush1.xpose.msra.mxu0 0.0
    %1843 = vmatprep.subr.mxu0 0.0
    %1844 = vmatpush1.xpose.msra.mxu0 0.0
    %1845 = vmatprep.subr.mxu0 0.0
    %1846 = vmatpush1.xpose.msra.mxu0 0.0
    %1847 = vmatprep.subr.mxu0 0.0
    %1848 = vmatpush1.xpose.msra.mxu0 0.0
    %1849 = vmatprep.subr.mxu0 0.0
    %1850 = vmatpush1.xpose.msra.mxu0 0.0
    %1851 = vmatprep.subr.mxu0 0.0
    %1852 = vmatpush1.xpose.msra.mxu0 0.0
    %1853 = vmatprep.subr.mxu0 0.0
    %1854 = vmatpush1.xpose.msra.mxu0 0.0
    %1855 = vmatprep.subr.mxu0 0.0
    %1856 = vmatpush1.xpose.msra.mxu0 0.0
    %1857 = vmatprep.subr.mxu0 0.0
    %1858 = vmatpush1.xpose.msra.mxu0 0.0
    %1859 = vmatprep.subr.mxu0 0.0
    %1860 = vmatpush1.xpose.msra.mxu0 0.0
    %1861 = vmatprep.subr.mxu0 0.0
    %1862 = vmatpush1.xpose.msra.mxu0 %v1831
    %1863 = vmatprep.subr.mxu0 0.0
    %1864 = vmatpush1.xpose.msra.mxu0 %v1828
    %1865 = vmatprep.subr.mxu0 0.0
    %1866 = vmatpush2.xpose.msra.mxu0 0.0
    %1867 = vmatprep.subr.mxu0 0.0
    %1868 = vmatpush2.xpose.msra.mxu0 0.0
    %1869 = vmatprep.subr.mxu0 0.0
    %1870 = vmatpush2.xpose.msra.mxu0 0.0
    %1871 = vmatprep.subr.mxu0 0.0
    %1872 = vmatpush2.xpose.msra.mxu0 0.0
    %1873 = vmatprep.subr.mxu0 0.0
    %1874 = vmatpush2.xpose.msra.mxu0 0.0
    %1875 = vmatprep.subr.mxu0 0.0
    %1876 = vmatpush2.xpose.msra.mxu0 0.0
    %1877 = vmatprep.subr.mxu0 0.0
    %1878 = vmatpush2.xpose.msra.mxu0 0.0
    %1879 = vmatprep.subr.mxu0 0.0
    %1880 = vmatpush2.xpose.msra.mxu0 0.0
    %1881 = vmatprep.subr.mxu0 0.0
    %1882 = vmatpush2.xpose.msra.mxu0 0.0
    %1883 = vmatprep.subr.mxu0 0.0
    %1884 = vmatpush2.xpose.msra.mxu0 0.0
    %1885 = vmatprep.subr.mxu0 0.0
    %1886 = vmatpush2.xpose.msra.mxu0 0.0
    %1887 = vmatprep.subr.mxu0 0.0
    %1888 = vmatpush2.xpose.msra.mxu0 0.0
    %1889 = vmatprep.subr.mxu0 0.0
    %1890 = vmatpush2.xpose.msra.mxu0 0.0
    %1891 = vmatprep.subr.mxu0 0.0
    %1892 = vmatpush2.xpose.msra.mxu0 0.0
    %1893 = vmatprep.subr.mxu0 0.0
    %1894 = vmatpush2.xpose.msra.mxu0 0.0
    %1895 = vmatprep.subr.mxu0 0.0
    %1896 = vmatpush2.xpose.msra.mxu0 0.0
    %1897 = vmatprep.mubr.f32.mxu0 0.0
    %1898 = vmatmul.mubr.f32.gmra.mxu0 %v1822
    %v1899 = vpop.f32.mrf.mxu0
    %v1900 = vadd.f32 0.0, %v1899
    %v1901 = vpop.f32.mrf.mxu0
    %1902 = vmatprep.mubr.f32.mxu0 0.0
    %1903 = vmatmul.mubr.f32.gmra.mxu0 %v1825
    %v1904 = vpop.f32.mrf.mxu0
    %v1905 = vadd.f32 0.0, %v1904
    %v1906 = vpop.f32.mrf.mxu0
    %1907 = vdwg.mxu0
    %v1908 = vsel %vm99, %v1900, -1e+30
    %v1909 = vsel %vm100, %v1905, -1e+30
    %v1910 = vsel %vm447, %v1908, -inf
    %1911 = vmax.xlane.f32.xlu0 %v1910
    %v1912 = vpop.xlane.xlu0 %1911
    %v1913 = vsel %vm447, %v1909, -inf
    %1914 = vmax.xlane.f32.xlu0 %v1913
    %v1915 = vpop.xlane.xlu0 %1914
    %v1916 = vsub.f32 %v1908, %v1912
    %v1917 = vsub.f32 %v1909, %v1915
    %v1918 = vmul.f32 %v1916, 1.442695
    %v1919 = vpow.pop %v1918
    %v1920 = vmul.f32 %v1917, 1.442695
    %v1921 = vpow.pop %v1920
    %v1922 = vsel %vm447, %v1919, 0.0
    %1923 = vadd.xlane.f32.xlu0 %v1922
    %v1924 = vpop.xlane.xlu0 %1923
    %v1925 = vsel %vm447, %v1921, 0.0
    %1926 = vadd.xlane.f32.xlu0 %v1925
    %v1927 = vpop.xlane.xlu0 %1926
    %v1928 = vrcp.pop %v1924
    %v1929 = vrcp.pop %v1927
    %v1930 = vmul.f32 %v1919, %v1928
    %v1931 = vmul.f32 %v1921, %v1929
    %v1933 = vsel %vm447, %v1930, 0
    %v1936 = vsel %vm447, %v1931, 0
    %1938 = vmatprep.subr.mxu0 0.0
    %1939 = vmatpush1.msra.mxu0 0.0
    %1940 = vmatprep.subr.mxu0 0.0
    %1941 = vmatpush1.msra.mxu0 0.0
    %1942 = vmatprep.subr.mxu0 0.0
    %1943 = vmatpush1.msra.mxu0 0.0
    %1944 = vmatprep.subr.mxu0 0.0
    %1945 = vmatpush1.msra.mxu0 0.0
    %1946 = vmatprep.subr.mxu0 0.0
    %1947 = vmatpush1.msra.mxu0 0.0
    %1948 = vmatprep.subr.mxu0 0.0
    %1949 = vmatpush1.msra.mxu0 0.0
    %1950 = vmatprep.subr.mxu0 0.0
    %1951 = vmatpush1.msra.mxu0 0.0
    %1952 = vmatprep.subr.mxu0 0.0
    %1953 = vmatpush1.msra.mxu0 0.0
    %1954 = vmatprep.subr.mxu0 0.0
    %1955 = vmatpush1.msra.mxu0 0.0
    %1956 = vmatprep.subr.mxu0 0.0
    %1957 = vmatpush1.msra.mxu0 0.0
    %1958 = vmatprep.subr.mxu0 0.0
    %1959 = vmatpush1.msra.mxu0 0.0
    %1960 = vmatprep.subr.mxu0 0.0
    %1961 = vmatpush1.msra.mxu0 0.0
    %1962 = vmatprep.subr.mxu0 0.0
    %1963 = vmatpush1.msra.mxu0 0.0
    %1964 = vmatprep.subr.mxu0 0.0
    %1965 = vmatpush1.msra.mxu0 0.0
    %1966 = vmatprep.subr.mxu0 0.0
    %1967 = vmatpush1.msra.mxu0 %v1816
    %1968 = vmatprep.subr.mxu0 0.0
    %1969 = vmatpush1.msra.mxu0 %v1811
    %1970 = vmatprep.subr.mxu0 0.0
    %1971 = vmatpush2.msra.mxu0 0.0
    %1972 = vmatprep.subr.mxu0 0.0
    %1973 = vmatpush2.msra.mxu0 0.0
    %1974 = vmatprep.subr.mxu0 0.0
    %1975 = vmatpush2.msra.mxu0 0.0
    %1976 = vmatprep.subr.mxu0 0.0
    %1977 = vmatpush2.msra.mxu0 0.0
    %1978 = vmatprep.subr.mxu0 0.0
    %1979 = vmatpush2.msra.mxu0 0.0
    %1980 = vmatprep.subr.mxu0 0.0
    %1981 = vmatpush2.msra.mxu0 0.0
    %1982 = vmatprep.subr.mxu0 0.0
    %1983 = vmatpush2.msra.mxu0 0.0
    %1984 = vmatprep.subr.mxu0 0.0
    %1985 = vmatpush2.msra.mxu0 0.0
    %1986 = vmatprep.subr.mxu0 0.0
    %1987 = vmatpush2.msra.mxu0 0.0
    %1988 = vmatprep.subr.mxu0 0.0
    %1989 = vmatpush2.msra.mxu0 0.0
    %1990 = vmatprep.subr.mxu0 0.0
    %1991 = vmatpush2.msra.mxu0 0.0
    %1992 = vmatprep.subr.mxu0 0.0
    %1993 = vmatpush2.msra.mxu0 0.0
    %1994 = vmatprep.subr.mxu0 0.0
    %1995 = vmatpush2.msra.mxu0 0.0
    %1996 = vmatprep.subr.mxu0 0.0
    %1997 = vmatpush2.msra.mxu0 0.0
    %1998 = vmatprep.subr.mxu0 0.0
    %1999 = vmatpush2.msra.mxu0 0.0
    %2000 = vmatprep.subr.mxu0 0.0
    %2001 = vmatpush2.msra.mxu0 0.0
    %2002 = vmatprep.mubr.f32.mxu0 0.0
    %2003 = vmatmul.mubr.f32.gmra.mxu0 %v1933
    %v2004 = vpop.f32.mrf.mxu0
    %v2005 = vadd.f32 0.0, %v2004
    %v2006 = vpop.f32.mrf.mxu0
    %2007 = vmatprep.mubr.f32.mxu0 0.0
    %2008 = vmatmul.mubr.f32.gmra.mxu0 %v1936
    %v2009 = vpop.f32.mrf.mxu0
    %v2010 = vadd.f32 0.0, %v2009
    %v2011 = vpop.f32.mrf.mxu0
    %2012 = vdwg.mxu0
    %2013 = vrot.lane.b32.xlu0 %v1819, 96
    %v2014 = vpop.permute.xlu0 %2013
    %2015 = vrot.lane.b32.xlu0 %v1820, 96
    %v2016 = vpop.permute.xlu0 %2015
    %2017 = vrot.lane.b32.xlu0 %v1736, 96
    %v2018 = vpop.permute.xlu0 %2017
    %2019 = vrot.lane.b32.xlu0 %v1742, 96
    %v2020 = vpop.permute.xlu0 %2019
    %v2021 = vsel %vm357, %v2014, 0
    %v2023 = vsel %vm357, %v2016, 0
    %v2025 = vsel %vm357, %v2018, 0
    %v2027 = vsel %vm357, %v2020, 0
    %2029 = vmatprep.subr.mxu0 0.0
    %2030 = vmatpush1.xpose.msra.mxu0 0.0
    %2031 = vmatprep.subr.mxu0 0.0
    %2032 = vmatpush1.xpose.msra.mxu0 0.0
    %2033 = vmatprep.subr.mxu0 0.0
    %2034 = vmatpush1.xpose.msra.mxu0 0.0
    %2035 = vmatprep.subr.mxu0 0.0
    %2036 = vmatpush1.xpose.msra.mxu0 0.0
    %2037 = vmatprep.subr.mxu0 0.0
    %2038 = vmatpush1.xpose.msra.mxu0 0.0
    %2039 = vmatprep.subr.mxu0 0.0
    %2040 = vmatpush1.xpose.msra.mxu0 0.0
    %2041 = vmatprep.subr.mxu0 0.0
    %2042 = vmatpush1.xpose.msra.mxu0 0.0
    %2043 = vmatprep.subr.mxu0 0.0
    %2044 = vmatpush1.xpose.msra.mxu0 0.0
    %2045 = vmatprep.subr.mxu0 0.0
    %2046 = vmatpush1.xpose.msra.mxu0 0.0
    %2047 = vmatprep.subr.mxu0 0.0
    %2048 = vmatpush1.xpose.msra.mxu0 0.0
    %2049 = vmatprep.subr.mxu0 0.0
    %2050 = vmatpush1.xpose.msra.mxu0 0.0
    %2051 = vmatprep.subr.mxu0 0.0
    %2052 = vmatpush1.xpose.msra.mxu0 0.0
    %2053 = vmatprep.subr.mxu0 0.0
    %2054 = vmatpush1.xpose.msra.mxu0 0.0
    %2055 = vmatprep.subr.mxu0 0.0
    %2056 = vmatpush1.xpose.msra.mxu0 0.0
    %2057 = vmatprep.subr.mxu0 0.0
    %2058 = vmatpush1.xpose.msra.mxu0 %v2027
    %2059 = vmatprep.subr.mxu0 0.0
    %2060 = vmatpush1.xpose.msra.mxu0 %v2025
    %2061 = vmatprep.subr.mxu0 0.0
    %2062 = vmatpush2.xpose.msra.mxu0 0.0
    %2063 = vmatprep.subr.mxu0 0.0
    %2064 = vmatpush2.xpose.msra.mxu0 0.0
    %2065 = vmatprep.subr.mxu0 0.0
    %2066 = vmatpush2.xpose.msra.mxu0 0.0
    %2067 = vmatprep.subr.mxu0 0.0
    %2068 = vmatpush2.xpose.msra.mxu0 0.0
    %2069 = vmatprep.subr.mxu0 0.0
    %2070 = vmatpush2.xpose.msra.mxu0 0.0
    %2071 = vmatprep.subr.mxu0 0.0
    %2072 = vmatpush2.xpose.msra.mxu0 0.0
    %2073 = vmatprep.subr.mxu0 0.0
    %2074 = vmatpush2.xpose.msra.mxu0 0.0
    %2075 = vmatprep.subr.mxu0 0.0
    %2076 = vmatpush2.xpose.msra.mxu0 0.0
    %2077 = vmatprep.subr.mxu0 0.0
    %2078 = vmatpush2.xpose.msra.mxu0 0.0
    %2079 = vmatprep.subr.mxu0 0.0
    %2080 = vmatpush2.xpose.msra.mxu0 0.0
    %2081 = vmatprep.subr.mxu0 0.0
    %2082 = vmatpush2.xpose.msra.mxu0 0.0
    %2083 = vmatprep.subr.mxu0 0.0
    %2084 = vmatpush2.xpose.msra.mxu0 0.0
    %2085 = vmatprep.subr.mxu0 0.0
    %2086 = vmatpush2.xpose.msra.mxu0 0.0
    %2087 = vmatprep.subr.mxu0 0.0
    %2088 = vmatpush2.xpose.msra.mxu0 0.0
    %2089 = vmatprep.subr.mxu0 0.0
    %2090 = vmatpush2.xpose.msra.mxu0 0.0
    %2091 = vmatprep.subr.mxu0 0.0
    %2092 = vmatpush2.xpose.msra.mxu0 0.0
    %2093 = vmatprep.mubr.f32.mxu0 0.0
    %2094 = vmatmul.mubr.f32.gmra.mxu0 %v2021
    %v2095 = vpop.f32.mrf.mxu0
    %v2096 = vadd.f32 0.0, %v2095
    %v2097 = vpop.f32.mrf.mxu0
    %2098 = vmatprep.mubr.f32.mxu0 0.0
    %2099 = vmatmul.mubr.f32.gmra.mxu0 %v2023
    %v2100 = vpop.f32.mrf.mxu0
    %v2101 = vadd.f32 0.0, %v2100
    %v2102 = vpop.f32.mrf.mxu0
    %2103 = vdwg.mxu0
    %v2104 = vsel %vm99, %v2096, -1e+30
    %v2105 = vsel %vm100, %v2101, -1e+30
    %v2106 = vsel %vm447, %v2104, -inf
    %2107 = vmax.xlane.f32.xlu0 %v2106
    %v2108 = vpop.xlane.xlu0 %2107
    %v2109 = vsel %vm447, %v2105, -inf
    %2110 = vmax.xlane.f32.xlu0 %v2109
    %v2111 = vpop.xlane.xlu0 %2110
    %v2112 = vsub.f32 %v2104, %v2108
    %v2113 = vsub.f32 %v2105, %v2111
    %v2114 = vmul.f32 %v2112, 1.442695
    %v2115 = vpow.pop %v2114
    %v2116 = vmul.f32 %v2113, 1.442695
    %v2117 = vpow.pop %v2116
    %v2118 = vsel %vm447, %v2115, 0.0
    %2119 = vadd.xlane.f32.xlu0 %v2118
    %v2120 = vpop.xlane.xlu0 %2119
    %v2121 = vsel %vm447, %v2117, 0.0
    %2122 = vadd.xlane.f32.xlu0 %v2121
    %v2123 = vpop.xlane.xlu0 %2122
    %v2124 = vrcp.pop %v2120
    %v2125 = vrcp.pop %v2123
    %v2126 = vmul.f32 %v2115, %v2124
    %v2127 = vmul.f32 %v2117, %v2125
    %2130 = vrot.lane.b32.xlu0 %v1811, 96
    %v2131 = vpop.permute.xlu0 %2130
    %2132 = vrot.lane.b32.xlu0 %v1816, 96
    %v2133 = vpop.permute.xlu0 %2132
    %v2137 = vsel %vm447, %v2126, 0
    %v2140 = vsel %vm447, %v2127, 0
    %2142 = vmatprep.subr.mxu0 0.0
    %2143 = vmatpush1.msra.mxu0 0.0
    %2144 = vmatprep.subr.mxu0 0.0
    %2145 = vmatpush1.msra.mxu0 0.0
    %2146 = vmatprep.subr.mxu0 0.0
    %2147 = vmatpush1.msra.mxu0 0.0
    %2148 = vmatprep.subr.mxu0 0.0
    %2149 = vmatpush1.msra.mxu0 0.0
    %2150 = vmatprep.subr.mxu0 0.0
    %2151 = vmatpush1.msra.mxu0 0.0
    %2152 = vmatprep.subr.mxu0 0.0
    %2153 = vmatpush1.msra.mxu0 0.0
    %2154 = vmatprep.subr.mxu0 0.0
    %2155 = vmatpush1.msra.mxu0 0.0
    %2156 = vmatprep.subr.mxu0 0.0
    %2157 = vmatpush1.msra.mxu0 0.0
    %2158 = vmatprep.subr.mxu0 0.0
    %2159 = vmatpush1.msra.mxu0 0.0
    %2160 = vmatprep.subr.mxu0 0.0
    %2161 = vmatpush1.msra.mxu0 0.0
    %2162 = vmatprep.subr.mxu0 0.0
    %2163 = vmatpush1.msra.mxu0 0.0
    %2164 = vmatprep.subr.mxu0 0.0
    %2165 = vmatpush1.msra.mxu0 0.0
    %2166 = vmatprep.subr.mxu0 0.0
    %2167 = vmatpush1.msra.mxu0 0.0
    %2168 = vmatprep.subr.mxu0 0.0
    %2169 = vmatpush1.msra.mxu0 0.0
    %2170 = vmatprep.subr.mxu0 0.0
    %2171 = vmatpush1.msra.mxu0 %v2133
    %2172 = vmatprep.subr.mxu0 0.0
    %2173 = vmatpush1.msra.mxu0 %v2131
    %2174 = vmatprep.subr.mxu0 0.0
    %2175 = vmatpush2.msra.mxu0 0.0
    %2176 = vmatprep.subr.mxu0 0.0
    %2177 = vmatpush2.msra.mxu0 0.0
    %2178 = vmatprep.subr.mxu0 0.0
    %2179 = vmatpush2.msra.mxu0 0.0
    %2180 = vmatprep.subr.mxu0 0.0
    %2181 = vmatpush2.msra.mxu0 0.0
    %2182 = vmatprep.subr.mxu0 0.0
    %2183 = vmatpush2.msra.mxu0 0.0
    %2184 = vmatprep.subr.mxu0 0.0
    %2185 = vmatpush2.msra.mxu0 0.0
    %2186 = vmatprep.subr.mxu0 0.0
    %2187 = vmatpush2.msra.mxu0 0.0
    %2188 = vmatprep.subr.mxu0 0.0
    %2189 = vmatpush2.msra.mxu0 0.0
    %2190 = vmatprep.subr.mxu0 0.0
    %2191 = vmatpush2.msra.mxu0 0.0
    %2192 = vmatprep.subr.mxu0 0.0
    %2193 = vmatpush2.msra.mxu0 0.0
    %2194 = vmatprep.subr.mxu0 0.0
    %2195 = vmatpush2.msra.mxu0 0.0
    %2196 = vmatprep.subr.mxu0 0.0
    %2197 = vmatpush2.msra.mxu0 0.0
    %2198 = vmatprep.subr.mxu0 0.0
    %2199 = vmatpush2.msra.mxu0 0.0
    %2200 = vmatprep.subr.mxu0 0.0
    %2201 = vmatpush2.msra.mxu0 0.0
    %2202 = vmatprep.subr.mxu0 0.0
    %2203 = vmatpush2.msra.mxu0 0.0
    %2204 = vmatprep.subr.mxu0 0.0
    %2205 = vmatpush2.msra.mxu0 0.0
    %2206 = vmatprep.mubr.f32.mxu0 0.0
    %2207 = vmatmul.mubr.f32.gmra.mxu0 %v2137
    %v2208 = vpop.f32.mrf.mxu0
    %v2209 = vadd.f32 0.0, %v2208
    %v2210 = vpop.f32.mrf.mxu0
    %2211 = vmatprep.mubr.f32.mxu0 0.0
    %2212 = vmatmul.mubr.f32.gmra.mxu0 %v2140
    %v2213 = vpop.f32.mrf.mxu0
    %v2214 = vadd.f32 0.0, %v2213
    %v2215 = vpop.f32.mrf.mxu0
    %2216 = vdwg.mxu0
    %2217 = vrot.lane.b32.xlu0 %v1819, 64
    %v2218 = vpop.permute.xlu0 %2217
    %2219 = vrot.lane.b32.xlu0 %v1820, 64
    %v2220 = vpop.permute.xlu0 %2219
    %2221 = vrot.lane.b32.xlu0 %v1736, 64
    %v2222 = vpop.permute.xlu0 %2221
    %2223 = vrot.lane.b32.xlu0 %v1742, 64
    %v2224 = vpop.permute.xlu0 %2223
    %v2225 = vsel %vm357, %v2218, 0
    %v2227 = vsel %vm357, %v2220, 0
    %v2229 = vsel %vm357, %v2222, 0
    %v2231 = vsel %vm357, %v2224, 0
    %2233 = vmatprep.subr.mxu0 0.0
    %2234 = vmatpush1.xpose.msra.mxu0 0.0
    %2235 = vmatprep.subr.mxu0 0.0
    %2236 = vmatpush1.xpose.msra.mxu0 0.0
    %2237 = vmatprep.subr.mxu0 0.0
    %2238 = vmatpush1.xpose.msra.mxu0 0.0
    %2239 = vmatprep.subr.mxu0 0.0
    %2240 = vmatpush1.xpose.msra.mxu0 0.0
    %2241 = vmatprep.subr.mxu0 0.0
    %2242 = vmatpush1.xpose.msra.mxu0 0.0
    %2243 = vmatprep.subr.mxu0 0.0
    %2244 = vmatpush1.xpose.msra.mxu0 0.0
    %2245 = vmatprep.subr.mxu0 0.0
    %2246 = vmatpush1.xpose.msra.mxu0 0.0
    %2247 = vmatprep.subr.mxu0 0.0
    %2248 = vmatpush1.xpose.msra.mxu0 0.0
    %2249 = vmatprep.subr.mxu0 0.0
    %2250 = vmatpush1.xpose.msra.mxu0 0.0
    %2251 = vmatprep.subr.mxu0 0.0
    %2252 = vmatpush1.xpose.msra.mxu0 0.0
    %2253 = vmatprep.subr.mxu0 0.0
    %2254 = vmatpush1.xpose.msra.mxu0 0.0
    %2255 = vmatprep.subr.mxu0 0.0
    %2256 = vmatpush1.xpose.msra.mxu0 0.0
    %2257 = vmatprep.subr.mxu0 0.0
    %2258 = vmatpush1.xpose.msra.mxu0 0.0
    %2259 = vmatprep.subr.mxu0 0.0
    %2260 = vmatpush1.xpose.msra.mxu0 0.0
    %2261 = vmatprep.subr.mxu0 0.0
    %2262 = vmatpush1.xpose.msra.mxu0 %v2231
    %2263 = vmatprep.subr.mxu0 0.0
    %2264 = vmatpush1.xpose.msra.mxu0 %v2229
    %2265 = vmatprep.subr.mxu0 0.0
    %2266 = vmatpush2.xpose.msra.mxu0 0.0
    %2267 = vmatprep.subr.mxu0 0.0
    %2268 = vmatpush2.xpose.msra.mxu0 0.0
    %2269 = vmatprep.subr.mxu0 0.0
    %2270 = vmatpush2.xpose.msra.mxu0 0.0
    %2271 = vmatprep.subr.mxu0 0.0
    %2272 = vmatpush2.xpose.msra.mxu0 0.0
    %2273 = vmatprep.subr.mxu0 0.0
    %2274 = vmatpush2.xpose.msra.mxu0 0.0
    %2275 = vmatprep.subr.mxu0 0.0
    %2276 = vmatpush2.xpose.msra.mxu0 0.0
    %2277 = vmatprep.subr.mxu0 0.0
    %2278 = vmatpush2.xpose.msra.mxu0 0.0
    %2279 = vmatprep.subr.mxu0 0.0
    %2280 = vmatpush2.xpose.msra.mxu0 0.0
    %2281 = vmatprep.subr.mxu0 0.0
    %2282 = vmatpush2.xpose.msra.mxu0 0.0
    %2283 = vmatprep.subr.mxu0 0.0
    %2284 = vmatpush2.xpose.msra.mxu0 0.0
    %2285 = vmatprep.subr.mxu0 0.0
    %2286 = vmatpush2.xpose.msra.mxu0 0.0
    %2287 = vmatprep.subr.mxu0 0.0
    %2288 = vmatpush2.xpose.msra.mxu0 0.0
    %2289 = vmatprep.subr.mxu0 0.0
    %2290 = vmatpush2.xpose.msra.mxu0 0.0
    %2291 = vmatprep.subr.mxu0 0.0
    %2292 = vmatpush2.xpose.msra.mxu0 0.0
    %2293 = vmatprep.subr.mxu0 0.0
    %2294 = vmatpush2.xpose.msra.mxu0 0.0
    %2295 = vmatprep.subr.mxu0 0.0
    %2296 = vmatpush2.xpose.msra.mxu0 0.0
    %2297 = vmatprep.mubr.f32.mxu0 0.0
    %2298 = vmatmul.mubr.f32.gmra.mxu0 %v2225
    %v2299 = vpop.f32.mrf.mxu0
    %v2300 = vadd.f32 0.0, %v2299
    %v2301 = vpop.f32.mrf.mxu0
    %2302 = vmatprep.mubr.f32.mxu0 0.0
    %2303 = vmatmul.mubr.f32.gmra.mxu0 %v2227
    %v2304 = vpop.f32.mrf.mxu0
    %v2305 = vadd.f32 0.0, %v2304
    %v2306 = vpop.f32.mrf.mxu0
    %2307 = vdwg.mxu0
    %v2308 = vsel %vm99, %v2300, -1e+30
    %v2309 = vsel %vm100, %v2305, -1e+30
    %v2310 = vsel %vm447, %v2308, -inf
    %2311 = vmax.xlane.f32.xlu0 %v2310
    %v2312 = vpop.xlane.xlu0 %2311
    %v2313 = vsel %vm447, %v2309, -inf
    %2314 = vmax.xlane.f32.xlu0 %v2313
    %v2315 = vpop.xlane.xlu0 %2314
    %v2316 = vsub.f32 %v2308, %v2312
    %v2317 = vsub.f32 %v2309, %v2315
    %v2318 = vmul.f32 %v2316, 1.442695
    %v2319 = vpow.pop %v2318
    %v2320 = vmul.f32 %v2317, 1.442695
    %v2321 = vpow.pop %v2320
    %v2322 = vsel %vm447, %v2319, 0.0
    %2323 = vadd.xlane.f32.xlu0 %v2322
    %v2324 = vpop.xlane.xlu0 %2323
    %v2325 = vsel %vm447, %v2321, 0.0
    %2326 = vadd.xlane.f32.xlu0 %v2325
    %v2327 = vpop.xlane.xlu0 %2326
    %v2328 = vrcp.pop %v2324
    %v2329 = vrcp.pop %v2327
    %v2330 = vmul.f32 %v2319, %v2328
    %v2331 = vmul.f32 %v2321, %v2329
    %2332 = vrot.lane.b32.xlu0 %v1811, 64
    %v2333 = vpop.permute.xlu0 %2332
    %2334 = vrot.lane.b32.xlu0 %v1816, 64
    %v2335 = vpop.permute.xlu0 %2334
    %v2339 = vsel %vm447, %v2330, 0
    %v2342 = vsel %vm447, %v2331, 0
    %2344 = vmatprep.subr.mxu0 0.0
    %2345 = vmatpush1.msra.mxu0 0.0
    %2346 = vmatprep.subr.mxu0 0.0
    %2347 = vmatpush1.msra.mxu0 0.0
    %2348 = vmatprep.subr.mxu0 0.0
    %2349 = vmatpush1.msra.mxu0 0.0
    %2350 = vmatprep.subr.mxu0 0.0
    %2351 = vmatpush1.msra.mxu0 0.0
    %2352 = vmatprep.subr.mxu0 0.0
    %2353 = vmatpush1.msra.mxu0 0.0
    %2354 = vmatprep.subr.mxu0 0.0
    %2355 = vmatpush1.msra.mxu0 0.0
    %2356 = vmatprep.subr.mxu0 0.0
    %2357 = vmatpush1.msra.mxu0 0.0
    %2358 = vmatprep.subr.mxu0 0.0
    %2359 = vmatpush1.msra.mxu0 0.0
    %2360 = vmatprep.subr.mxu0 0.0
    %2361 = vmatpush1.msra.mxu0 0.0
    %2362 = vmatprep.subr.mxu0 0.0
    %2363 = vmatpush1.msra.mxu0 0.0
    %2364 = vmatprep.subr.mxu0 0.0
    %2365 = vmatpush1.msra.mxu0 0.0
    %2366 = vmatprep.subr.mxu0 0.0
    %2367 = vmatpush1.msra.mxu0 0.0
    %2368 = vmatprep.subr.mxu0 0.0
    %2369 = vmatpush1.msra.mxu0 0.0
    %2370 = vmatprep.subr.mxu0 0.0
    %2371 = vmatpush1.msra.mxu0 0.0
    %2372 = vmatprep.subr.mxu0 0.0
    %2373 = vmatpush1.msra.mxu0 %v2335
    %2374 = vmatprep.subr.mxu0 0.0
    %2375 = vmatpush1.msra.mxu0 %v2333
    %2376 = vmatprep.subr.mxu0 0.0
    %2377 = vmatpush2.msra.mxu0 0.0
    %2378 = vmatprep.subr.mxu0 0.0
    %2379 = vmatpush2.msra.mxu0 0.0
    %2380 = vmatprep.subr.mxu0 0.0
    %2381 = vmatpush2.msra.mxu0 0.0
    %2382 = vmatprep.subr.mxu0 0.0
    %2383 = vmatpush2.msra.mxu0 0.0
    %2384 = vmatprep.subr.mxu0 0.0
    %2385 = vmatpush2.msra.mxu0 0.0
    %2386 = vmatprep.subr.mxu0 0.0
    %2387 = vmatpush2.msra.mxu0 0.0
    %2388 = vmatprep.subr.mxu0 0.0
    %2389 = vmatpush2.msra.mxu0 0.0
    %2390 = vmatprep.subr.mxu0 0.0
    %2391 = vmatpush2.msra.mxu0 0.0
    %2392 = vmatprep.subr.mxu0 0.0
    %2393 = vmatpush2.msra.mxu0 0.0
    %2394 = vmatprep.subr.mxu0 0.0
    %2395 = vmatpush2.msra.mxu0 0.0
    %2396 = vmatprep.subr.mxu0 0.0
    %2397 = vmatpush2.msra.mxu0 0.0
    %2398 = vmatprep.subr.mxu0 0.0
    %2399 = vmatpush2.msra.mxu0 0.0
    %2400 = vmatprep.subr.mxu0 0.0
    %2401 = vmatpush2.msra.mxu0 0.0
    %2402 = vmatprep.subr.mxu0 0.0
    %2403 = vmatpush2.msra.mxu0 0.0
    %2404 = vmatprep.subr.mxu0 0.0
    %2405 = vmatpush2.msra.mxu0 0.0
    %2406 = vmatprep.subr.mxu0 0.0
    %2407 = vmatpush2.msra.mxu0 0.0
    %2408 = vmatprep.mubr.f32.mxu0 0.0
    %2409 = vmatmul.mubr.f32.gmra.mxu0 %v2339
    %v2410 = vpop.f32.mrf.mxu0
    %v2411 = vadd.f32 0.0, %v2410
    %v2412 = vpop.f32.mrf.mxu0
    %2413 = vmatprep.mubr.f32.mxu0 0.0
    %2414 = vmatmul.mubr.f32.gmra.mxu0 %v2342
    %v2415 = vpop.f32.mrf.mxu0
    %v2416 = vadd.f32 0.0, %v2415
    %v2417 = vpop.f32.mrf.mxu0
    %2418 = vdwg.mxu0
    %2419 = vrot.lane.b32.xlu0 %v1819, 32
    %v2420 = vpop.permute.xlu0 %2419
    %2421 = vrot.lane.b32.xlu0 %v1820, 32
    %v2422 = vpop.permute.xlu0 %2421
    %2423 = vrot.lane.b32.xlu0 %v1736, 32
    %v2424 = vpop.permute.xlu0 %2423
    %2425 = vrot.lane.b32.xlu0 %v1742, 32
    %v2426 = vpop.permute.xlu0 %2425
    %v2427 = vsel %vm357, %v2420, 0
    %v2429 = vsel %vm357, %v2422, 0
    %v2431 = vsel %vm357, %v2424, 0
    %v2433 = vsel %vm357, %v2426, 0
    %2435 = vmatprep.subr.mxu0 0.0
    %2436 = vmatpush1.xpose.msra.mxu0 0.0
    %2437 = vmatprep.subr.mxu0 0.0
    %2438 = vmatpush1.xpose.msra.mxu0 0.0
    %2439 = vmatprep.subr.mxu0 0.0
    %2440 = vmatpush1.xpose.msra.mxu0 0.0
    %2441 = vmatprep.subr.mxu0 0.0
    %2442 = vmatpush1.xpose.msra.mxu0 0.0
    %2443 = vmatprep.subr.mxu0 0.0
    %2444 = vmatpush1.xpose.msra.mxu0 0.0
    %2445 = vmatprep.subr.mxu0 0.0
    %2446 = vmatpush1.xpose.msra.mxu0 0.0
    %2447 = vmatprep.subr.mxu0 0.0
    %2448 = vmatpush1.xpose.msra.mxu0 0.0
    %2449 = vmatprep.subr.mxu0 0.0
    %2450 = vmatpush1.xpose.msra.mxu0 0.0
    %2451 = vmatprep.subr.mxu0 0.0
    %2452 = vmatpush1.xpose.msra.mxu0 0.0
    %2453 = vmatprep.subr.mxu0 0.0
    %2454 = vmatpush1.xpose.msra.mxu0 0.0
    %2455 = vmatprep.subr.mxu0 0.0
    %2456 = vmatpush1.xpose.msra.mxu0 0.0
    %2457 = vmatprep.subr.mxu0 0.0
    %2458 = vmatpush1.xpose.msra.mxu0 0.0
    %2459 = vmatprep.subr.mxu0 0.0
    %2460 = vmatpush1.xpose.msra.mxu0 0.0
    %2461 = vmatprep.subr.mxu0 0.0
    %2462 = vmatpush1.xpose.msra.mxu0 0.0
    %2463 = vmatprep.subr.mxu0 0.0
    %2464 = vmatpush1.xpose.msra.mxu0 %v2433
    %2465 = vmatprep.subr.mxu0 0.0
    %2466 = vmatpush1.xpose.msra.mxu0 %v2431
    %2467 = vmatprep.subr.mxu0 0.0
    %2468 = vmatpush2.xpose.msra.mxu0 0.0
    %2469 = vmatprep.subr.mxu0 0.0
    %2470 = vmatpush2.xpose.msra.mxu0 0.0
    %2471 = vmatprep.subr.mxu0 0.0
    %2472 = vmatpush2.xpose.msra.mxu0 0.0
    %2473 = vmatprep.subr.mxu0 0.0
    %2474 = vmatpush2.xpose.msra.mxu0 0.0
    %2475 = vmatprep.subr.mxu0 0.0
    %2476 = vmatpush2.xpose.msra.mxu0 0.0
    %2477 = vmatprep.subr.mxu0 0.0
    %2478 = vmatpush2.xpose.msra.mxu0 0.0
    %2479 = vmatprep.subr.mxu0 0.0
    %2480 = vmatpush2.xpose.msra.mxu0 0.0
    %2481 = vmatprep.subr.mxu0 0.0
    %2482 = vmatpush2.xpose.msra.mxu0 0.0
    %2483 = vmatprep.subr.mxu0 0.0
    %2484 = vmatpush2.xpose.msra.mxu0 0.0
    %2485 = vmatprep.subr.mxu0 0.0
    %2486 = vmatpush2.xpose.msra.mxu0 0.0
    %2487 = vmatprep.subr.mxu0 0.0
    %2488 = vmatpush2.xpose.msra.mxu0 0.0
    %2489 = vmatprep.subr.mxu0 0.0
    %2490 = vmatpush2.xpose.msra.mxu0 0.0
    %2491 = vmatprep.subr.mxu0 0.0
    %2492 = vmatpush2.xpose.msra.mxu0 0.0
    %2493 = vmatprep.subr.mxu0 0.0
    %2494 = vmatpush2.xpose.msra.mxu0 0.0
    %2495 = vmatprep.subr.mxu0 0.0
    %2496 = vmatpush2.xpose.msra.mxu0 0.0
    %2497 = vmatprep.subr.mxu0 0.0
    %2498 = vmatpush2.xpose.msra.mxu0 0.0
    %2499 = vmatprep.mubr.f32.mxu0 0.0
    %2500 = vmatmul.mubr.f32.gmra.mxu0 %v2427
    %v2501 = vpop.f32.mrf.mxu0
    %v2502 = vadd.f32 0.0, %v2501
    %v2503 = vpop.f32.mrf.mxu0
    %2504 = vmatprep.mubr.f32.mxu0 0.0
    %2505 = vmatmul.mubr.f32.gmra.mxu0 %v2429
    %v2506 = vpop.f32.mrf.mxu0
    %v2507 = vadd.f32 0.0, %v2506
    %v2508 = vpop.f32.mrf.mxu0
    %2509 = vdwg.mxu0
    %v2510 = vsel %vm99, %v2502, -1e+30
    %v2511 = vsel %vm100, %v2507, -1e+30
    %v2512 = vsel %vm447, %v2510, -inf
    %2513 = vmax.xlane.f32.xlu0 %v2512
    %v2514 = vpop.xlane.xlu0 %2513
    %v2515 = vsel %vm447, %v2511, -inf
    %2516 = vmax.xlane.f32.xlu0 %v2515
    %v2517 = vpop.xlane.xlu0 %2516
    %v2518 = vsub.f32 %v2510, %v2514
    %v2519 = vsub.f32 %v2511, %v2517
    %v2520 = vmul.f32 %v2518, 1.442695
    %v2521 = vpow.pop %v2520
    %v2522 = vmul.f32 %v2519, 1.442695
    %v2523 = vpow.pop %v2522
    %v2524 = vsel %vm447, %v2521, 0.0
    %2525 = vadd.xlane.f32.xlu0 %v2524
    %v2526 = vpop.xlane.xlu0 %2525
    %v2527 = vsel %vm447, %v2523, 0.0
    %2528 = vadd.xlane.f32.xlu0 %v2527
    %v2529 = vpop.xlane.xlu0 %2528
    %v2530 = vrcp.pop %v2526
    %v2531 = vrcp.pop %v2529
    %v2532 = vmul.f32 %v2521, %v2530
    %v2533 = vmul.f32 %v2523, %v2531
    %2534 = vrot.lane.b32.xlu0 %v1811, 32
    %v2535 = vpop.permute.xlu0 %2534
    %2536 = vrot.lane.b32.xlu0 %v1816, 32
    %v2537 = vpop.permute.xlu0 %2536
    %v2541 = vsel %vm447, %v2532, 0
    %v2544 = vsel %vm447, %v2533, 0
    %2546 = vmatprep.subr.mxu0 0.0
    %2547 = vmatpush1.msra.mxu0 0.0
    %2548 = vmatprep.subr.mxu0 0.0
    %2549 = vmatpush1.msra.mxu0 0.0
    %2550 = vmatprep.subr.mxu0 0.0
    %2551 = vmatpush1.msra.mxu0 0.0
    %2552 = vmatprep.subr.mxu0 0.0
    %2553 = vmatpush1.msra.mxu0 0.0
    %2554 = vmatprep.subr.mxu0 0.0
    %2555 = vmatpush1.msra.mxu0 0.0
    %2556 = vmatprep.subr.mxu0 0.0
    %2557 = vmatpush1.msra.mxu0 0.0
    %2558 = vmatprep.subr.mxu0 0.0
    %2559 = vmatpush1.msra.mxu0 0.0
    %2560 = vmatprep.subr.mxu0 0.0
    %2561 = vmatpush1.msra.mxu0 0.0
    %2562 = vmatprep.subr.mxu0 0.0
    %2563 = vmatpush1.msra.mxu0 0.0
    %2564 = vmatprep.subr.mxu0 0.0
    %2565 = vmatpush1.msra.mxu0 0.0
    %2566 = vmatprep.subr.mxu0 0.0
    %2567 = vmatpush1.msra.mxu0 0.0
    %2568 = vmatprep.subr.mxu0 0.0
    %2569 = vmatpush1.msra.mxu0 0.0
    %2570 = vmatprep.subr.mxu0 0.0
    %2571 = vmatpush1.msra.mxu0 0.0
    %2572 = vmatprep.subr.mxu0 0.0
    %2573 = vmatpush1.msra.mxu0 0.0
    %2574 = vmatprep.subr.mxu0 0.0
    %2575 = vmatpush1.msra.mxu0 %v2537
    %2576 = vmatprep.subr.mxu0 0.0
    %2577 = vmatpush1.msra.mxu0 %v2535
    %2578 = vmatprep.subr.mxu0 0.0
    %2579 = vmatpush2.msra.mxu0 0.0
    %2580 = vmatprep.subr.mxu0 0.0
    %2581 = vmatpush2.msra.mxu0 0.0
    %2582 = vmatprep.subr.mxu0 0.0
    %2583 = vmatpush2.msra.mxu0 0.0
    %2584 = vmatprep.subr.mxu0 0.0
    %2585 = vmatpush2.msra.mxu0 0.0
    %2586 = vmatprep.subr.mxu0 0.0
    %2587 = vmatpush2.msra.mxu0 0.0
    %2588 = vmatprep.subr.mxu0 0.0
    %2589 = vmatpush2.msra.mxu0 0.0
    %2590 = vmatprep.subr.mxu0 0.0
    %2591 = vmatpush2.msra.mxu0 0.0
    %2592 = vmatprep.subr.mxu0 0.0
    %2593 = vmatpush2.msra.mxu0 0.0
    %2594 = vmatprep.subr.mxu0 0.0
    %2595 = vmatpush2.msra.mxu0 0.0
    %2596 = vmatprep.subr.mxu0 0.0
    %2597 = vmatpush2.msra.mxu0 0.0
    %2598 = vmatprep.subr.mxu0 0.0
    %2599 = vmatpush2.msra.mxu0 0.0
    %2600 = vmatprep.subr.mxu0 0.0
    %2601 = vmatpush2.msra.mxu0 0.0
    %2602 = vmatprep.subr.mxu0 0.0
    %2603 = vmatpush2.msra.mxu0 0.0
    %2604 = vmatprep.subr.mxu0 0.0
    %2605 = vmatpush2.msra.mxu0 0.0
    %2606 = vmatprep.subr.mxu0 0.0
    %2607 = vmatpush2.msra.mxu0 0.0
    %2608 = vmatprep.subr.mxu0 0.0
    %2609 = vmatpush2.msra.mxu0 0.0
    %2610 = vmatprep.mubr.f32.mxu0 0.0
    %2611 = vmatmul.mubr.f32.gmra.mxu0 %v2541
    %v2612 = vpop.f32.mrf.mxu0
    %v2613 = vadd.f32 0.0, %v2612
    %v2614 = vpop.f32.mrf.mxu0
    %2615 = vmatprep.mubr.f32.mxu0 0.0
    %2616 = vmatmul.mubr.f32.gmra.mxu0 %v2544
    %v2617 = vpop.f32.mrf.mxu0
    %v2618 = vadd.f32 0.0, %v2617
    %v2619 = vpop.f32.mrf.mxu0
    %2620 = vdwg.mxu0
    %2623 = vrot.lane.b32.xlu0 %v2209, 32
    %v2624 = vpop.permute.xlu0 %2623
    %2625 = vrot.lane.b32.xlu0 %v2214, 32
    %v2626 = vpop.permute.xlu0 %2625
    %2631 = vrot.lane.b32.xlu0 %v2411, 64
    %v2632 = vpop.permute.xlu0 %2631
    %2633 = vrot.lane.b32.xlu0 %v2416, 64
    %v2634 = vpop.permute.xlu0 %2633
    %2639 = vrot.lane.b32.xlu0 %v2613, 96
    %v2640 = vpop.permute.xlu0 %2639
    %2641 = vrot.lane.b32.xlu0 %v2618, 96
    %v2642 = vpop.permute.xlu0 %2641
    %v2645 = vsel %vm357, %v2005, %v2624
    %v2646 = vsel %vm357, %v2010, %v2626
    %v2647 = vsel %vm1185, %v2645, %v2632
    %v2648 = vsel %vm1185, %v2646, %v2634
    %v2649 = vsel %vm1188, %v2647, %v2640
    %v2650 = vsel %vm1188, %v2648, %v2642
    %s2651 = scalar_lea.vmem %s5, 128
    %v2652 = vld [vmem:[%s2651] sm:$0xff]
    %v2653 = vld [vmem:[%s2651 + $0x8] sm:$0xff]
    %v2654 = vld [vmem:[%s2651 + $0x10] sm:$0xff]
    %v2655 = vld [vmem:[%s2651 + $0x18] sm:$0xff]
    %v2656 = vld [vmem:[%s2651 + $0x20] sm:$0xff]
    %v2657 = vld [vmem:[%s2651 + $0x28] sm:$0xff]
    %v2658 = vld [vmem:[%s2651 + $0x30] sm:$0xff]
    %v2659 = vld [vmem:[%s2651 + $0x38] sm:$0xff]
    %v2660 = vld [vmem:[%s2651 + $0x40] sm:$0xff]
    %v2661 = vld [vmem:[%s2651 + $0x48] sm:$0xff]
    %v2662 = vld [vmem:[%s2651 + $0x50] sm:$0xff]
    %v2663 = vld [vmem:[%s2651 + $0x58] sm:$0xff]
    %v2664 = vld [vmem:[%s2651 + $0x60] sm:$0xff]
    %v2665 = vld [vmem:[%s2651 + $0x68] sm:$0xff]
    %v2666 = vld [vmem:[%s2651 + $0x70] sm:$0xff]
    %v2667 = vld [vmem:[%s2651 + $0x78] sm:$0xff]
    %v2668 = vld [vmem:[%s6 + $0x1] sm:$0x1]
    %v2669 = vlaneseq
    %v2670 = vshrl.u32 %v2669, 7
    %v2671 = vsub.s32 0, %v2670
    %v2672 = vrot.slane %v2668, %v2671
    %2673 = vmatprep.subr.mxu0 0.0
    %2674 = vmatpush1.msra.mxu0 %v2667
    %2675 = vmatprep.subr.mxu0 0.0
    %2676 = vmatpush1.msra.mxu0 %v2666
    %2677 = vmatprep.subr.mxu0 0.0
    %2678 = vmatpush1.msra.mxu0 %v2665
    %2679 = vmatprep.subr.mxu0 0.0
    %2680 = vmatpush1.msra.mxu0 %v2664
    %2681 = vmatprep.subr.mxu0 0.0
    %2682 = vmatpush1.msra.mxu0 %v2663
    %2683 = vmatprep.subr.mxu0 0.0
    %2684 = vmatpush1.msra.mxu0 %v2662
    %2685 = vmatprep.subr.mxu0 0.0
    %2686 = vmatpush1.msra.mxu0 %v2661
    %2687 = vmatprep.subr.mxu0 0.0
    %2688 = vmatpush1.msra.mxu0 %v2660
    %2689 = vmatprep.subr.mxu0 0.0
    %2690 = vmatpush1.msra.mxu0 %v2659
    %2691 = vmatprep.subr.mxu0 0.0
    %2692 = vmatpush1.msra.mxu0 %v2658
    %2693 = vmatprep.subr.mxu0 0.0
    %2694 = vmatpush1.msra.mxu0 %v2657
    %2695 = vmatprep.subr.mxu0 0.0
    %2696 = vmatpush1.msra.mxu0 %v2656
    %2697 = vmatprep.subr.mxu0 0.0
    %2698 = vmatpush1.msra.mxu0 %v2655
    %2699 = vmatprep.subr.mxu0 0.0
    %2700 = vmatpush1.msra.mxu0 %v2654
    %2701 = vmatprep.subr.mxu0 0.0
    %2702 = vmatpush1.msra.mxu0 %v2653
    %2703 = vmatprep.subr.mxu0 0.0
    %2704 = vmatpush1.msra.mxu0 %v2652
    %2705 = vmatprep.subr.mxu0 0.0
    %2706 = vmatpush2.msra.mxu0 0.0
    %2707 = vmatprep.subr.mxu0 0.0
    %2708 = vmatpush2.msra.mxu0 0.0
    %2709 = vmatprep.subr.mxu0 0.0
    %2710 = vmatpush2.msra.mxu0 0.0
    %2711 = vmatprep.subr.mxu0 0.0
    %2712 = vmatpush2.msra.mxu0 0.0
    %2713 = vmatprep.subr.mxu0 0.0
    %2714 = vmatpush2.msra.mxu0 0.0
    %2715 = vmatprep.subr.mxu0 0.0
    %2716 = vmatpush2.msra.mxu0 0.0
    %2717 = vmatprep.subr.mxu0 0.0
    %2718 = vmatpush2.msra.mxu0 0.0
    %2719 = vmatprep.subr.mxu0 0.0
    %2720 = vmatpush2.msra.mxu0 0.0
    %2721 = vmatprep.subr.mxu0 0.0
    %2722 = vmatpush2.msra.mxu0 0.0
    %2723 = vmatprep.subr.mxu0 0.0
    %2724 = vmatpush2.msra.mxu0 0.0
    %2725 = vmatprep.subr.mxu0 0.0
    %2726 = vmatpush2.msra.mxu0 0.0
    %2727 = vmatprep.subr.mxu0 0.0
    %2728 = vmatpush2.msra.mxu0 0.0
    %2729 = vmatprep.subr.mxu0 0.0
    %2730 = vmatpush2.msra.mxu0 0.0
    %2731 = vmatprep.subr.mxu0 0.0
    %2732 = vmatpush2.msra.mxu0 0.0
    %2733 = vmatprep.subr.mxu0 0.0
    %2734 = vmatpush2.msra.mxu0 0.0
    %2735 = vmatprep.subr.mxu0 0.0
    %2736 = vmatpush2.msra.mxu0 0.0
    %2737 = vmatprep.mubr.f32.mxu0 0.0
    %2738 = vmatmul.mubr.f32.gmra.mxu0 %v2649
    %v2739 = vpop.f32.mrf.mxu0
    %v2740 = vadd.f32 %v2672, %v2739
    %v2741 = vpop.f32.mrf.mxu0
    %2742 = vmatprep.mubr.f32.mxu0 0.0
    %2743 = vmatmul.mubr.f32.gmra.mxu0 %v2650
    %v2744 = vpop.f32.mrf.mxu0
    %v2745 = vadd.f32 %v2672, %v2744
    %v2746 = vpop.f32.mrf.mxu0
    %2747 = vdwg.mxu0
    %v2748 = vadd.f32 %v1562, %v2740
    %v2749 = vadd.f32 %v1563, %v2745
    %v2750 = vld [vmem:[%s7 + $0x1] sm:$0x1]
    %v2751 = vld [vmem:[%s8 + $0x1] sm:$0x1]
    %2752 = vadd.xlane.f32.xlu0 %v2748
    %v2753 = vpop.xlane.xlu0 %2752
    %2754 = vadd.xlane.f32.xlu0 %v2749
    %v2755 = vpop.xlane.xlu0 %2754
    %v2756 = vmul.f32 %v2753, %v107
    %v2757 = vmul.f32 %v2755, %v107
    %v2758 = vsub.f32 %v2748, %v2756
    %v2759 = vsub.f32 %v2749, %v2757
    %v2760 = vmul.f32 %v2758, %v2758
    %v2761 = vmul.f32 %v2759, %v2759
    %2762 = vadd.xlane.f32.xlu0 %v2760
    %v2763 = vpop.xlane.xlu0 %2762
    %2764 = vadd.xlane.f32.xlu0 %v2761
    %v2765 = vpop.xlane.xlu0 %2764
    %v2766 = vmul.f32 %v2763, %v107
    %v2767 = vmul.f32 %v2765, %v107
    %v2768 = vadd.f32 %v2766, 1e-05
    %v2769 = vadd.f32 %v2767, 1e-05
    %v2770 = vrsqrt.pop %v2768
    %v2771 = vrsqrt.pop %v2769
    %v2772 = vmul.f32 %v2758, %v2770
    %v2773 = vmul.f32 %v2759, %v2771
    %v2774 = vlaneseq
    %v2775 = vshrl.u32 %v2774, 7
    %v2776 = vsub.s32 0, %v2775
    %v2777 = vrot.slane %v2750, %v2776
    %v2778 = vmul.f32 %v2772, %v2777
    %v2779 = vmul.f32 %v2773, %v2777
    %v2780 = vlaneseq
    %v2781 = vshrl.u32 %v2780, 7
    %v2782 = vsub.s32 0, %v2781
    %v2783 = vrot.slane %v2751, %v2782
    %v2784 = vadd.f32 %v2778, %v2783
    %v2785 = vadd.f32 %v2779, %v2783
    %s2786 = scalar_lea.vmem [#allocation5], 256
    %v2787 = vld [vmem:[%s2786] sm:$0xff]
    %v2788 = vld [vmem:[%s2786 + $0x8] sm:$0xff]
    %v2789 = vld [vmem:[%s2786 + $0x10] sm:$0xff]
    %v2790 = vld [vmem:[%s2786 + $0x18] sm:$0xff]
    %v2791 = vld [vmem:[%s2786 + $0x20] sm:$0xff]
    %v2792 = vld [vmem:[%s2786 + $0x28] sm:$0xff]
    %v2793 = vld [vmem:[%s2786 + $0x30] sm:$0xff]
    %v2794 = vld [vmem:[%s2786 + $0x38] sm:$0xff]
    %v2795 = vld [vmem:[%s2786 + $0x40] sm:$0xff]
    %v2796 = vld [vmem:[%s2786 + $0x48] sm:$0xff]
    %v2797 = vld [vmem:[%s2786 + $0x50] sm:$0xff]
    %v2798 = vld [vmem:[%s2786 + $0x58] sm:$0xff]
    %v2799 = vld [vmem:[%s2786 + $0x60] sm:$0xff]
    %v2800 = vld [vmem:[%s2786 + $0x68] sm:$0xff]
    %v2801 = vld [vmem:[%s2786 + $0x70] sm:$0xff]
    %v2802 = vld [vmem:[%s2786 + $0x78] sm:$0xff]
    %v2803 = vld [vmem:[%s2786 + $0x80] sm:$0xff]
    %v2804 = vld [vmem:[%s2786 + $0x88] sm:$0xff]
    %v2805 = vld [vmem:[%s2786 + $0x90] sm:$0xff]
    %v2806 = vld [vmem:[%s2786 + $0x98] sm:$0xff]
    %v2807 = vld [vmem:[%s2786 + $0xa0] sm:$0xff]
    %v2808 = vld [vmem:[%s2786 + $0xa8] sm:$0xff]
    %v2809 = vld [vmem:[%s2786 + $0xb0] sm:$0xff]
    %v2810 = vld [vmem:[%s2786 + $0xb8] sm:$0xff]
    %v2811 = vld [vmem:[%s2786 + $0xc0] sm:$0xff]
    %v2812 = vld [vmem:[%s2786 + $0xc8] sm:$0xff]
    %v2813 = vld [vmem:[%s2786 + $0xd0] sm:$0xff]
    %v2814 = vld [vmem:[%s2786 + $0xd8] sm:$0xff]
    %v2815 = vld [vmem:[%s2786 + $0xe0] sm:$0xff]
    %v2816 = vld [vmem:[%s2786 + $0xe8] sm:$0xff]
    %v2817 = vld [vmem:[%s2786 + $0xf0] sm:$0xff]
    %v2818 = vld [vmem:[%s2786 + $0xf8] sm:$0xff]
    %s2819 = scalar_lea.vmem %s10, 1
    %v2820 = vld [vmem:[%s2819] ss:$2 sm:$0x3]
    %v2822 = vlaneseq
    %v2823 = vshrl.u32 %v2822, 7
    %v2824 = vsub.s32 0, %v2823
    %v2825 = vrot.slane %v2820, %v2824
    %v2826 = vlaneseq
    %v2827 = vshrl.u32 %v2826, 7
    %v2828 = vsub.s32 1, %v2827
    %v2829 = vrot.slane %v2820, %v2828
    %2832 = vmatprep.subr.mxu0 %v2818
    %2833 = vmatpush1.msra.mxu0 %v2817
    %2834 = vmatprep.subr.mxu0 %v2816
    %2835 = vmatpush1.msra.mxu0 %v2815
    %2836 = vmatprep.subr.mxu0 %v2814
    %2837 = vmatpush1.msra.mxu0 %v2813
    %2838 = vmatprep.subr.mxu0 %v2812
    %2839 = vmatpush1.msra.mxu0 %v2811
    %2840 = vmatprep.subr.mxu0 %v2810
    %2841 = vmatpush1.msra.mxu0 %v2809
    %2842 = vmatprep.subr.mxu0 %v2808
    %2843 = vmatpush1.msra.mxu0 %v2807
    %2844 = vmatprep.subr.mxu0 %v2806
    %2845 = vmatpush1.msra.mxu0 %v2805
    %2846 = vmatprep.subr.mxu0 %v2804
    %2847 = vmatpush1.msra.mxu0 %v2803
    %2848 = vmatprep.subr.mxu0 %v2802
    %2849 = vmatpush1.msra.mxu0 %v2801
    %2850 = vmatprep.subr.mxu0 %v2800
    %2851 = vmatpush1.msra.mxu0 %v2799
    %2852 = vmatprep.subr.mxu0 %v2798
    %2853 = vmatpush1.msra.mxu0 %v2797
    %2854 = vmatprep.subr.mxu0 %v2796
    %2855 = vmatpush1.msra.mxu0 %v2795
    %2856 = vmatprep.subr.mxu0 %v2794
    %2857 = vmatpush1.msra.mxu0 %v2793
    %2858 = vmatprep.subr.mxu0 %v2792
    %2859 = vmatpush1.msra.mxu0 %v2791
    %2860 = vmatprep.subr.mxu0 %v2790
    %2861 = vmatpush1.msra.mxu0 %v2789
    %2862 = vmatprep.subr.mxu0 %v2788
    %2863 = vmatpush1.msra.mxu0 %v2787
    %2864 = vmatprep.subr.mxu0 0.0
    %2865 = vmatpush2.msra.mxu0 0.0
    %2866 = vmatprep.subr.mxu0 0.0
    %2867 = vmatpush2.msra.mxu0 0.0
    %2868 = vmatprep.subr.mxu0 0.0
    %2869 = vmatpush2.msra.mxu0 0.0
    %2870 = vmatprep.subr.mxu0 0.0
    %2871 = vmatpush2.msra.mxu0 0.0
    %2872 = vmatprep.subr.mxu0 0.0
    %2873 = vmatpush2.msra.mxu0 0.0
    %2874 = vmatprep.subr.mxu0 0.0
    %2875 = vmatpush2.msra.mxu0 0.0
    %2876 = vmatprep.subr.mxu0 0.0
    %2877 = vmatpush2.msra.mxu0 0.0
    %2878 = vmatprep.subr.mxu0 0.0
    %2879 = vmatpush2.msra.mxu0 0.0
    %2880 = vmatprep.subr.mxu0 0.0
    %2881 = vmatpush2.msra.mxu0 0.0
    %2882 = vmatprep.subr.mxu0 0.0
    %2883 = vmatpush2.msra.mxu0 0.0
    %2884 = vmatprep.subr.mxu0 0.0
    %2885 = vmatpush2.msra.mxu0 0.0
    %2886 = vmatprep.subr.mxu0 0.0
    %2887 = vmatpush2.msra.mxu0 0.0
    %2888 = vmatprep.subr.mxu0 0.0
    %2889 = vmatpush2.msra.mxu0 0.0
    %2890 = vmatprep.subr.mxu0 0.0
    %2891 = vmatpush2.msra.mxu0 0.0
    %2892 = vmatprep.subr.mxu0 0.0
    %2893 = vmatpush2.msra.mxu0 0.0
    %2894 = vmatprep.subr.mxu0 0.0
    %2895 = vmatpush2.msra.mxu0 0.0
    %2896 = vmatprep.mubr.f32.mxu0 0.0
    %2897 = vmatmul.mubr.f32.gmra.mxu0 %v2784
    %v2898 = vpop.f32.mrf.mxu0
    %v2899 = vadd.f32 %v2825, %v2898
    %v2900 = vpop.f32.mrf.mxu0
    %v2901 = vadd.f32 %v2829, %v2900
    %2902 = vmatprep.mubr.f32.mxu0 0.0
    %2903 = vmatmul.mubr.f32.gmra.mxu0 %v2785
    %v2904 = vpop.f32.mrf.mxu0
    %v2905 = vadd.f32 %v2825, %v2904
    %v2906 = vpop.f32.mrf.mxu0
    %v2907 = vadd.f32 %v2829, %v2906
    %2908 = vdwg.mxu0
    %v2909 = vmax.f32 %v2899, 0.0
    %v2910 = vmax.f32 %v2901, 0.0
    %v2911 = vmax.f32 %v2905, 0.0
    %v2912 = vmax.f32 %v2907, 0.0
    %s2913 = scalar_lea.vmem [#allocation7], 256
    %v2914 = vld [vmem:[%s2913] sm:$0xff]
    %v2915 = vld [vmem:[%s2913 + $0x8] sm:$0xff]
    %v2916 = vld [vmem:[%s2913 + $0x10] sm:$0xff]
    %v2917 = vld [vmem:[%s2913 + $0x18] sm:$0xff]
    %v2918 = vld [vmem:[%s2913 + $0x20] sm:$0xff]
    %v2919 = vld [vmem:[%s2913 + $0x28] sm:$0xff]
    %v2920 = vld [vmem:[%s2913 + $0x30] sm:$0xff]
    %v2921 = vld [vmem:[%s2913 + $0x38] sm:$0xff]
    %v2922 = vld [vmem:[%s2913 + $0x40] sm:$0xff]
    %v2923 = vld [vmem:[%s2913 + $0x48] sm:$0xff]
    %v2924 = vld [vmem:[%s2913 + $0x50] sm:$0xff]
    %v2925 = vld [vmem:[%s2913 + $0x58] sm:$0xff]
    %v2926 = vld [vmem:[%s2913 + $0x60] sm:$0xff]
    %v2927 = vld [vmem:[%s2913 + $0x68] sm:$0xff]
    %v2928 = vld [vmem:[%s2913 + $0x70] sm:$0xff]
    %v2929 = vld [vmem:[%s2913 + $0x78] sm:$0xff]
    %v2930 = vld [vmem:[%s2913 + $0x80] sm:$0xff]
    %v2931 = vld [vmem:[%s2913 + $0x88] sm:$0xff]
    %v2932 = vld [vmem:[%s2913 + $0x90] sm:$0xff]
    %v2933 = vld [vmem:[%s2913 + $0x98] sm:$0xff]
    %v2934 = vld [vmem:[%s2913 + $0xa0] sm:$0xff]
    %v2935 = vld [vmem:[%s2913 + $0xa8] sm:$0xff]
    %v2936 = vld [vmem:[%s2913 + $0xb0] sm:$0xff]
    %v2937 = vld [vmem:[%s2913 + $0xb8] sm:$0xff]
    %v2938 = vld [vmem:[%s2913 + $0xc0] sm:$0xff]
    %v2939 = vld [vmem:[%s2913 + $0xc8] sm:$0xff]
    %v2940 = vld [vmem:[%s2913 + $0xd0] sm:$0xff]
    %v2941 = vld [vmem:[%s2913 + $0xd8] sm:$0xff]
    %v2942 = vld [vmem:[%s2913 + $0xe0] sm:$0xff]
    %v2943 = vld [vmem:[%s2913 + $0xe8] sm:$0xff]
    %v2944 = vld [vmem:[%s2913 + $0xf0] sm:$0xff]
    %v2945 = vld [vmem:[%s2913 + $0xf8] sm:$0xff]
    %v2946 = vld [vmem:[%s12 + $0x1] sm:$0x1]
    %v2947 = vlaneseq
    %v2948 = vshrl.u32 %v2947, 7
    %v2949 = vsub.s32 0, %v2948
    %v2950 = vrot.slane %v2946, %v2949
    %2951 = vmatprep.subr.mxu0 0.0
    %2952 = vmatpush1.msra.mxu0 %v2929
    %2953 = vmatprep.subr.mxu0 0.0
    %2954 = vmatpush1.msra.mxu0 %v2928
    %2955 = vmatprep.subr.mxu0 0.0
    %2956 = vmatpush1.msra.mxu0 %v2927
    %2957 = vmatprep.subr.mxu0 0.0
    %2958 = vmatpush1.msra.mxu0 %v2926
    %2959 = vmatprep.subr.mxu0 0.0
    %2960 = vmatpush1.msra.mxu0 %v2925
    %2961 = vmatprep.subr.mxu0 0.0
    %2962 = vmatpush1.msra.mxu0 %v2924
    %2963 = vmatprep.subr.mxu0 0.0
    %2964 = vmatpush1.msra.mxu0 %v2923
    %2965 = vmatprep.subr.mxu0 0.0
    %2966 = vmatpush1.msra.mxu0 %v2922
    %2967 = vmatprep.subr.mxu0 0.0
    %2968 = vmatpush1.msra.mxu0 %v2921
    %2969 = vmatprep.subr.mxu0 0.0
    %2970 = vmatpush1.msra.mxu0 %v2920
    %2971 = vmatprep.subr.mxu0 0.0
    %2972 = vmatpush1.msra.mxu0 %v2919
    %2973 = vmatprep.subr.mxu0 0.0
    %2974 = vmatpush1.msra.mxu0 %v2918
    %2975 = vmatprep.subr.mxu0 0.0
    %2976 = vmatpush1.msra.mxu0 %v2917
    %2977 = vmatprep.subr.mxu0 0.0
    %2978 = vmatpush1.msra.mxu0 %v2916
    %2979 = vmatprep.subr.mxu0 0.0
    %2980 = vmatpush1.msra.mxu0 %v2915
    %2981 = vmatprep.subr.mxu0 0.0
    %2982 = vmatpush1.msra.mxu0 %v2914
    %2983 = vmatprep.subr.mxu0 0.0
    %2984 = vmatpush2.msra.mxu0 %v2945
    %2985 = vmatprep.subr.mxu0 0.0
    %2986 = vmatpush2.msra.mxu0 %v2944
    %2987 = vmatprep.subr.mxu0 0.0
    %2988 = vmatpush2.msra.mxu0 %v2943
    %2989 = vmatprep.subr.mxu0 0.0
    %2990 = vmatpush2.msra.mxu0 %v2942
    %2991 = vmatprep.subr.mxu0 0.0
    %2992 = vmatpush2.msra.mxu0 %v2941
    %2993 = vmatprep.subr.mxu0 0.0
    %2994 = vmatpush2.msra.mxu0 %v2940
    %2995 = vmatprep.subr.mxu0 0.0
    %2996 = vmatpush2.msra.mxu0 %v2939
    %2997 = vmatprep.subr.mxu0 0.0
    %2998 = vmatpush2.msra.mxu0 %v2938
    %2999 = vmatprep.subr.mxu0 0.0
    %3000 = vmatpush2.msra.mxu0 %v2937
    %3001 = vmatprep.subr.mxu0 0.0
    %3002 = vmatpush2.msra.mxu0 %v2936
    %3003 = vmatprep.subr.mxu0 0.0
    %3004 = vmatpush2.msra.mxu0 %v2935
    %3005 = vmatprep.subr.mxu0 0.0
    %3006 = vmatpush2.msra.mxu0 %v2934
    %3007 = vmatprep.subr.mxu0 0.0
    %3008 = vmatpush2.msra.mxu0 %v2933
    %3009 = vmatprep.subr.mxu0 0.0
    %3010 = vmatpush2.msra.mxu0 %v2932
    %3011 = vmatprep.subr.mxu0 0.0
    %3012 = vmatpush2.msra.mxu0 %v2931
    %3013 = vmatprep.subr.mxu0 0.0
    %3014 = vmatpush2.msra.mxu0 %v2930
    %3015 = vmatprep.mubr.f32.mxu0 %v2910
    %3016 = vmatmul.mubr.f32.gmra.mxu0 %v2909
    %v3017 = vpop.f32.mrf.mxu0
    %v3018 = vadd.f32 %v2950, %v3017
    %v3019 = vpop.f32.mrf.mxu0
    %3020 = vmatprep.mubr.f32.mxu0 %v2912
    %3021 = vmatmul.mubr.f32.gmra.mxu0 %v2911
    %v3022 = vpop.f32.mrf.mxu0
    %v3023 = vadd.f32 %v2950, %v3022
    %v3024 = vpop.f32.mrf.mxu0
    %3025 = vdwg.mxu0
    %v3026 = vadd.f32 %v2748, %v3018
    %v3027 = vadd.f32 %v2749, %v3023
    %v3028 = vld [vmem:[%s13] sm:$0x1]
    %v3029 = vld [vmem:[%s14] sm:$0x1]
    %3030 = vadd.xlane.f32.xlu0 %v3026
    %v3031 = vpop.xlane.xlu0 %3030
    %3032 = vadd.xlane.f32.xlu0 %v3027
    %v3033 = vpop.xlane.xlu0 %3032
    %v3034 = vmul.f32 %v3031, %v107
    %v3035 = vmul.f32 %v3033, %v107
    %v3036 = vsub.f32 %v3026, %v3034
    %v3037 = vsub.f32 %v3027, %v3035
    %v3038 = vmul.f32 %v3036, %v3036
    %v3039 = vmul.f32 %v3037, %v3037
    %3040 = vadd.xlane.f32.xlu0 %v3038
    %v3041 = vpop.xlane.xlu0 %3040
    %3042 = vadd.xlane.f32.xlu0 %v3039
    %v3043 = vpop.xlane.xlu0 %3042
    %v3044 = vmul.f32 %v3041, %v107
    %v3045 = vmul.f32 %v3043, %v107
    %v3046 = vadd.f32 %v3044, 1e-05
    %v3047 = vadd.f32 %v3045, 1e-05
    %v3048 = vrsqrt.pop %v3046
    %v3049 = vrsqrt.pop %v3047
    %v3050 = vmul.f32 %v3036, %v3048
    %v3051 = vmul.f32 %v3037, %v3049
    %v3053 = vlaneseq
    %v3054 = vshrl.u32 %v3053, 7
    %v3055 = vsub.s32 0, %v3054
    %v3056 = vrot.slane %v3028, %v3055
    %v3058 = vmul.f32 %v3050, %v3056
    %v3059 = vmul.f32 %v3051, %v3056
    %v3061 = vlaneseq
    %v3062 = vshrl.u32 %v3061, 7
    %v3063 = vsub.s32 0, %v3062
    %v3064 = vrot.slane %v3029, %v3063
    %v3066 = vadd.f32 %v3058, %v3064
    %v3067 = vadd.f32 %v3059, %v3064
    %3068 = vst [vmem:[#allocation8] sm:$0xff] %v3066
    %3069 = vst [vmem:[#allocation8 + $0x8] sm:$0xff] %v3067
    // Predicated region
    $region74: #{opt_decoder_forward.1} parent=1 // pred_check
      _
    $region75: #{opt_decoder_forward.1} parent=1 // pred_check_branch
      %3071 = sbr.rel (0) target = $region77
    $region76: #{opt_decoder_forward.1} parent=1 // pred_region
      %s3073 = ssub.s32 256, 256
      %3074 = vsyncadd [#allocation4], %s3073
      %s3075 = sshll.u32 [#allocation8], 4
      %s3076 = int_to_ptr.vmem [resolvable:$true] %s3075
      %3081 = dma.vmem_to_hbm [thread:$0]  %s3076, 256, %s15, [#allocation4], 128, 128, 8
    $region77: #{opt_decoder_forward.1} parent=1 // pred_fallthru
      _
    // Predicated region
    $region78: #{opt_decoder_forward.1} parent=1 // pred_check
      _
    $region79: #{opt_decoder_forward.1} parent=1 // pred_check_branch
      %3083 = sbr.rel (0) target = $region81
    $region80: #{opt_decoder_forward.1} parent=1 // pred_region
      %3084 = dma.done [#allocation4], 256
    $region81: #{opt_decoder_forward.1} parent=1 // pred_fallthru
      _
    %3085 = vsyncpa [#allocation3], 1
    %3086 = vsyncpa [#allocation6], 1
    %3087 = vsyncpa [#allocation4], 1

</llo_original>
